<compile_context>
chip_gen: v7x
topology: tpu7x:2x2x1
jax: 0.10.0
libtpu: 0.0.40
codegen_flags: <defaults>
</compile_context>

<pallas_src>
import functools

import jax
import jax.numpy as jnp
from jax import lax
from jax.experimental import pallas as pl
from jax.experimental.pallas import tpu as pltpu


_VMEM_LIMIT = 16 * 1024 * 1024   # kernel footprint here is < 4 MiB; safe on v7x's 64 MiB
_EPS = 1e-5


def _round_up(x, m):
    return ((x + m - 1) // m) * m


def _m_tiling(M, tm_max=1024):
    """Tile the row (pixel) dim: minimal padding, and >= 2 grid steps whenever
    M > 128 so v7x's two TensorCores both get work (grid axis is 'parallel')."""
    Mp8 = _round_up(max(M, 1), 8)
    if Mp8 <= 128:
        return Mp8, Mp8                                   # tiny: launch-overhead bound
    if Mp8 <= 2 * tm_max:
        tm = max(128, _round_up(pl.cdiv(Mp8, 2), 8))      # exactly 2 grid steps
        return tm, _round_up(Mp8, tm)
    best = None
    for tm in (tm_max, tm_max // 2, tm_max // 4):         # least pad, then biggest tile
        Mp = _round_up(Mp8, tm)
        cand = (Mp - Mp8, -tm, tm, Mp)
        if best is None or cand < best:
            best = cand
    return best[2], best[3]


def _fused_tiling(M):
    """Tiling for the fused pointwise+classifier kernel: tm is a multiple of the
    in-kernel row chunk (128) so the lane-sparse intermediate stays small."""
    Mp8 = _round_up(max(M, 1), 8)
    if Mp8 <= 128:
        return Mp8, Mp8, Mp8                              # tm, Mp, chunk
    best = None
    for tm in (512, 256, 128):
        Mp = _round_up(Mp8, tm)
        steps = Mp // tm
        cand = (Mp - Mp8, 0 if steps >= 2 else 1, -tm, tm, Mp)
        if best is None or cand < best:
            best = cand
    return best[3], best[4], 128


def _pad_rows(x, Mp):
    M = x.shape[0]
    return x if Mp == M else jnp.pad(x, ((0, Mp - M), (0, 0)))


def _compiler_params():
    return pltpu.CompilerParams(
        dimension_semantics=("parallel",),
        vmem_limit_bytes=_VMEM_LIMIT,
    )


# ----------------------------------------------------------------------------
# Kernel A: y = relu(x * scale + shift) @ W        (single input)
# ----------------------------------------------------------------------------
def _bn_relu_matmul_kernel(x_ref, ss_ref, w_ref, o_ref):
    x = x_ref[...].astype(jnp.float32)
    h = jnp.maximum(x * ss_ref[0:1, :] + ss_ref[1:2, :], 0.0)
    o_ref[...] = jnp.dot(h.astype(jnp.bfloat16), w_ref[...],
                         preferred_element_type=jnp.float32).astype(o_ref.dtype)


def bn_relu_matmul(x, ss, w, *, out_dtype=jnp.bfloat16):
    """x: (M, K), ss: (2, K) f32 [scale; shift], w: (K, N) bf16 -> (M, N)."""
    M, K = x.shape
    N = w.shape[1]
    tm, Mp = _m_tiling(M)
    xp = _pad_rows(x, Mp)

    out = pl.pallas_call(
        _bn_relu_matmul_kernel,
        out_shape=jax.ShapeDtypeStruct((Mp, N), out_dtype),
        grid_spec=pltpu.PrefetchScalarGridSpec(
            num_scalar_prefetch=0,
            grid=(Mp // tm,),
            in_specs=[
                pl.BlockSpec((tm, K), lambda i: (i, 0)),
                pl.BlockSpec((2, K), lambda i: (0, 0)),
                pl.BlockSpec((K, N), lambda i: (0, 0)),
            ],
            out_specs=pl.BlockSpec((tm, N), lambda i: (i, 0)),
        ),
        compiler_params=_compiler_params(),
        cost_estimate=pl.CostEstimate(
            flops=2 * Mp * K * N,
            transcendentals=0,
            bytes_accessed=x.dtype.itemsize * Mp * K + 2 * K * N
            + jnp.dtype(out_dtype).itemsize * Mp * N,
        ),
    )(xp, ss, w)
    return out[:M] if Mp != M else out


# ----------------------------------------------------------------------------
# Kernel B: y = relu(a*sa+ba) @ Wa + relu(b*sb+bb) @ Wb   (split-K, no concat)
# ----------------------------------------------------------------------------
def _bn_relu_matmul2_kernel(a_ref, b_ref, ssa_ref, ssb_ref, wa_ref, wb_ref, o_ref):
    a = a_ref[...].astype(jnp.float32)
    b = b_ref[...].astype(jnp.float32)
    ha = jnp.maximum(a * ssa_ref[0:1, :] + ssa_ref[1:2, :], 0.0)
    hb = jnp.maximum(b * ssb_ref[0:1, :] + ssb_ref[1:2, :], 0.0)
    acc = jnp.dot(ha.astype(jnp.bfloat16), wa_ref[...], preferred_element_type=jnp.float32)
    acc = acc + jnp.dot(hb.astype(jnp.bfloat16), wb_ref[...], preferred_element_type=jnp.float32)
    o_ref[...] = acc.astype(o_ref.dtype)


def bn_relu_matmul2(a, b, ssa, ssb, wa, wb, *, out_dtype=jnp.bfloat16):
    """a: (M, Ka), b: (M, Kb); W rows partitioned along the (virtual) concat axis."""
    M, Ka = a.shape
    Kb = b.shape[1]
    N = wa.shape[1]
    tm, Mp = _m_tiling(M)
    ap = _pad_rows(a, Mp)
    bp = _pad_rows(b, Mp)

    out = pl.pallas_call(
        _bn_relu_matmul2_kernel,
        out_shape=jax.ShapeDtypeStruct((Mp, N), out_dtype),
        grid_spec=pltpu.PrefetchScalarGridSpec(
            num_scalar_prefetch=0,
            grid=(Mp // tm,),
            in_specs=[
                pl.BlockSpec((tm, Ka), lambda i: (i, 0)),
                pl.BlockSpec((tm, Kb), lambda i: (i, 0)),
                pl.BlockSpec((2, Ka), lambda i: (0, 0)),
                pl.BlockSpec((2, Kb), lambda i: (0, 0)),
                pl.BlockSpec((Ka, N), lambda i: (0, 0)),
                pl.BlockSpec((Kb, N), lambda i: (0, 0)),
            ],
            out_specs=pl.BlockSpec((tm, N), lambda i: (i, 0)),
        ),
        compiler_params=_compiler_params(),
        cost_estimate=pl.CostEstimate(
            flops=2 * Mp * (Ka + Kb) * N,
            transcendentals=0,
            bytes_accessed=a.dtype.itemsize * Mp * Ka + b.dtype.itemsize * Mp * Kb
            + 2 * (Ka + Kb) * N + jnp.dtype(out_dtype).itemsize * Mp * N,
        ),
    )(ap, bp, ssa, ssb, wa, wb)
    return out[:M] if Mp != M else out


# ----------------------------------------------------------------------------
# Kernel D: backbone block4 stand-in + cat([x4, pool3]) + deconv3, fused.
#   x4 = relu(p3) @ Wproj            (kept in vregs/VMEM, never hits HBM)
#   y  = relu(bn_a(x4)) @ Wa + relu(bn_b(p3)) @ Wb
# ----------------------------------------------------------------------------
def _stage4_deconv3_kernel(p3_ref, wp_ref, ssa_ref, ssb_ref, wa_ref, wb_ref, o_ref):
    p3 = p3_ref[...].astype(jnp.float32)
    x4 = jnp.dot(jnp.maximum(p3, 0.0).astype(jnp.bfloat16), wp_ref[...],
                 preferred_element_type=jnp.float32)
    ha = jnp.maximum(x4 * ssa_ref[0:1, :] + ssa_ref[1:2, :], 0.0)
    hb = jnp.maximum(p3 * ssb_ref[0:1, :] + ssb_ref[1:2, :], 0.0)
    acc = jnp.dot(ha.astype(jnp.bfloat16), wa_ref[...], preferred_element_type=jnp.float32)
    acc = acc + jnp.dot(hb.astype(jnp.bfloat16), wb_ref[...], preferred_element_type=jnp.float32)
    o_ref[...] = acc.astype(o_ref.dtype)


def stage4_deconv3(p3, wp, ssa, ssb, wa, wb, *, out_dtype=jnp.bfloat16):
    M, Kb = p3.shape            # pool3 feeds both the projection and the 'b' half
    Ka = wp.shape[1]            # x4 channels
    N = wa.shape[1]
    tm, Mp = _m_tiling(M)
    p3p = _pad_rows(p3, Mp)

    out = pl.pallas_call(
        _stage4_deconv3_kernel,
        out_shape=jax.ShapeDtypeStruct((Mp, N), out_dtype),
        grid_spec=pltpu.PrefetchScalarGridSpec(
            num_scalar_prefetch=0,
            grid=(Mp // tm,),
            in_specs=[
                pl.BlockSpec((tm, Kb), lambda i: (i, 0)),
                pl.BlockSpec((Kb, Ka), lambda i: (0, 0)),
                pl.BlockSpec((2, Ka), lambda i: (0, 0)),
                pl.BlockSpec((2, Kb), lambda i: (0, 0)),
                pl.BlockSpec((Ka, N), lambda i: (0, 0)),
                pl.BlockSpec((Kb, N), lambda i: (0, 0)),
            ],
            out_specs=pl.BlockSpec((tm, N), lambda i: (i, 0)),
        ),
        compiler_params=_compiler_params(),
        cost_estimate=pl.CostEstimate(
            flops=2 * Mp * Kb * Ka + 2 * Mp * (Ka + Kb) * N,
            transcendentals=0,
            bytes_accessed=p3.dtype.itemsize * Mp * Kb + 2 * (Kb * Ka + (Ka + Kb) * N)
            + jnp.dtype(out_dtype).itemsize * Mp * N,
        ),
    )(p3p, wp, ssa, ssb, wa, wb)
    return out[:M] if Mp != M else out


# ----------------------------------------------------------------------------
# Kernel C: fused pointwise ConvBlock + classifier ConvTranspose ConvBlock.
#   h1 = relu(bn1(cat[a,b])) @ W_pw    (split-K, num_classes lanes, stays in vregs)
#   y  = relu(bn2(h1)) @ W_cls         (lane-dense final store)
# The lane-sparse (rows, num_classes) intermediate is produced per 128-row chunk
# inside the kernel so it never occupies more than ~16 vregs (no spills).
# ----------------------------------------------------------------------------
def _fused_pw_cls_kernel(a_ref, b_ref, ssa_ref, ssb_ref, wa_ref, wb_ref,
                         ss2_ref, wc_ref, o_ref, *, chunk, n_chunks):
    wa = wa_ref[...]
    wb = wb_ref[...]
    wc = wc_ref[...]
    sa, ba = ssa_ref[0:1, :], ssa_ref[1:2, :]
    sb, bb = ssb_ref[0:1, :], ssb_ref[1:2, :]
    s2, b2 = ss2_ref[0:1, :], ss2_ref[1:2, :]

    def body(c, carry):
        r0 = pl.multiple_of(c * chunk, chunk)
        a = a_ref[pl.ds(r0, chunk), :].astype(jnp.float32)
        b = b_ref[pl.ds(r0, chunk), :].astype(jnp.float32)
        ha = jnp.maximum(a * sa + ba, 0.0)
        hb = jnp.maximum(b * sb + bb, 0.0)
        h1 = jnp.dot(ha.astype(jnp.bfloat16), wa, preferred_element_type=jnp.float32)
        h1 = h1 + jnp.dot(hb.astype(jnp.bfloat16), wb, preferred_element_type=jnp.float32)
        h2 = jnp.maximum(h1 * s2 + b2, 0.0)
        o_ref[pl.ds(r0, chunk), :] = jnp.dot(
            h2.astype(jnp.bfloat16), wc, preferred_element_type=jnp.float32
        ).astype(o_ref.dtype)
        return carry

    lax.fori_loop(0, n_chunks, body, None, unroll=True)


def fused_pw_cls(a, b, ssa, ssb, wa, wb, ss2, wc):
    M, Ka = a.shape
    Kb = b.shape[1]
    NC = wa.shape[1]            # num_classes
    N = wc.shape[1]             # num_classes * k * k
    tm, Mp, chunk = _fused_tiling(M)
    n_chunks = tm // chunk
    ap = _pad_rows(a, Mp)
    bp = _pad_rows(b, Mp)

    kernel = functools.partial(_fused_pw_cls_kernel, chunk=chunk, n_chunks=n_chunks)
    out = pl.pallas_call(
        kernel,
        out_shape=jax.ShapeDtypeStruct((Mp, N), jnp.float32),
        grid_spec=pltpu.PrefetchScalarGridSpec(
            num_scalar_prefetch=0,
            grid=(Mp // tm,),
            in_specs=[
                pl.BlockSpec((tm, Ka), lambda i: (i, 0)),
                pl.BlockSpec((tm, Kb), lambda i: (i, 0)),
                pl.BlockSpec((2, Ka), lambda i: (0, 0)),
                pl.BlockSpec((2, Kb), lambda i: (0, 0)),
                pl.BlockSpec((Ka, NC), lambda i: (0, 0)),
                pl.BlockSpec((Kb, NC), lambda i: (0, 0)),
                pl.BlockSpec((2, NC), lambda i: (0, 0)),
                pl.BlockSpec((NC, N), lambda i: (0, 0)),
            ],
            out_specs=pl.BlockSpec((tm, N), lambda i: (i, 0)),
        ),
        compiler_params=_compiler_params(),
        cost_estimate=pl.CostEstimate(
            flops=2 * Mp * (Ka + Kb) * NC + 2 * Mp * NC * N,
            transcendentals=0,
            bytes_accessed=a.dtype.itemsize * Mp * Ka + b.dtype.itemsize * Mp * Kb
            + 2 * ((Ka + Kb) * NC + NC * N) + 4 * Mp * N,
        ),
    )(ap, bp, ssa, ssb, wa, wb, ss2, wc)
    return out[:M] if Mp != M else out


# ----------------------------------------------------------------------------
# Deconv column rearranges (matmul columns are ordered (Cout, kh, kw) per
# PyTorch ConvTranspose2d weight layout (Cin, Cout, kH, kW)).
# ----------------------------------------------------------------------------
def _deconv_rearrange_nhwc(r, N, H, W, Cout, k):
    # TODO(synk): this transpose is a wrapper-side HBM pass (now in bf16); it
    # could be folded into the next kernel's index_map, but needs a
    # non-rectangular gather.
    r = r.reshape(N, H, W, Cout, k, k).transpose(0, 1, 4, 2, 5, 3)
    return r.reshape(N, H * k, W * k, Cout)


def _deconv_rearrange_nchw(r, N, H, W, Cout, k):
    # classifier rearrange composed with the final NHWC->NCHW transpose (one pass)
    r = r.reshape(N, H, W, Cout, k, k).transpose(0, 3, 1, 4, 2, 5)
    return r.reshape(N, Cout, H * k, W * k)


# ----------------------------------------------------------------------------
# Backbone stand-in
# ----------------------------------------------------------------------------
# TODO(synk): the DenseNet backbone class is not provided in the reference
# module; its stages are replaced by deterministic avg-pool + (relu + pointwise
# projection) stand-ins producing exactly the channel counts / spatial factors
# the FCN head expects (pool1=H/8, pool2=H/16, pool3=H/32, block4=H/32).
def backbone_stage(x_nhwc, w_proj, factor):
    N, H, W, C = x_nhwc.shape
    if factor > 1:
        # TODO(synk): fold this avg-pool (and the NCHW->NHWC input transpose)
        # into the Pallas kernel via a 4D BlockSpec to save a full-res HBM pass.
        x_nhwc = x_nhwc.reshape(N, H // factor, factor, W // factor, factor, C)
        x_nhwc = x_nhwc.mean(axis=(2, 4))
    N, H, W, C = x_nhwc.shape
    ss = jnp.concatenate(
        [jnp.ones((1, C), jnp.float32), jnp.zeros((1, C), jnp.float32)], axis=0)
    out = bn_relu_matmul(x_nhwc.reshape(N * H * W, C), ss, w_proj,
                         out_dtype=jnp.bfloat16)
    return out.reshape(N, H, W, w_proj.shape[1])


# ----------------------------------------------------------------------------
# Parameter construction (deterministic, synthetic) + one-time packing
# ----------------------------------------------------------------------------
def init_fcn_params(key, *, in_ch=3, num_units_collection=(3, 6, 12, 8),
                    k_factor=4, num_classes=8):
    # channel arithmetic exactly as in FCN.__init__
    densenet_out = []
    channels = k_factor * 2
    for num_units in num_units_collection[:-1]:
        out_channels = (channels + k_factor * num_units) // 2
        densenet_out.append(out_channels)
        channels = out_channels
    densenet_out.append(channels + k_factor * num_units_collection[-1])

    keys = iter(jax.random.split(key, 32))

    def normal(shape, s=0.05):
        return s * jax.random.normal(next(keys), shape, dtype=jnp.float32)

    def bn(c):
        return dict(
            gamma=1.0 + normal((c,)),
            beta=normal((c,)),
            mean=normal((c,)),
            var=0.5 + jax.random.uniform(next(keys), (c,), dtype=jnp.float32),
        )

    params = {}
    # backbone stand-in projections
    params["bb1"] = normal((in_ch, densenet_out[0]))
    params["bb2"] = normal((densenet_out[0], densenet_out[1]))
    params["bb3"] = normal((densenet_out[1], densenet_out[2]))
    params["bb4"] = normal((densenet_out[2], densenet_out[3]))

    # FCN head ConvBlocks (bias=False, as in the spec)
    c = densenet_out[2] + densenet_out[3]
    params["deconv3"] = dict(**bn(c), w=normal((c, c, 2, 2)))               # ConvTranspose2d
    c = c + densenet_out[1]
    params["deconv2"] = dict(**bn(c), w=normal((c, c, 2, 2)))               # ConvTranspose2d
    c = c + densenet_out[0]
    params["pointwise"] = dict(**bn(c), w=normal((num_classes, c, 1, 1)))   # Conv2d 1x1
    params["classifier"] = dict(**bn(num_classes),
                                w=normal((num_classes, num_classes, 8, 8)))  # ConvTranspose2d
    return params


def _bn_scale_shift(p):
    scale = p["gamma"] / jnp.sqrt(p["var"] + _EPS)
    shift = p["beta"] - p["mean"] * scale
    return jnp.stack([scale, shift], axis=0).astype(jnp.float32)   # (2, C)


def prepare_fcn_params(params):
    """One-time packing: fold BN into (2, C) scale/shift, reshape conv weights
    into matmul matrices split at the (virtual) concat boundary, and cast the
    MXU operands to bf16.  Runs once, outside the jitted forward."""
    bf16 = jnp.bfloat16
    prep = {
        "bb1": params["bb1"].astype(bf16),
        "bb2": params["bb2"].astype(bf16),
        "bb3": params["bb3"].astype(bf16),
        "bb4": params["bb4"].astype(bf16),
    }

    def deconv_pack(p, ka):
        cin, cout, k, _ = p["w"].shape
        ss = _bn_scale_shift(p)
        w2 = p["w"].reshape(cin, cout * k * k).astype(bf16)
        return dict(ssa=ss[:, :ka], ssb=ss[:, ka:], wa=w2[:ka], wb=w2[ka:])

    ka3 = params["bb4"].shape[1]                 # x4 channels
    prep["deconv3"] = deconv_pack(params["deconv3"], ka3)
    ka2 = params["deconv3"]["w"].shape[1]        # deconv3 out channels
    prep["deconv2"] = deconv_pack(params["deconv2"], ka2)

    p_pw = params["pointwise"]
    nc, cin = p_pw["w"].shape[0], p_pw["w"].shape[1]
    ka1 = params["deconv2"]["w"].shape[1]        # deconv2 out channels
    ss1 = _bn_scale_shift(p_pw)
    w_pw = p_pw["w"].reshape(nc, cin).T.astype(bf16)      # (Cin, nc), 1x1 conv
    prep["pointwise"] = dict(ssa=ss1[:, :ka1], ssb=ss1[:, ka1:],
                             wa=w_pw[:ka1], wb=w_pw[ka1:])

    p_cl = params["classifier"]
    kcl = p_cl["w"].shape[2]
    prep["classifier"] = dict(ss=_bn_scale_shift(p_cl),
                              w=p_cl["w"].reshape(nc, nc * kcl * kcl).astype(bf16))
    return prep


# ----------------------------------------------------------------------------
# FCN forward
# ----------------------------------------------------------------------------
def fcn_forward(x_nchw, prep):
    x = jnp.transpose(x_nchw, (0, 2, 3, 1)).astype(jnp.float32)   # NCHW -> NHWC

    pool1 = backbone_stage(x, prep["bb1"], 8)        # H/8
    pool2 = backbone_stage(pool1, prep["bb2"], 2)    # H/16
    pool3 = backbone_stage(pool2, prep["bb3"], 2)    # H/32

    # block4 + cat([x4, pool3]) + deconv3 (k=s=2) in ONE kernel; x4 never hits HBM
    d3 = prep["deconv3"]
    N3, H3, W3, C3 = pool3.shape
    r = stage4_deconv3(pool3.reshape(N3 * H3 * W3, C3), prep["bb4"],
                       d3["ssa"], d3["ssb"], d3["wa"], d3["wb"])
    cout3 = d3["wa"].shape[1] // 4
    x = _deconv_rearrange_nhwc(r, N3, H3, W3, cout3, 2)            # -> H/16, bf16

    # cat([x, pool2]) + deconv2 (k=s=2): split-K, no concat materialized
    d2 = prep["deconv2"]
    N2, H2, W2, Ca = x.shape
    Cb = pool2.shape[-1]
    r = bn_relu_matmul2(x.reshape(N2 * H2 * W2, Ca),
                        pool2.reshape(N2 * H2 * W2, Cb),
                        d2["ssa"], d2["ssb"], d2["wa"], d2["wb"])
    cout2 = d2["wa"].shape[1] // 4
    x = _deconv_rearrange_nhwc(r, N2, H2, W2, cout2, 2)            # -> H/8, bf16

    # cat([x, pool1]) + pointwise (1x1) + Identity dropout + classifier (k=s=8),
    # fused into a single kernel ((M, num_classes) intermediate never hits HBM).
    pw, cl = prep["pointwise"], prep["classifier"]
    N1, H1, W1, Ca = x.shape
    Cb = pool1.shape[-1]
    r = fused_pw_cls(x.reshape(N1 * H1 * W1, Ca),
                     pool1.reshape(N1 * H1 * W1, Cb),
                     pw["ssa"], pw["ssb"], pw["wa"], pw["wb"], cl["ss"], cl["w"])
    kcl = 8
    cout = cl["w"].shape[1] // (kcl * kcl)
    # deconv rearrange + NHWC->NCHW composed into one permute
    return _deconv_rearrange_nchw(r, N1, H1, W1, cout, kcl)        # -> (N, nc, H, W) f32


if __name__ == "__main__":
    key = jax.random.PRNGKey(0)
    k_x, k_p = jax.random.split(key)

    # Small but /32-divisible spatial size so the FCN pyramid is well formed.
    x = jax.random.normal(k_x, (2, 3, 64, 64), dtype=jnp.float32)
    params = init_fcn_params(k_p, in_ch=3, num_units_collection=(3, 6, 12, 8),
                             k_factor=4, num_classes=8)
    prep = prepare_fcn_params(params)   # one-time BN fold + bf16 weight packing

    fwd = jax.jit(fcn_forward)
    out = fwd(x, prep)
    out = jax.block_until_ready(out)
    assert out.shape == (2, 8, 64, 64), out.shape
    assert out.dtype == jnp.float32
    assert bool(jnp.all(jnp.isfinite(out)))
    print("KERNEL_OK")
</pallas_src>

<mosaic_0001>
module attributes {stable_mosaic.version = 11 : i64} {
  func.func @_bn_relu_matmul_kernel(%arg0: i32, %arg1: memref<128x3xf32, #tpu.memory_space<vmem>>, %arg2: memref<2x3xf32, #tpu.memory_space<vmem>>, %arg3: memref<3x10xbf16, #tpu.memory_space<vmem>>, %arg4: memref<128x10xbf16, #tpu.memory_space<vmem>>) attributes {dimension_semantics = [#tpu.dimension_semantics<parallel>], iteration_bounds = array<i64: 1>, scalar_prefetch = 0 : i64, scratch_operands = 0 : i64, tpu.core_type = #tpu.core_type<tc>, window_params = [{transform_indices = @transform_0, window_bounds = array<i64: 128, 3>}, {pipeline_mode = #tpu.pipeline_mode<synchronous>, transform_indices = @transform_1, window_bounds = array<i64: 2, 3>}, {pipeline_mode = #tpu.pipeline_mode<synchronous>, transform_indices = @transform_2, window_bounds = array<i64: 3, 10>}, {transform_indices = @transform_3, window_bounds = array<i64: 128, 10>}]} {
    %c0 = arith.constant 0 : index
    %c0_0 = arith.constant 0 : index
    %0 = vector.load %arg1[%c0, %c0_0] : memref<128x3xf32, #tpu.memory_space<vmem>>, vector<128x3xf32>
    %c0_1 = arith.constant 0 : index
    %c0_2 = arith.constant 0 : index
    %1 = vector.load %arg2[%c0_1, %c0_2] : memref<2x3xf32, #tpu.memory_space<vmem>>, vector<1x3xf32>
    %2 = vector.broadcast %1 : vector<1x3xf32> to vector<128x3xf32>
    %3 = arith.mulf %0, %2 : vector<128x3xf32>
    %c1 = arith.constant 1 : index
    %c0_3 = arith.constant 0 : index
    %4 = vector.load %arg2[%c1, %c0_3] : memref<2x3xf32, #tpu.memory_space<vmem>>, vector<1x3xf32>
    %5 = vector.broadcast %4 : vector<1x3xf32> to vector<128x3xf32>
    %6 = arith.addf %3, %5 : vector<128x3xf32>
    %cst = arith.constant 0.000000e+00 : f32
    %7 = vector.broadcast %cst : f32 to vector<128x3xf32>
    %8 = arith.maximumf %6, %7 : vector<128x3xf32>
    %9 = arith.truncf %8 : vector<128x3xf32> to vector<128x3xbf16>
    %c0_4 = arith.constant 0 : index
    %c0_5 = arith.constant 0 : index
    %10 = vector.load %arg3[%c0_4, %c0_5] : memref<3x10xbf16, #tpu.memory_space<vmem>>, vector<3x10xbf16>
    %cst_6 = arith.constant dense<0.000000e+00> : vector<128x10xf32>
    %11 = tpu.matmul %9, %10, %cst_6 {dimension_numbers = #tpu.dot_dimension_numbers<[1], [0], [0], [1], [0, 0, 1, 1], [], []>} : vector<128x3xbf16>, vector<3x10xbf16>, vector<128x10xf32> -> vector<128x10xf32>
    %12 = arith.truncf %11 : vector<128x10xf32> to vector<128x10xbf16>
    %c0_7 = arith.constant 0 : index
    %c0_8 = arith.constant 0 : index
    %13 = vector.load %arg4[%c0_7, %c0_8] : memref<128x10xbf16, #tpu.memory_space<vmem>>, vector<128x10xbf16>
    tpu.vector_store %arg4[%c0_7, %c0_8], %12 {strides = array<i32>} : memref<128x10xbf16, #tpu.memory_space<vmem>>, vector<128x10xbf16>,
    return
  }
  func.func @transform_0(%arg0: i32) -> (i32, i32) {
    %c0_i32 = arith.constant 0 : i32
    %c0_i32_0 = arith.constant 0 : i32
    return %arg0, %c0_i32 : i32, i32
  }
  func.func @transform_1(%arg0: i32) -> (i32, i32) {
    %c0_i32 = arith.constant 0 : i32
    %c0_i32_0 = arith.constant 0 : i32
    %c0_i32_1 = arith.constant 0 : i32
    return %c0_i32, %c0_i32_0 : i32, i32
  }
  func.func @transform_2(%arg0: i32) -> (i32, i32) {
    %c0_i32 = arith.constant 0 : i32
    %c0_i32_0 = arith.constant 0 : i32
    %c0_i32_1 = arith.constant 0 : i32
    return %c0_i32, %c0_i32_0 : i32, i32
  }
  func.func @transform_3(%arg0: i32) -> (i32, i32) {
    %c0_i32 = arith.constant 0 : i32
    %c0_i32_0 = arith.constant 0 : i32
    return %arg0, %c0_i32 : i32, i32
  }
}

module attributes {stable_mosaic.version = 11 : i64} {
  func.func @_bn_relu_matmul_kernel(%arg0: i32, %arg1: memref<8x17xbf16, #tpu.memory_space<vmem>>, %arg2: memref<2x17xf32, #tpu.memory_space<vmem>>, %arg3: memref<17x32xbf16, #tpu.memory_space<vmem>>, %arg4: memref<8x32xbf16, #tpu.memory_space<vmem>>) attributes {dimension_semantics = [#tpu.dimension_semantics<parallel>], iteration_bounds = array<i64: 1>, scalar_prefetch = 0 : i64, scratch_operands = 0 : i64, tpu.core_type = #tpu.core_type<tc>, window_params = [{transform_indices = @transform_0, window_bounds = array<i64: 8, 17>}, {pipeline_mode = #tpu.pipeline_mode<synchronous>, transform_indices = @transform_1, window_bounds = array<i64: 2, 17>}, {pipeline_mode = #tpu.pipeline_mode<synchronous>, transform_indices = @transform_2, window_bounds = array<i64: 17, 32>}, {transform_indices = @transform_3, window_bounds = array<i64: 8, 32>}]} {
    %c0 = arith.constant 0 : index
    %c0_0 = arith.constant 0 : index
    %0 = vector.load %arg1[%c0, %c0_0] : memref<8x17xbf16, #tpu.memory_space<vmem>>, vector<8x17xbf16>
    %1 = arith.extf %0 : vector<8x17xbf16> to vector<8x17xf32>
    %c0_1 = arith.constant 0 : index
    %c0_2 = arith.constant 0 : index
    %2 = vector.load %arg2[%c0_1, %c0_2] : memref<2x17xf32, #tpu.memory_space<vmem>>, vector<1x17xf32>
    %3 = vector.broadcast %2 : vector<1x17xf32> to vector<8x17xf32>
    %4 = arith.mulf %1, %3 : vector<8x17xf32>
    %c1 = arith.constant 1 : index
    %c0_3 = arith.constant 0 : index
    %5 = vector.load %arg2[%c1, %c0_3] : memref<2x17xf32, #tpu.memory_space<vmem>>, vector<1x17xf32>
    %6 = vector.broadcast %5 : vector<1x17xf32> to vector<8x17xf32>
    %7 = arith.addf %4, %6 : vector<8x17xf32>
    %cst = arith.constant 0.000000e+00 : f32
    %8 = vector.broadcast %cst : f32 to vector<8x17xf32>
    %9 = arith.maximumf %7, %8 : vector<8x17xf32>
    %10 = arith.truncf %9 : vector<8x17xf32> to vector<8x17xbf16>
    %c0_4 = arith.constant 0 : index
    %c0_5 = arith.constant 0 : index
    %11 = vector.load %arg3[%c0_4, %c0_5] : memref<17x32xbf16, #tpu.memory_space<vmem>>, vector<17x32xbf16>
    %cst_6 = arith.constant dense<0.000000e+00> : vector<8x32xf32>
    %12 = tpu.matmul %10, %11, %cst_6 {dimension_numbers = #tpu.dot_dimension_numbers<[1], [0], [0], [1], [0, 0, 1, 1], [], []>} : vector<8x17xbf16>, vector<17x32xbf16>, vector<8x32xf32> -> vector<8x32xf32>
    %13 = arith.truncf %12 : vector<8x32xf32> to vector<8x32xbf16>
    %c0_7 = arith.constant 0 : index
    %c0_8 = arith.constant 0 : index
    %14 = vector.load %arg4[%c0_7, %c0_8] : memref<8x32xbf16, #tpu.memory_space<vmem>>, vector<8x32xbf16>
    tpu.vector_store %arg4[%c0_7, %c0_8], %13 {strides = array<i32>} : memref<8x32xbf16, #tpu.memory_space<vmem>>, vector<8x32xbf16>,
    return
  }
  func.func @transform_0(%arg0: i32) -> (i32, i32) {
    %c0_i32 = arith.constant 0 : i32
    %c0_i32_0 = arith.constant 0 : i32
    return %arg0, %c0_i32 : i32, i32
  }
  func.func @transform_1(%arg0: i32) -> (i32, i32) {
    %c0_i32 = arith.constant 0 : i32
    %c0_i32_0 = arith.constant 0 : i32
    %c0_i32_1 = arith.constant 0 : i32
    return %c0_i32, %c0_i32_0 : i32, i32
  }
  func.func @transform_2(%arg0: i32) -> (i32, i32) {
    %c0_i32 = arith.constant 0 : i32
    %c0_i32_0 = arith.constant 0 : i32
    %c0_i32_1 = arith.constant 0 : i32
    return %c0_i32, %c0_i32_0 : i32, i32
  }
  func.func @transform_3(%arg0: i32) -> (i32, i32) {
    %c0_i32 = arith.constant 0 : i32
    %c0_i32_0 = arith.constant 0 : i32
    return %arg0, %c0_i32 : i32, i32
  }
}

module attributes {stable_mosaic.version = 11 : i64} {
  func.func @_bn_relu_matmul_kernel(%arg0: i32, %arg1: memref<32x10xbf16, #tpu.memory_space<vmem>>, %arg2: memref<2x10xf32, #tpu.memory_space<vmem>>, %arg3: memref<10x17xbf16, #tpu.memory_space<vmem>>, %arg4: memref<32x17xbf16, #tpu.memory_space<vmem>>) attributes {dimension_semantics = [#tpu.dimension_semantics<parallel>], iteration_bounds = array<i64: 1>, scalar_prefetch = 0 : i64, scratch_operands = 0 : i64, tpu.core_type = #tpu.core_type<tc>, window_params = [{transform_indices = @transform_0, window_bounds = array<i64: 32, 10>}, {pipeline_mode = #tpu.pipeline_mode<synchronous>, transform_indices = @transform_1, window_bounds = array<i64: 2, 10>}, {pipeline_mode = #tpu.pipeline_mode<synchronous>, transform_indices = @transform_2, window_bounds = array<i64: 10, 17>}, {transform_indices = @transform_3, window_bounds = array<i64: 32, 17>}]} {
    %c0 = arith.constant 0 : index
    %c0_0 = arith.constant 0 : index
    %0 = vector.load %arg1[%c0, %c0_0] : memref<32x10xbf16, #tpu.memory_space<vmem>>, vector<32x10xbf16>
    %1 = arith.extf %0 : vector<32x10xbf16> to vector<32x10xf32>
    %c0_1 = arith.constant 0 : index
    %c0_2 = arith.constant 0 : index
    %2 = vector.load %arg2[%c0_1, %c0_2] : memref<2x10xf32, #tpu.memory_space<vmem>>, vector<1x10xf32>
    %3 = vector.broadcast %2 : vector<1x10xf32> to vector<32x10xf32>
    %4 = arith.mulf %1, %3 : vector<32x10xf32>
    %c1 = arith.constant 1 : index
    %c0_3 = arith.constant 0 : index
    %5 = vector.load %arg2[%c1, %c0_3] : memref<2x10xf32, #tpu.memory_space<vmem>>, vector<1x10xf32>
    %6 = vector.broadcast %5 : vector<1x10xf32> to vector<32x10xf32>
    %7 = arith.addf %4, %6 : vector<32x10xf32>
    %cst = arith.constant 0.000000e+00 : f32
    %8 = vector.broadcast %cst : f32 to vector<32x10xf32>
    %9 = arith.maximumf %7, %8 : vector<32x10xf32>
    %10 = arith.truncf %9 : vector<32x10xf32> to vector<32x10xbf16>
    %c0_4 = arith.constant 0 : index
    %c0_5 = arith.constant 0 : index
    %11 = vector.load %arg3[%c0_4, %c0_5] : memref<10x17xbf16, #tpu.memory_space<vmem>>, vector<10x17xbf16>
    %cst_6 = arith.constant dense<0.000000e+00> : vector<32x17xf32>
    %12 = tpu.matmul %10, %11, %cst_6 {dimension_numbers = #tpu.dot_dimension_numbers<[1], [0], [0], [1], [0, 0, 1, 1], [], []>} : vector<32x10xbf16>, vector<10x17xbf16>, vector<32x17xf32> -> vector<32x17xf32>
    %13 = arith.truncf %12 : vector<32x17xf32> to vector<32x17xbf16>
    %c0_7 = arith.constant 0 : index
    %c0_8 = arith.constant 0 : index
    %14 = vector.load %arg4[%c0_7, %c0_8] : memref<32x17xbf16, #tpu.memory_space<vmem>>, vector<32x17xbf16>
    tpu.vector_store %arg4[%c0_7, %c0_8], %13 {strides = array<i32>} : memref<32x17xbf16, #tpu.memory_space<vmem>>, vector<32x17xbf16>,
    return
  }
  func.func @transform_0(%arg0: i32) -> (i32, i32) {
    %c0_i32 = arith.constant 0 : i32
    %c0_i32_0 = arith.constant 0 : i32
    return %arg0, %c0_i32 : i32, i32
  }
  func.func @transform_1(%arg0: i32) -> (i32, i32) {
    %c0_i32 = arith.constant 0 : i32
    %c0_i32_0 = arith.constant 0 : i32
    %c0_i32_1 = arith.constant 0 : i32
    return %c0_i32, %c0_i32_0 : i32, i32
  }
  func.func @transform_2(%arg0: i32) -> (i32, i32) {
    %c0_i32 = arith.constant 0 : i32
    %c0_i32_0 = arith.constant 0 : i32
    %c0_i32_1 = arith.constant 0 : i32
    return %c0_i32, %c0_i32_0 : i32, i32
  }
  func.func @transform_3(%arg0: i32) -> (i32, i32) {
    %c0_i32 = arith.constant 0 : i32
    %c0_i32_0 = arith.constant 0 : i32
    return %arg0, %c0_i32 : i32, i32
  }
}

module attributes {stable_mosaic.version = 11 : i64} {
  func.func @_stage4_deconv3_kernel(%arg0: i32, %arg1: memref<8x32xbf16, #tpu.memory_space<vmem>>, %arg2: memref<32x64xbf16, #tpu.memory_space<vmem>>, %arg3: memref<2x64xf32, #tpu.memory_space<vmem>>, %arg4: memref<2x32xf32, #tpu.memory_space<vmem>>, %arg5: memref<64x384xbf16, #tpu.memory_space<vmem>>, %arg6: memref<32x384xbf16, #tpu.memory_space<vmem>>, %arg7: memref<8x384xbf16, #tpu.memory_space<vmem>>) attributes {dimension_semantics = [#tpu.dimension_semantics<parallel>], iteration_bounds = array<i64: 1>, scalar_prefetch = 0 : i64, scratch_operands = 0 : i64, tpu.core_type = #tpu.core_type<tc>, window_params = [{transform_indices = @transform_0, window_bounds = array<i64: 8, 32>}, {pipeline_mode = #tpu.pipeline_mode<synchronous>, transform_indices = @transform_1, window_bounds = array<i64: 32, 64>}, {pipeline_mode = #tpu.pipeline_mode<synchronous>, transform_indices = @transform_2, window_bounds = array<i64: 2, 64>}, {pipeline_mode = #tpu.pipeline_mode<synchronous>, transform_indices = @transform_3, window_bounds = array<i64: 2, 32>}, {pipeline_mode = #tpu.pipeline_mode<synchronous>, transform_indices = @transform_4, window_bounds = array<i64: 64, 384>}, {pipeline_mode = #tpu.pipeline_mode<synchronous>, transform_indices = @transform_5, window_bounds = array<i64: 32, 384>}, {transform_indices = @transform_6, window_bounds = array<i64: 8, 384>}]} {
    %c0 = arith.constant 0 : index
    %c0_0 = arith.constant 0 : index
    %0 = vector.load %arg1[%c0, %c0_0] : memref<8x32xbf16, #tpu.memory_space<vmem>>, vector<8x32xbf16>
    %1 = arith.extf %0 : vector<8x32xbf16> to vector<8x32xf32>
    %cst = arith.constant 0.000000e+00 : f32
    %2 = vector.broadcast %cst : f32 to vector<8x32xf32>
    %3 = arith.maximumf %1, %2 : vector<8x32xf32>
    %4 = arith.truncf %3 : vector<8x32xf32> to vector<8x32xbf16>
    %c0_1 = arith.constant 0 : index
    %c0_2 = arith.constant 0 : index
    %5 = vector.load %arg2[%c0_1, %c0_2] : memref<32x64xbf16, #tpu.memory_space<vmem>>, vector<32x64xbf16>
    %cst_3 = arith.constant dense<0.000000e+00> : vector<8x64xf32>
    %6 = tpu.matmul %4, %5, %cst_3 {dimension_numbers = #tpu.dot_dimension_numbers<[1], [0], [0], [1], [0, 0, 1, 1], [], []>} : vector<8x32xbf16>, vector<32x64xbf16>, vector<8x64xf32> -> vector<8x64xf32>
    %c0_4 = arith.constant 0 : index
    %c0_5 = arith.constant 0 : index
    %7 = vector.load %arg3[%c0_4, %c0_5] : memref<2x64xf32, #tpu.memory_space<vmem>>, vector<1x64xf32>
    %8 = vector.broadcast %7 : vector<1x64xf32> to vector<8x64xf32>
    %9 = arith.mulf %6, %8 : vector<8x64xf32>
    %c1 = arith.constant 1 : index
    %c0_6 = arith.constant 0 : index
    %10 = vector.load %arg3[%c1, %c0_6] : memref<2x64xf32, #tpu.memory_space<vmem>>, vector<1x64xf32>
    %11 = vector.broadcast %10 : vector<1x64xf32> to vector<8x64xf32>
    %12 = arith.addf %9, %11 : vector<8x64xf32>
    %cst_7 = arith.constant 0.000000e+00 : f32
    %13 = vector.broadcast %cst_7 : f32 to vector<8x64xf32>
    %14 = arith.maximumf %12, %13 : vector<8x64xf32>
    %c0_8 = arith.constant 0 : index
    %c0_9 = arith.constant 0 : index
    %15 = vector.load %arg4[%c0_8, %c0_9] : memref<2x32xf32, #tpu.memory_space<vmem>>, vector<1x32xf32>
    %16 = vector.broadcast %15 : vector<1x32xf32> to vector<8x32xf32>
    %17 = arith.mulf %1, %16 : vector<8x32xf32>
    %c1_10 = arith.constant 1 : index
    %c0_11 = arith.constant 0 : index
    %18 = vector.load %arg4[%c1_10, %c0_11] : memref<2x32xf32, #tpu.memory_space<vmem>>, vector<1x32xf32>
    %19 = vector.broadcast %18 : vector<1x32xf32> to vector<8x32xf32>
    %20 = arith.addf %17, %19 : vector<8x32xf32>
    %cst_12 = arith.constant 0.000000e+00 : f32
    %21 = vector.broadcast %cst_12 : f32 to vector<8x32xf32>
    %22 = arith.maximumf %20, %21 : vector<8x32xf32>
    %23 = arith.truncf %14 : vector<8x64xf32> to vector<8x64xbf16>
    %c0_13 = arith.constant 0 : index
    %c0_14 = arith.constant 0 : index
    %24 = vector.load %arg5[%c0_13, %c0_14] : memref<64x384xbf16, #tpu.memory_space<vmem>>, vector<64x384xbf16>
    %cst_15 = arith.constant dense<0.000000e+00> : vector<8x384xf32>
    %25 = tpu.matmul %23, %24, %cst_15 {dimension_numbers = #tpu.dot_dimension_numbers<[1], [0], [0], [1], [0, 0, 1, 1], [], []>} : vector<8x64xbf16>, vector<64x384xbf16>, vector<8x384xf32> -> vector<8x384xf32>
    %26 = arith.truncf %22 : vector<8x32xf32> to vector<8x32xbf16>
    %c0_16 = arith.constant 0 : index
    %c0_17 = arith.constant 0 : index
    %27 = vector.load %arg6[%c0_16, %c0_17] : memref<32x384xbf16, #tpu.memory_space<vmem>>, vector<32x384xbf16>
    %cst_18 = arith.constant dense<0.000000e+00> : vector<8x384xf32>
    %28 = tpu.matmul %26, %27, %cst_18 {dimension_numbers = #tpu.dot_dimension_numbers<[1], [0], [0], [1], [0, 0, 1, 1], [], []>} : vector<8x32xbf16>, vector<32x384xbf16>, vector<8x384xf32> -> vector<8x384xf32>
    %29 = arith.addf %25, %28 : vector<8x384xf32>
    %30 = arith.truncf %29 : vector<8x384xf32> to vector<8x384xbf16>
    %c0_19 = arith.constant 0 : index
    %c0_20 = arith.constant 0 : index
    %31 = vector.load %arg7[%c0_19, %c0_20] : memref<8x384xbf16, #tpu.memory_space<vmem>>, vector<8x384xbf16>
    tpu.vector_store %arg7[%c0_19, %c0_20], %30 {strides = array<i32>} : memref<8x384xbf16, #tpu.memory_space<vmem>>, vector<8x384xbf16>,
    return
  }
  func.func @transform_0(%arg0: i32) -> (i32, i32) {
    %c0_i32 = arith.constant 0 : i32
    %c0_i32_0 = arith.constant 0 : i32
    return %arg0, %c0_i32 : i32, i32
  }
  func.func @transform_1(%arg0: i32) -> (i32, i32) {
    %c0_i32 = arith.constant 0 : i32
    %c0_i32_0 = arith.constant 0 : i32
    %c0_i32_1 = arith.constant 0 : i32
    return %c0_i32, %c0_i32_0 : i32, i32
  }
  func.func @transform_2(%arg0: i32) -> (i32, i32) {
    %c0_i32 = arith.constant 0 : i32
    %c0_i32_0 = arith.constant 0 : i32
    %c0_i32_1 = arith.constant 0 : i32
    return %c0_i32, %c0_i32_0 : i32, i32
  }
  func.func @transform_3(%arg0: i32) -> (i32, i32) {
    %c0_i32 = arith.constant 0 : i32
    %c0_i32_0 = arith.constant 0 : i32
    %c0_i32_1 = arith.constant 0 : i32
    return %c0_i32, %c0_i32_0 : i32, i32
  }
  func.func @transform_4(%arg0: i32) -> (i32, i32) {
    %c0_i32 = arith.constant 0 : i32
    %c0_i32_0 = arith.constant 0 : i32
    %c0_i32_1 = arith.constant 0 : i32
    return %c0_i32, %c0_i32_0 : i32, i32
  }
  func.func @transform_5(%arg0: i32) -> (i32, i32) {
    %c0_i32 = arith.constant 0 : i32
    %c0_i32_0 = arith.constant 0 : i32
    %c0_i32_1 = arith.constant 0 : i32
    return %c0_i32, %c0_i32_0 : i32, i32
  }
  func.func @transform_6(%arg0: i32) -> (i32, i32) {
    %c0_i32 = arith.constant 0 : i32
    %c0_i32_0 = arith.constant 0 : i32
    return %arg0, %c0_i32 : i32, i32
  }
}

module attributes {stable_mosaic.version = 11 : i64} {
  func.func @_bn_relu_matmul2_kernel(%arg0: i32, %arg1: memref<32x96xbf16, #tpu.memory_space<vmem>>, %arg2: memref<32x17xbf16, #tpu.memory_space<vmem>>, %arg3: memref<2x96xf32, #tpu.memory_space<vmem>>, %arg4: memref<2x17xf32, #tpu.memory_space<vmem>>, %arg5: memref<96x452xbf16, #tpu.memory_space<vmem>>, %arg6: memref<17x452xbf16, #tpu.memory_space<vmem>>, %arg7: memref<32x452xbf16, #tpu.memory_space<vmem>>) attributes {dimension_semantics = [#tpu.dimension_semantics<parallel>], iteration_bounds = array<i64: 1>, scalar_prefetch = 0 : i64, scratch_operands = 0 : i64, tpu.core_type = #tpu.core_type<tc>, window_params = [{transform_indices = @transform_0, window_bounds = array<i64: 32, 96>}, {transform_indices = @transform_1, window_bounds = array<i64: 32, 17>}, {pipeline_mode = #tpu.pipeline_mode<synchronous>, transform_indices = @transform_2, window_bounds = array<i64: 2, 96>}, {pipeline_mode = #tpu.pipeline_mode<synchronous>, transform_indices = @transform_3, window_bounds = array<i64: 2, 17>}, {pipeline_mode = #tpu.pipeline_mode<synchronous>, transform_indices = @transform_4, window_bounds = array<i64: 96, 452>}, {pipeline_mode = #tpu.pipeline_mode<synchronous>, transform_indices = @transform_5, window_bounds = array<i64: 17, 452>}, {transform_indices = @transform_6, window_bounds = array<i64: 32, 452>}]} {
    %c0 = arith.constant 0 : index
    %c0_0 = arith.constant 0 : index
    %0 = vector.load %arg1[%c0, %c0_0] : memref<32x96xbf16, #tpu.memory_space<vmem>>, vector<32x96xbf16>
    %1 = arith.extf %0 : vector<32x96xbf16> to vector<32x96xf32>
    %c0_1 = arith.constant 0 : index
    %c0_2 = arith.constant 0 : index
    %2 = vector.load %arg2[%c0_1, %c0_2] : memref<32x17xbf16, #tpu.memory_space<vmem>>, vector<32x17xbf16>
    %3 = arith.extf %2 : vector<32x17xbf16> to vector<32x17xf32>
    %c0_3 = arith.constant 0 : index
    %c0_4 = arith.constant 0 : index
    %4 = vector.load %arg3[%c0_3, %c0_4] : memref<2x96xf32, #tpu.memory_space<vmem>>, vector<1x96xf32>
    %5 = vector.broadcast %4 : vector<1x96xf32> to vector<32x96xf32>
    %6 = arith.mulf %1, %5 : vector<32x96xf32>
    %c1 = arith.constant 1 : index
    %c0_5 = arith.constant 0 : index
    %7 = vector.load %arg3[%c1, %c0_5] : memref<2x96xf32, #tpu.memory_space<vmem>>, vector<1x96xf32>
    %8 = vector.broadcast %7 : vector<1x96xf32> to vector<32x96xf32>
    %9 = arith.addf %6, %8 : vector<32x96xf32>
    %cst = arith.constant 0.000000e+00 : f32
    %10 = vector.broadcast %cst : f32 to vector<32x96xf32>
    %11 = arith.maximumf %9, %10 : vector<32x96xf32>
    %c0_6 = arith.constant 0 : index
    %c0_7 = arith.constant 0 : index
    %12 = vector.load %arg4[%c0_6, %c0_7] : memref<2x17xf32, #tpu.memory_space<vmem>>, vector<1x17xf32>
    %13 = vector.broadcast %12 : vector<1x17xf32> to vector<32x17xf32>
    %14 = arith.mulf %3, %13 : vector<32x17xf32>
    %c1_8 = arith.constant 1 : index
    %c0_9 = arith.constant 0 : index
    %15 = vector.load %arg4[%c1_8, %c0_9] : memref<2x17xf32, #tpu.memory_space<vmem>>, vector<1x17xf32>
    %16 = vector.broadcast %15 : vector<1x17xf32> to vector<32x17xf32>
    %17 = arith.addf %14, %16 : vector<32x17xf32>
    %cst_10 = arith.constant 0.000000e+00 : f32
    %18 = vector.broadcast %cst_10 : f32 to vector<32x17xf32>
    %19 = arith.maximumf %17, %18 : vector<32x17xf32>
    %20 = arith.truncf %11 : vector<32x96xf32> to vector<32x96xbf16>
    %c0_11 = arith.constant 0 : index
    %c0_12 = arith.constant 0 : index
    %21 = vector.load %arg5[%c0_11, %c0_12] : memref<96x452xbf16, #tpu.memory_space<vmem>>, vector<96x452xbf16>
    %cst_13 = arith.constant dense<0.000000e+00> : vector<32x452xf32>
    %22 = tpu.matmul %20, %21, %cst_13 {dimension_numbers = #tpu.dot_dimension_numbers<[1], [0], [0], [1], [0, 0, 1, 1], [], []>} : vector<32x96xbf16>, vector<96x452xbf16>, vector<32x452xf32> -> vector<32x452xf32>
    %23 = arith.truncf %19 : vector<32x17xf32> to vector<32x17xbf16>
    %c0_14 = arith.constant 0 : index
    %c0_15 = arith.constant 0 : index
    %24 = vector.load %arg6[%c0_14, %c0_15] : memref<17x452xbf16, #tpu.memory_space<vmem>>, vector<17x452xbf16>
    %cst_16 = arith.constant dense<0.000000e+00> : vector<32x452xf32>
    %25 = tpu.matmul %23, %24, %cst_16 {dimension_numbers = #tpu.dot_dimension_numbers<[1], [0], [0], [1], [0, 0, 1, 1], [], []>} : vector<32x17xbf16>, vector<17x452xbf16>, vector<32x452xf32> -> vector<32x452xf32>
    %26 = arith.addf %22, %25 : vector<32x452xf32>
    %27 = arith.truncf %26 : vector<32x452xf32> to vector<32x452xbf16>
    %c0_17 = arith.constant 0 : index
    %c0_18 = arith.constant 0 : index
    %28 = vector.load %arg7[%c0_17, %c0_18] : memref<32x452xbf16, #tpu.memory_space<vmem>>, vector<32x452xbf16>
    tpu.vector_store %arg7[%c0_17, %c0_18], %27 {strides = array<i32>} : memref<32x452xbf16, #tpu.memory_space<vmem>>, vector<32x452xbf16>,
    return
  }
  func.func @transform_0(%arg0: i32) -> (i32, i32) {
    %c0_i32 = arith.constant 0 : i32
    %c0_i32_0 = arith.constant 0 : i32
    return %arg0, %c0_i32 : i32, i32
  }
  func.func @transform_1(%arg0: i32) -> (i32, i32) {
    %c0_i32 = arith.constant 0 : i32
    %c0_i32_0 = arith.constant 0 : i32
    return %arg0, %c0_i32 : i32, i32
  }
  func.func @transform_2(%arg0: i32) -> (i32, i32) {
    %c0_i32 = arith.constant 0 : i32
    %c0_i32_0 = arith.constant 0 : i32
    %c0_i32_1 = arith.constant 0 : i32
    return %c0_i32, %c0_i32_0 : i32, i32
  }
  func.func @transform_3(%arg0: i32) -> (i32, i32) {
    %c0_i32 = arith.constant 0 : i32
    %c0_i32_0 = arith.constant 0 : i32
    %c0_i32_1 = arith.constant 0 : i32
    return %c0_i32, %c0_i32_0 : i32, i32
  }
  func.func @transform_4(%arg0: i32) -> (i32, i32) {
    %c0_i32 = arith.constant 0 : i32
    %c0_i32_0 = arith.constant 0 : i32
    %c0_i32_1 = arith.constant 0 : i32
    return %c0_i32, %c0_i32_0 : i32, i32
  }
  func.func @transform_5(%arg0: i32) -> (i32, i32) {
    %c0_i32 = arith.constant 0 : i32
    %c0_i32_0 = arith.constant 0 : i32
    %c0_i32_1 = arith.constant 0 : i32
    return %c0_i32, %c0_i32_0 : i32, i32
  }
  func.func @transform_6(%arg0: i32) -> (i32, i32) {
    %c0_i32 = arith.constant 0 : i32
    %c0_i32_0 = arith.constant 0 : i32
    return %arg0, %c0_i32 : i32, i32
  }
}

module attributes {stable_mosaic.version = 11 : i64} {
  func.func @_fused_pw_cls_kernel(%arg0: i32, %arg1: memref<128x113xbf16, #tpu.memory_space<vmem>>, %arg2: memref<128x10xbf16, #tpu.memory_space<vmem>>, %arg3: memref<2x113xf32, #tpu.memory_space<vmem>>, %arg4: memref<2x10xf32, #tpu.memory_space<vmem>>, %arg5: memref<113x8xbf16, #tpu.memory_space<vmem>>, %arg6: memref<10x8xbf16, #tpu.memory_space<vmem>>, %arg7: memref<2x8xf32, #tpu.memory_space<vmem>>, %arg8: memref<8x512xbf16, #tpu.memory_space<vmem>>, %arg9: memref<128x512xf32, #tpu.memory_space<vmem>>) attributes {dimension_semantics = [#tpu.dimension_semantics<parallel>], iteration_bounds = array<i64: 1>, scalar_prefetch = 0 : i64, scratch_operands = 0 : i64, tpu.core_type = #tpu.core_type<tc>, window_params = [{transform_indices = @transform_0, window_bounds = array<i64: 128, 113>}, {transform_indices = @transform_1, window_bounds = array<i64: 128, 10>}, {pipeline_mode = #tpu.pipeline_mode<synchronous>, transform_indices = @transform_2, window_bounds = array<i64: 2, 113>}, {pipeline_mode = #tpu.pipeline_mode<synchronous>, transform_indices = @transform_3, window_bounds = array<i64: 2, 10>}, {pipeline_mode = #tpu.pipeline_mode<synchronous>, transform_indices = @transform_4, window_bounds = array<i64: 113, 8>}, {pipeline_mode = #tpu.pipeline_mode<synchronous>, transform_indices = @transform_5, window_bounds = array<i64: 10, 8>}, {pipeline_mode = #tpu.pipeline_mode<synchronous>, transform_indices = @transform_6, window_bounds = array<i64: 2, 8>}, {pipeline_mode = #tpu.pipeline_mode<synchronous>, transform_indices = @transform_7, window_bounds = array<i64: 8, 512>}, {transform_indices = @transform_8, window_bounds = array<i64: 128, 512>}]} {
    %c0 = arith.constant 0 : index
    %c0_0 = arith.constant 0 : index
    %0 = vector.load %arg5[%c0, %c0_0] : memref<113x8xbf16, #tpu.memory_space<vmem>>, vector<113x8xbf16>
    %c0_1 = arith.constant 0 : index
    %c0_2 = arith.constant 0 : index
    %1 = vector.load %arg6[%c0_1, %c0_2] : memref<10x8xbf16, #tpu.memory_space<vmem>>, vector<10x8xbf16>
    %c0_3 = arith.constant 0 : index
    %c0_4 = arith.constant 0 : index
    %2 = vector.load %arg8[%c0_3, %c0_4] : memref<8x512xbf16, #tpu.memory_space<vmem>>, vector<8x512xbf16>
    %c0_5 = arith.constant 0 : index
    %c0_6 = arith.constant 0 : index
    %3 = vector.load %arg3[%c0_5, %c0_6] : memref<2x113xf32, #tpu.memory_space<vmem>>, vector<1x113xf32>
    %c1 = arith.constant 1 : index
    %c0_7 = arith.constant 0 : index
    %4 = vector.load %arg3[%c1, %c0_7] : memref<2x113xf32, #tpu.memory_space<vmem>>, vector<1x113xf32>
    %c0_8 = arith.constant 0 : index
    %c0_9 = arith.constant 0 : index
    %5 = vector.load %arg4[%c0_8, %c0_9] : memref<2x10xf32, #tpu.memory_space<vmem>>, vector<1x10xf32>
    %c1_10 = arith.constant 1 : index
    %c0_11 = arith.constant 0 : index
    %6 = vector.load %arg4[%c1_10, %c0_11] : memref<2x10xf32, #tpu.memory_space<vmem>>, vector<1x10xf32>
    %c0_12 = arith.constant 0 : index
    %c0_13 = arith.constant 0 : index
    %7 = vector.load %arg7[%c0_12, %c0_13] : memref<2x8xf32, #tpu.memory_space<vmem>>, vector<1x8xf32>
    %c1_14 = arith.constant 1 : index
    %c0_15 = arith.constant 0 : index
    %8 = vector.load %arg7[%c1_14, %c0_15] : memref<2x8xf32, #tpu.memory_space<vmem>>, vector<1x8xf32>
    %c0_i32 = arith.constant 0 : i32
    %c128_i32 = arith.constant 128 : i32
    %9 = arith.muli %c0_i32, %c128_i32 : i32
    %10 = tpu.assume_multiple %9, 128 : i32
    %11 = arith.index_cast %10 : i32 to index
    %c0_16 = arith.constant 0 : index
    %12 = vector.load %arg1[%11, %c0_16] : memref<128x113xbf16, #tpu.memory_space<vmem>>, vector<128x113xbf16>
    %13 = arith.extf %12 : vector<128x113xbf16> to vector<128x113xf32>
    %14 = arith.index_cast %10 : i32 to index
    %c0_17 = arith.constant 0 : index
    %15 = vector.load %arg2[%14, %c0_17] : memref<128x10xbf16, #tpu.memory_space<vmem>>, vector<128x10xbf16>
    %16 = arith.extf %15 : vector<128x10xbf16> to vector<128x10xf32>
    %17 = vector.broadcast %3 : vector<1x113xf32> to vector<128x113xf32>
    %18 = arith.mulf %13, %17 : vector<128x113xf32>
    %19 = vector.broadcast %4 : vector<1x113xf32> to vector<128x113xf32>
    %20 = arith.addf %18, %19 : vector<128x113xf32>
    %cst = arith.constant 0.000000e+00 : f32
    %21 = vector.broadcast %cst : f32 to vector<128x113xf32>
    %22 = arith.maximumf %20, %21 : vector<128x113xf32>
    %23 = vector.broadcast %5 : vector<1x10xf32> to vector<128x10xf32>
    %24 = arith.mulf %16, %23 : vector<128x10xf32>
    %25 = vector.broadcast %6 : vector<1x10xf32> to vector<128x10xf32>
    %26 = arith.addf %24, %25 : vector<128x10xf32>
    %cst_18 = arith.constant 0.000000e+00 : f32
    %27 = vector.broadcast %cst_18 : f32 to vector<128x10xf32>
    %28 = arith.maximumf %26, %27 : vector<128x10xf32>
    %29 = arith.truncf %22 : vector<128x113xf32> to vector<128x113xbf16>
    %cst_19 = arith.constant dense<0.000000e+00> : vector<128x8xf32>
    %30 = tpu.matmul %29, %0, %cst_19 {dimension_numbers = #tpu.dot_dimension_numbers<[1], [0], [0], [1], [0, 0, 1, 1], [], []>} : vector<128x113xbf16>, vector<113x8xbf16>, vector<128x8xf32> -> vector<128x8xf32>
    %31 = arith.truncf %28 : vector<128x10xf32> to vector<128x10xbf16>
    %cst_20 = arith.constant dense<0.000000e+00> : vector<128x8xf32>
    %32 = tpu.matmul %31, %1, %cst_20 {dimension_numbers = #tpu.dot_dimension_numbers<[1], [0], [0], [1], [0, 0, 1, 1], [], []>} : vector<128x10xbf16>, vector<10x8xbf16>, vector<128x8xf32> -> vector<128x8xf32>
    %33 = arith.addf %30, %32 : vector<128x8xf32>
    %34 = vector.broadcast %7 : vector<1x8xf32> to vector<128x8xf32>
    %35 = arith.mulf %33, %34 : vector<128x8xf32>
    %36 = vector.broadcast %8 : vector<1x8xf32> to vector<128x8xf32>
    %37 = arith.addf %35, %36 : vector<128x8xf32>
    %cst_21 = arith.constant 0.000000e+00 : f32
    %38 = vector.broadcast %cst_21 : f32 to vector<128x8xf32>
    %39 = arith.maximumf %37, %38 : vector<128x8xf32>
    %40 = arith.truncf %39 : vector<128x8xf32> to vector<128x8xbf16>
    %cst_22 = arith.constant dense<0.000000e+00> : vector<128x512xf32>
    %41 = tpu.matmul %40, %2, %cst_22 {dimension_numbers = #tpu.dot_dimension_numbers<[1], [0], [0], [1], [0, 0, 1, 1], [], []>} : vector<128x8xbf16>, vector<8x512xbf16>, vector<128x512xf32> -> vector<128x512xf32>
    %42 = arith.index_cast %10 : i32 to index
    %c0_23 = arith.constant 0 : index
    %43 = vector.load %arg9[%42, %c0_23] : memref<128x512xf32, #tpu.memory_space<vmem>>, vector<128x512xf32>
    tpu.vector_store %arg9[%42, %c0_23], %41 {strides = array<i32>} : memref<128x512xf32, #tpu.memory_space<vmem>>, vector<128x512xf32>,
    %c1_i32 = arith.constant 1 : i32
    return
  }
  func.func @transform_0(%arg0: i32) -> (i32, i32) {
    %c0_i32 = arith.constant 0 : i32
    %c0_i32_0 = arith.constant 0 : i32
    return %arg0, %c0_i32 : i32, i32
  }
  func.func @transform_1(%arg0: i32) -> (i32, i32) {
    %c0_i32 = arith.constant 0 : i32
    %c0_i32_0 = arith.constant 0 : i32
    return %arg0, %c0_i32 : i32, i32
  }
  func.func @transform_2(%arg0: i32) -> (i32, i32) {
    %c0_i32 = arith.constant 0 : i32
    %c0_i32_0 = arith.constant 0 : i32
    %c0_i32_1 = arith.constant 0 : i32
    return %c0_i32, %c0_i32_0 : i32, i32
  }
  func.func @transform_3(%arg0: i32) -> (i32, i32) {
    %c0_i32 = arith.constant 0 : i32
    %c0_i32_0 = arith.constant 0 : i32
    %c0_i32_1 = arith.constant 0 : i32
    return %c0_i32, %c0_i32_0 : i32, i32
  }
  func.func @transform_4(%arg0: i32) -> (i32, i32) {
    %c0_i32 = arith.constant 0 : i32
    %c0_i32_0 = arith.constant 0 : i32
    %c0_i32_1 = arith.constant 0 : i32
    return %c0_i32, %c0_i32_0 : i32, i32
  }
  func.func @transform_5(%arg0: i32) -> (i32, i32) {
    %c0_i32 = arith.constant 0 : i32
    %c0_i32_0 = arith.constant 0 : i32
    %c0_i32_1 = arith.constant 0 : i32
    return %c0_i32, %c0_i32_0 : i32, i32
  }
  func.func @transform_6(%arg0: i32) -> (i32, i32) {
    %c0_i32 = arith.constant 0 : i32
    %c0_i32_0 = arith.constant 0 : i32
    %c0_i32_1 = arith.constant 0 : i32
    return %c0_i32, %c0_i32_0 : i32, i32
  }
  func.func @transform_7(%arg0: i32) -> (i32, i32) {
    %c0_i32 = arith.constant 0 : i32
    %c0_i32_0 = arith.constant 0 : i32
    %c0_i32_1 = arith.constant 0 : i32
    return %c0_i32, %c0_i32_0 : i32, i32
  }
  func.func @transform_8(%arg0: i32) -> (i32, i32) {
    %c0_i32 = arith.constant 0 : i32
    %c0_i32_0 = arith.constant 0 : i32
    return %arg0, %c0_i32 : i32, i32
  }
}

</mosaic_0001>

<llo_original>
// kernel: fcn_forward.6
$region0: #{fcn_forward.6}
  #allocation0 [shape = 'u32[]', space=smem, size = 0x4, offset = 0x4, fixed_abs, tag = 'smem constant byte address 0x4 - core index']
  #allocation1 [shape = 'u32[144,128]{1,0:T(1,128)}', space=vmem, size = 0x12000, scoped, tag = 'internal scratch']
  %s0 = inlined_call_operand.vmem [shape: f32[128,3], index: 0, kind: input, shape index: {}]
  %s1 = inlined_call_operand.hbm [shape: f32[2,3], index: 1, kind: input, shape index: {}]
  %s2 = inlined_call_operand.hbm [shape: bf16[3,10], index: 2, kind: input, shape index: {}]
  %s3 = inlined_call_operand.vmem [shape: bf16[128,10], index: 3, kind: output, shape index: {}]
  %s4 = sld [smem:[#allocation0]]
  $region30: #{fcn_forward.6} parent=0
    _
  %s6 = ssub.s32 1, %s4
  %s7 = scalar_select 0, %s6, %s4
  $region1: #{fcn_forward.6} parent=0
    #allocation2 [shape = 'u8[1024]{0}', space=vmem, size = 0x400, scoped, tag = 'input window, operand 1, single buffered']
    #allocation3 [shape = 's32[1]{0}', space=sflag, size = 0x4, scoped, tag = 'scoped memory for fcn_forward.6']
    #allocation4 [shape = 'u8[1024]{0}', space=vmem, size = 0x400, scoped, tag = 'input window, operand 2, single buffered']
    #allocation5 [shape = 's32[1]{0}', space=sflag, size = 0x4, scoped, tag = 'scoped memory for fcn_forward.6']
    %8 = vsyncpa [#allocation3], 0
    %9 = vsyncpa [#allocation5], 0
    // Predicated region
    $region2: #{fcn_forward.6} parent=1 // pred_check
      _
    $region3: #{fcn_forward.6} parent=1 // pred_check_branch
      %11 = sbr.rel (0) target = $region5
    $region4: #{fcn_forward.6} parent=1 // pred_region
      _
    $region5: #{fcn_forward.6} parent=1 // pred_fallthru
      _
    // Predicated region
    $region6: #{fcn_forward.6} parent=1 // pred_check
      _
    $region7: #{fcn_forward.6} parent=1 // pred_check_branch
      %13 = sbr.rel (0) target = $region9
    $region8: #{fcn_forward.6} parent=1 // pred_region
      %s15 = ssub.s32 32, 32
      %16 = vsyncadd [#allocation3], %s15
      %s18 = sshll.u32 [#allocation2], 4
      %s19 = int_to_ptr.vmem [resolvable:$true] %s18
      %21 = dma.hbm_to_vmem [thread:$0]  %s1, 32, %s19, [#allocation3]
    $region9: #{fcn_forward.6} parent=1 // pred_fallthru
      _
    // Predicated region
    $region10: #{fcn_forward.6} parent=1 // pred_check
      _
    $region11: #{fcn_forward.6} parent=1 // pred_check_branch
      %23 = sbr.rel (0) target = $region13
    $region12: #{fcn_forward.6} parent=1 // pred_region
      %s25 = ssub.s32 32, 32
      %26 = vsyncadd [#allocation5], %s25
      %s28 = sshll.u32 [#allocation4], 4
      %s29 = int_to_ptr.vmem [resolvable:$true] %s28
      %31 = dma.hbm_to_vmem [thread:$0]  %s2, 32, %s29, [#allocation5]
    $region13: #{fcn_forward.6} parent=1 // pred_fallthru
      _
    // Predicated region
    $region14: #{fcn_forward.6} parent=1 // pred_check
      _
    $region15: #{fcn_forward.6} parent=1 // pred_check_branch
      %33 = sbr.rel (0) target = $region17
    $region16: #{fcn_forward.6} parent=1 // pred_region
      %34 = dma.done [#allocation3], 32
    $region17: #{fcn_forward.6} parent=1 // pred_fallthru
      _
    // Predicated region
    $region18: #{fcn_forward.6} parent=1 // pred_check
      _
    $region19: #{fcn_forward.6} parent=1 // pred_check_branch
      %36 = sbr.rel (0) target = $region21
    $region20: #{fcn_forward.6} parent=1 // pred_region
      %37 = dma.done [#allocation5], 32
    $region21: #{fcn_forward.6} parent=1 // pred_fallthru
      _
    %v39 = vld [vmem:[%s0] sm:$0xff]
    %v40 = vld [vmem:[%s0 + $0x8] sm:$0xff]
    %v41 = vld [vmem:[%s0 + $0x10] sm:$0xff]
    %v42 = vld [vmem:[%s0 + $0x18] sm:$0xff]
    %v43 = vld [vmem:[%s0 + $0x20] sm:$0xff]
    %v44 = vld [vmem:[%s0 + $0x28] sm:$0xff]
    %v45 = vld [vmem:[%s0 + $0x30] sm:$0xff]
    %v46 = vld [vmem:[%s0 + $0x38] sm:$0xff]
    %v47 = vld [vmem:[%s0 + $0x40] sm:$0xff]
    %v48 = vld [vmem:[%s0 + $0x48] sm:$0xff]
    %v49 = vld [vmem:[%s0 + $0x50] sm:$0xff]
    %v50 = vld [vmem:[%s0 + $0x58] sm:$0xff]
    %v51 = vld [vmem:[%s0 + $0x60] sm:$0xff]
    %v52 = vld [vmem:[%s0 + $0x68] sm:$0xff]
    %v53 = vld [vmem:[%s0 + $0x70] sm:$0xff]
    %v54 = vld [vmem:[%s0 + $0x78] sm:$0xff]
    %v55 = vld [vmem:[#allocation2] sm:$0x1]
    %v56 = vlaneseq
    %v57 = vshrl.u32 %v56, 7
    %v58 = vsub.s32 0, %v57
    %v59 = vrot.slane %v55, %v58
    %v60 = vmul.f32 %v39, %v59
    %v61 = vmul.f32 %v40, %v59
    %v62 = vmul.f32 %v41, %v59
    %v63 = vmul.f32 %v42, %v59
    %v64 = vmul.f32 %v43, %v59
    %v65 = vmul.f32 %v44, %v59
    %v66 = vmul.f32 %v45, %v59
    %v67 = vmul.f32 %v46, %v59
    %v68 = vmul.f32 %v47, %v59
    %v69 = vmul.f32 %v48, %v59
    %v70 = vmul.f32 %v49, %v59
    %v71 = vmul.f32 %v50, %v59
    %v72 = vmul.f32 %v51, %v59
    %v73 = vmul.f32 %v52, %v59
    %v74 = vmul.f32 %v53, %v59
    %v75 = vmul.f32 %v54, %v59
    %v76 = vld [vmem:[#allocation2 + $0x1] sm:$0x1]
    %v77 = vlaneseq
    %v78 = vshrl.u32 %v77, 7
    %v79 = vsub.s32 0, %v78
    %v80 = vrot.slane %v76, %v79
    %v81 = vadd.f32 %v60, %v80
    %v82 = vadd.f32 %v61, %v80
    %v83 = vadd.f32 %v62, %v80
    %v84 = vadd.f32 %v63, %v80
    %v85 = vadd.f32 %v64, %v80
    %v86 = vadd.f32 %v65, %v80
    %v87 = vadd.f32 %v66, %v80
    %v88 = vadd.f32 %v67, %v80
    %v89 = vadd.f32 %v68, %v80
    %v90 = vadd.f32 %v69, %v80
    %v91 = vadd.f32 %v70, %v80
    %v92 = vadd.f32 %v71, %v80
    %v93 = vadd.f32 %v72, %v80
    %v94 = vadd.f32 %v73, %v80
    %v95 = vadd.f32 %v74, %v80
    %v96 = vadd.f32 %v75, %v80
    %v97 = vmax.f32 %v81, 0.0
    %v98 = vmax.f32 %v82, 0.0
    %v99 = vmax.f32 %v83, 0.0
    %v100 = vmax.f32 %v84, 0.0
    %v101 = vmax.f32 %v85, 0.0
    %v102 = vmax.f32 %v86, 0.0
    %v103 = vmax.f32 %v87, 0.0
    %v104 = vmax.f32 %v88, 0.0
    %v105 = vmax.f32 %v89, 0.0
    %v106 = vmax.f32 %v90, 0.0
    %v107 = vmax.f32 %v91, 0.0
    %v108 = vmax.f32 %v92, 0.0
    %v109 = vmax.f32 %v93, 0.0
    %v110 = vmax.f32 %v94, 0.0
    %v111 = vmax.f32 %v95, 0.0
    %v112 = vmax.f32 %v96, 0.0
    %v113 = vpack.c.bf16 %v98, %v97
    %v114 = vpack.c.bf16 %v100, %v99
    %v115 = vpack.c.bf16 %v102, %v101
    %v116 = vpack.c.bf16 %v104, %v103
    %v117 = vpack.c.bf16 %v106, %v105
    %v118 = vpack.c.bf16 %v108, %v107
    %v119 = vpack.c.bf16 %v110, %v109
    %v120 = vpack.c.bf16 %v112, %v111
    %v121 = vld [vmem:[#allocation4] sm:$0x3]
    %vm122 = vcmask 23552
    %v124 = vsel %vm122, %v113, 0
    %v127 = vsel %vm122, %v114, 0
    %v130 = vsel %vm122, %v115, 0
    %v133 = vsel %vm122, %v116, 0
    %v136 = vsel %vm122, %v117, 0
    %v139 = vsel %vm122, %v118, 0
    %v142 = vsel %vm122, %v119, 0
    %v145 = vsel %vm122, %v120, 0
    %vm147 = vcmask 1040384
    %vm148 = vcmask 1041408
    %v149 = vsel %vm147, 4294967295, 65535
    %v150 = vsel %vm148, %v149, 0
    %v152 = vand.u32 %v121, %v150
    %154 = vmatprep.subr.bf16.mxu0 0
    %155 = vmatpush1.bf16.msra.mxu0 %v152
    %156 = vmatprep.subr.bf16.mxu0 0
    %157 = vmatpush1.bf16.msra.mxu0 0
    %158 = vmatprep.subr.bf16.mxu0 0
    %159 = vmatpush1.bf16.msra.mxu0 0
    %160 = vmatprep.subr.bf16.mxu0 0
    %161 = vmatpush1.bf16.msra.mxu0 0
    %162 = vmatprep.subr.bf16.mxu0 0
    %163 = vmatpush1.bf16.msra.mxu0 0
    %164 = vmatprep.subr.bf16.mxu0 0
    %165 = vmatpush1.bf16.msra.mxu0 0
    %166 = vmatprep.subr.bf16.mxu0 0
    %167 = vmatpush1.bf16.msra.mxu0 0
    %168 = vmatprep.subr.bf16.mxu0 0
    %169 = vmatpush1.bf16.msra.mxu0 0
    %170 = vmatprep.subr.bf16.mxu0 0
    %171 = vmatpush1.bf16.msra.mxu0 0
    %172 = vmatprep.subr.bf16.mxu0 0
    %173 = vmatpush1.bf16.msra.mxu0 0
    %174 = vmatprep.subr.bf16.mxu0 0
    %175 = vmatpush1.bf16.msra.mxu0 0
    %176 = vmatprep.subr.bf16.mxu0 0
    %177 = vmatpush1.bf16.msra.mxu0 0
    %178 = vmatprep.subr.bf16.mxu0 0
    %179 = vmatpush1.bf16.msra.mxu0 0
    %180 = vmatprep.subr.bf16.mxu0 0
    %181 = vmatpush1.bf16.msra.mxu0 0
    %182 = vmatprep.subr.bf16.mxu0 0
    %183 = vmatpush1.bf16.msra.mxu0 0
    %184 = vmatprep.subr.bf16.mxu0 0
    %185 = vmatpush1.bf16.msra.mxu0 0
    %186 = vmatprep.mubr.bf16.mxu0 0
    %187 = vmatmul.mubr.bf16.gmra.mrb[0].mxu0 %v124
    %v188 = vpop.f32.mrb[0].mxu0
    %v189 = vadd.f32 0.0, %v188
    %v190 = vpop.f32.mrb[0].mxu0
    %v191 = vpop.f32.mrb[0].mxu0
    %v192 = vadd.f32 0.0, %v191
    %v193 = vpop.f32.mrb[0].mxu0
    %194 = vmatprep.mubr.bf16.mxu0 0
    %195 = vmatmul.mubr.bf16.gmra.mrb[0].mxu0 %v127
    %v196 = vpop.f32.mrb[0].mxu0
    %v197 = vadd.f32 0.0, %v196
    %v198 = vpop.f32.mrb[0].mxu0
    %v199 = vpop.f32.mrb[0].mxu0
    %v200 = vadd.f32 0.0, %v199
    %v201 = vpop.f32.mrb[0].mxu0
    %202 = vmatprep.mubr.bf16.mxu0 0
    %203 = vmatmul.mubr.bf16.gmra.mrb[0].mxu0 %v130
    %v204 = vpop.f32.mrb[0].mxu0
    %v205 = vadd.f32 0.0, %v204
    %v206 = vpop.f32.mrb[0].mxu0
    %v207 = vpop.f32.mrb[0].mxu0
    %v208 = vadd.f32 0.0, %v207
    %v209 = vpop.f32.mrb[0].mxu0
    %210 = vmatprep.mubr.bf16.mxu0 0
    %211 = vmatmul.mubr.bf16.gmra.mrb[0].mxu0 %v133
    %v212 = vpop.f32.mrb[0].mxu0
    %v213 = vadd.f32 0.0, %v212
    %v214 = vpop.f32.mrb[0].mxu0
    %v215 = vpop.f32.mrb[0].mxu0
    %v216 = vadd.f32 0.0, %v215
    %v217 = vpop.f32.mrb[0].mxu0
    %218 = vmatprep.mubr.bf16.mxu0 0
    %219 = vmatmul.mubr.bf16.gmra.mrb[0].mxu0 %v136
    %v220 = vpop.f32.mrb[0].mxu0
    %v221 = vadd.f32 0.0, %v220
    %v222 = vpop.f32.mrb[0].mxu0
    %v223 = vpop.f32.mrb[0].mxu0
    %v224 = vadd.f32 0.0, %v223
    %v225 = vpop.f32.mrb[0].mxu0
    %226 = vmatprep.mubr.bf16.mxu0 0
    %227 = vmatmul.mubr.bf16.gmra.mrb[0].mxu0 %v139
    %v228 = vpop.f32.mrb[0].mxu0
    %v229 = vadd.f32 0.0, %v228
    %v230 = vpop.f32.mrb[0].mxu0
    %v231 = vpop.f32.mrb[0].mxu0
    %v232 = vadd.f32 0.0, %v231
    %v233 = vpop.f32.mrb[0].mxu0
    %234 = vmatprep.mubr.bf16.mxu0 0
    %235 = vmatmul.mubr.bf16.gmra.mrb[0].mxu0 %v142
    %v236 = vpop.f32.mrb[0].mxu0
    %v237 = vadd.f32 0.0, %v236
    %v238 = vpop.f32.mrb[0].mxu0
    %v239 = vpop.f32.mrb[0].mxu0
    %v240 = vadd.f32 0.0, %v239
    %v241 = vpop.f32.mrb[0].mxu0
    %242 = vmatprep.mubr.bf16.mxu0 0
    %243 = vmatmul.mubr.bf16.gmra.mrb[0].mxu0 %v145
    %v244 = vpop.f32.mrb[0].mxu0
    %v245 = vadd.f32 0.0, %v244
    %v246 = vpop.f32.mrb[0].mxu0
    %v247 = vpop.f32.mrb[0].mxu0
    %v248 = vadd.f32 0.0, %v247
    %v249 = vpop.f32.mrb[0].mxu0
    %250 = vdwg.mxu0
    %v251 = vpack.c.bf16 %v192, %v189
    %v252 = vpack.c.bf16 %v200, %v197
    %v253 = vpack.c.bf16 %v208, %v205
    %v254 = vpack.c.bf16 %v216, %v213
    %v255 = vpack.c.bf16 %v224, %v221
    %v256 = vpack.c.bf16 %v232, %v229
    %v257 = vpack.c.bf16 %v240, %v237
    %v258 = vpack.c.bf16 %v248, %v245
    %v267 = vunpack.c.l.b16 %v251
    %v268 = vunpack.c.h.b16 %v251
    %v269 = vunpack.c.l.b16 %v252
    %v270 = vunpack.c.h.b16 %v252
    %v271 = vunpack.c.l.b16 %v253
    %v272 = vunpack.c.h.b16 %v253
    %v273 = vunpack.c.l.b16 %v254
    %v274 = vunpack.c.h.b16 %v254
    %v275 = vunpack.c.l.b16 %v255
    %v276 = vunpack.c.h.b16 %v255
    %v277 = vunpack.c.l.b16 %v256
    %v278 = vunpack.c.h.b16 %v256
    %v279 = vunpack.c.l.b16 %v257
    %v280 = vunpack.c.h.b16 %v257
    %v281 = vunpack.c.l.b16 %v258
    %v282 = vunpack.c.h.b16 %v258
    %v283 = vpack.c.b16 %v267, %v267
    %v284 = vpack.c.b16 %v268, %v268
    %v285 = vpack.c.b16 %v269, %v269
    %v286 = vpack.c.b16 %v270, %v270
    %v287 = vpack.c.b16 %v271, %v271
    %v288 = vpack.c.b16 %v272, %v272
    %v289 = vpack.c.b16 %v273, %v273
    %v290 = vpack.c.b16 %v274, %v274
    %v291 = vpack.c.b16 %v275, %v275
    %v292 = vpack.c.b16 %v276, %v276
    %v293 = vpack.c.b16 %v277, %v277
    %v294 = vpack.c.b16 %v278, %v278
    %v295 = vpack.c.b16 %v279, %v279
    %v296 = vpack.c.b16 %v280, %v280
    %v297 = vpack.c.b16 %v281, %v281
    %v298 = vpack.c.b16 %v282, %v282
    %vm315 = vcmask 76800
    %316 = vst.msk [vmem:[%s3] sm:$0xf] %vm315, %v283
    %317 = vst.msk [vmem:[%s3 + $0x4] sm:$0xf] %vm315, %v284
    %318 = vst.msk [vmem:[%s3 + $0x8] sm:$0xf] %vm315, %v285
    %319 = vst.msk [vmem:[%s3 + $0xc] sm:$0xf] %vm315, %v286
    %320 = vst.msk [vmem:[%s3 + $0x10] sm:$0xf] %vm315, %v287
    %321 = vst.msk [vmem:[%s3 + $0x14] sm:$0xf] %vm315, %v288
    %322 = vst.msk [vmem:[%s3 + $0x18] sm:$0xf] %vm315, %v289
    %323 = vst.msk [vmem:[%s3 + $0x1c] sm:$0xf] %vm315, %v290
    %324 = vst.msk [vmem:[%s3 + $0x20] sm:$0xf] %vm315, %v291
    %325 = vst.msk [vmem:[%s3 + $0x24] sm:$0xf] %vm315, %v292
    %326 = vst.msk [vmem:[%s3 + $0x28] sm:$0xf] %vm315, %v293
    %327 = vst.msk [vmem:[%s3 + $0x2c] sm:$0xf] %vm315, %v294
    %328 = vst.msk [vmem:[%s3 + $0x30] sm:$0xf] %vm315, %v295
    %329 = vst.msk [vmem:[%s3 + $0x34] sm:$0xf] %vm315, %v296
    %330 = vst.msk [vmem:[%s3 + $0x38] sm:$0xf] %vm315, %v297
    %331 = vst.msk [vmem:[%s3 + $0x3c] sm:$0xf] %vm315, %v298
    // Predicated region
    $region22: #{fcn_forward.6} parent=1 // pred_check
      _
    $region23: #{fcn_forward.6} parent=1 // pred_check_branch
      %333 = sbr.rel (0) target = $region25
    $region24: #{fcn_forward.6} parent=1 // pred_region
      _
    $region25: #{fcn_forward.6} parent=1 // pred_fallthru
      _
    // Predicated region
    $region26: #{fcn_forward.6} parent=1 // pred_check
      _
    $region27: #{fcn_forward.6} parent=1 // pred_check_branch
      %335 = sbr.rel (0) target = $region29
    $region28: #{fcn_forward.6} parent=1 // pred_region
      _
    $region29: #{fcn_forward.6} parent=1 // pred_fallthru
      _
    %336 = vsyncpa [#allocation3], 1
    %337 = vsyncpa [#allocation5], 1

// kernel: fcn_forward.8
$region0: #{fcn_forward.8}
  #allocation0 [shape = 'u32[]', space=smem, size = 0x4, offset = 0x4, fixed_abs, tag = 'smem constant byte address 0x4 - core index']
  #allocation1 [shape = 'u32[144,128]{1,0:T(1,128)}', space=vmem, size = 0x12000, scoped, tag = 'internal scratch']
  %s0 = inlined_call_operand.vmem [shape: bf16[8,17], index: 0, kind: input, shape index: {}]
  %s1 = inlined_call_operand.hbm [shape: f32[2,17], index: 1, kind: input, shape index: {}]
  %s2 = inlined_call_operand.hbm [shape: bf16[17,32], index: 2, kind: input, shape index: {}]
  %s3 = inlined_call_operand.vmem [shape: bf16[8,32], index: 3, kind: output, shape index: {}]
  %s4 = sld [smem:[#allocation0]]
  $region30: #{fcn_forward.8} parent=0
    _
  %s6 = ssub.s32 1, %s4
  %s7 = scalar_select 0, %s6, %s4
  $region1: #{fcn_forward.8} parent=0
    #allocation2 [shape = 'u8[1024]{0}', space=vmem, size = 0x400, scoped, tag = 'input window, operand 1, single buffered']
    #allocation3 [shape = 's32[1]{0}', space=sflag, size = 0x4, scoped, tag = 'scoped memory for fcn_forward.8']
    #allocation4 [shape = 'u8[6144]{0}', space=vmem, size = 0x1800, scoped, tag = 'input window, operand 2, single buffered']
    #allocation5 [shape = 's32[1]{0}', space=sflag, size = 0x4, scoped, tag = 'scoped memory for fcn_forward.8']
    %8 = vsyncpa [#allocation3], 0
    %9 = vsyncpa [#allocation5], 0
    // Predicated region
    $region2: #{fcn_forward.8} parent=1 // pred_check
      _
    $region3: #{fcn_forward.8} parent=1 // pred_check_branch
      %11 = sbr.rel (0) target = $region5
    $region4: #{fcn_forward.8} parent=1 // pred_region
      _
    $region5: #{fcn_forward.8} parent=1 // pred_fallthru
      _
    // Predicated region
    $region6: #{fcn_forward.8} parent=1 // pred_check
      _
    $region7: #{fcn_forward.8} parent=1 // pred_check_branch
      %13 = sbr.rel (0) target = $region9
    $region8: #{fcn_forward.8} parent=1 // pred_region
      %s15 = ssub.s32 32, 32
      %16 = vsyncadd [#allocation3], %s15
      %s18 = sshll.u32 [#allocation2], 4
      %s19 = int_to_ptr.vmem [resolvable:$true] %s18
      %21 = dma.hbm_to_vmem [thread:$0]  %s1, 32, %s19, [#allocation3]
    $region9: #{fcn_forward.8} parent=1 // pred_fallthru
      _
    // Predicated region
    $region10: #{fcn_forward.8} parent=1 // pred_check
      _
    $region11: #{fcn_forward.8} parent=1 // pred_check_branch
      %23 = sbr.rel (0) target = $region13
    $region12: #{fcn_forward.8} parent=1 // pred_region
      %s25 = ssub.s32 192, 192
      %26 = vsyncadd [#allocation5], %s25
      %s27 = sshll.u32 [#allocation4], 4
      %s28 = int_to_ptr.vmem [resolvable:$true] %s27
      %33 = dma.hbm_to_vmem [thread:$0]  %s2, 192, %s28, [#allocation5], 64, 64, 4
    $region13: #{fcn_forward.8} parent=1 // pred_fallthru
      _
    // Predicated region
    $region14: #{fcn_forward.8} parent=1 // pred_check
      _
    $region15: #{fcn_forward.8} parent=1 // pred_check_branch
      %35 = sbr.rel (0) target = $region17
    $region16: #{fcn_forward.8} parent=1 // pred_region
      %36 = dma.done [#allocation3], 32
    $region17: #{fcn_forward.8} parent=1 // pred_fallthru
      _
    // Predicated region
    $region18: #{fcn_forward.8} parent=1 // pred_check
      _
    $region19: #{fcn_forward.8} parent=1 // pred_check_branch
      %38 = sbr.rel (0) target = $region21
    $region20: #{fcn_forward.8} parent=1 // pred_region
      %39 = dma.done [#allocation5], 192
    $region21: #{fcn_forward.8} parent=1 // pred_fallthru
      _
    %v41 = vld [vmem:[%s0] sm:$0xf]
    %v42 = vunpack.c.l.bf16 %v41
    %v43 = vld [vmem:[#allocation2] sm:$0x1]
    %v44 = vlaneseq
    %v45 = vshrl.u32 %v44, 7
    %v46 = vsub.s32 0, %v45
    %v47 = vrot.slane %v43, %v46
    %v48 = vmul.f32 %v42, %v47
    %v49 = vld [vmem:[#allocation2 + $0x1] sm:$0x1]
    %v50 = vlaneseq
    %v51 = vshrl.u32 %v50, 7
    %v52 = vsub.s32 0, %v51
    %v53 = vrot.slane %v49, %v52
    %v54 = vadd.f32 %v48, %v53
    %v55 = vmax.f32 %v54, 0.0
    %v56 = vpack.c.bf16 %v55, %v55
    %v57 = vld [vmem:[#allocation4] sm:$0xf]
    %v58 = vld [vmem:[#allocation4 + $0x4] sm:$0xf]
    %v59 = vld [vmem:[#allocation4 + $0x8] sm:$0x1]
    %v63 = vunpack.c.l.b16 %v57
    %v64 = vunpack.c.l.b16 %v58
    %v65 = vunpack.c.l.b16 %v59
    %v66 = vpack.c.b16 %v64, %v63
    %v67 = vpack.c.b16 %v65, %v65
    %vm69 = vcmask 138240
    %v71 = vsel %vm69, %v56, 0
    %vm73 = vcmask 1040384
    %v74 = vsel 0, 4294967295, 65535
    %v75 = vsel %vm73, %v74, 0
    %v77 = vand.u32 %v67, %v75
    %79 = vmatprep.subr.bf16.mxu0 0
    %80 = vmatpush1.bf16.msra.mxu0 %v66
    %81 = vmatprep.subr.bf16.mxu0 0
    %82 = vmatpush1.bf16.msra.mxu0 %v77
    %83 = vmatprep.subr.bf16.mxu0 0
    %84 = vmatpush1.bf16.msra.mxu0 0
    %85 = vmatprep.subr.bf16.mxu0 0
    %86 = vmatpush1.bf16.msra.mxu0 0
    %87 = vmatprep.subr.bf16.mxu0 0
    %88 = vmatpush1.bf16.msra.mxu0 0
    %89 = vmatprep.subr.bf16.mxu0 0
    %90 = vmatpush1.bf16.msra.mxu0 0
    %91 = vmatprep.subr.bf16.mxu0 0
    %92 = vmatpush1.bf16.msra.mxu0 0
    %93 = vmatprep.subr.bf16.mxu0 0
    %94 = vmatpush1.bf16.msra.mxu0 0
    %95 = vmatprep.subr.bf16.mxu0 0
    %96 = vmatpush1.bf16.msra.mxu0 0
    %97 = vmatprep.subr.bf16.mxu0 0
    %98 = vmatpush1.bf16.msra.mxu0 0
    %99 = vmatprep.subr.bf16.mxu0 0
    %100 = vmatpush1.bf16.msra.mxu0 0
    %101 = vmatprep.subr.bf16.mxu0 0
    %102 = vmatpush1.bf16.msra.mxu0 0
    %103 = vmatprep.subr.bf16.mxu0 0
    %104 = vmatpush1.bf16.msra.mxu0 0
    %105 = vmatprep.subr.bf16.mxu0 0
    %106 = vmatpush1.bf16.msra.mxu0 0
    %107 = vmatprep.subr.bf16.mxu0 0
    %108 = vmatpush1.bf16.msra.mxu0 0
    %109 = vmatprep.subr.bf16.mxu0 0
    %110 = vmatpush1.bf16.msra.mxu0 0
    %111 = vmatprep.mubr.bf16.mxu0 0
    %112 = vmatmul.mubr.bf16.gmra.mrb[0].mxu0 %v71
    %v113 = vpop.f32.mrb[0].mxu0
    %v114 = vadd.f32 0.0, %v113
    %v115 = vpop.f32.mrb[0].mxu0
    %v116 = vpop.f32.mrb[0].mxu0
    %v117 = vpop.f32.mrb[0].mxu0
    %118 = vdwg.mxu0
    %v119 = vpack.c.bf16 %v114, %v114
    %vm120 = vcmask 257024
    %121 = vst.msk [vmem:[%s3] sm:$0xf] %vm120, %v119
    // Predicated region
    $region22: #{fcn_forward.8} parent=1 // pred_check
      _
    $region23: #{fcn_forward.8} parent=1 // pred_check_branch
      %123 = sbr.rel (0) target = $region25
    $region24: #{fcn_forward.8} parent=1 // pred_region
      _
    $region25: #{fcn_forward.8} parent=1 // pred_fallthru
      _
    // Predicated region
    $region26: #{fcn_forward.8} parent=1 // pred_check
      _
    $region27: #{fcn_forward.8} parent=1 // pred_check_branch
      %125 = sbr.rel (0) target = $region29
    $region28: #{fcn_forward.8} parent=1 // pred_region
      _
    $region29: #{fcn_forward.8} parent=1 // pred_fallthru
      _
    %126 = vsyncpa [#allocation3], 1
    %127 = vsyncpa [#allocation5], 1

// kernel: fcn_forward.7
$region0: #{fcn_forward.7}
  #allocation0 [shape = 'u32[]', space=smem, size = 0x4, offset = 0x4, fixed_abs, tag = 'smem constant byte address 0x4 - core index']
  #allocation1 [shape = 'u32[144,128]{1,0:T(1,128)}', space=vmem, size = 0x12000, scoped, tag = 'internal scratch']
  %s0 = inlined_call_operand.vmem [shape: bf16[32,10], index: 0, kind: input, shape index: {}]
  %s1 = inlined_call_operand.hbm [shape: f32[2,10], index: 1, kind: input, shape index: {}]
  %s2 = inlined_call_operand.hbm [shape: bf16[10,17], index: 2, kind: input, shape index: {}]
  %s3 = inlined_call_operand.vmem [shape: bf16[32,17], index: 3, kind: output, shape index: {}]
  %s4 = sld [smem:[#allocation0]]
  $region30: #{fcn_forward.7} parent=0
    _
  %s6 = ssub.s32 1, %s4
  %s7 = scalar_select 0, %s6, %s4
  $region1: #{fcn_forward.7} parent=0
    #allocation2 [shape = 'u8[1024]{0}', space=vmem, size = 0x400, scoped, tag = 'input window, operand 1, single buffered']
    #allocation3 [shape = 's32[1]{0}', space=sflag, size = 0x4, scoped, tag = 'scoped memory for fcn_forward.7']
    #allocation4 [shape = 'u8[4096]{0}', space=vmem, size = 0x1000, scoped, tag = 'input window, operand 2, single buffered']
    #allocation5 [shape = 's32[1]{0}', space=sflag, size = 0x4, scoped, tag = 'scoped memory for fcn_forward.7']
    %8 = vsyncpa [#allocation3], 0
    %9 = vsyncpa [#allocation5], 0
    // Predicated region
    $region2: #{fcn_forward.7} parent=1 // pred_check
      _
    $region3: #{fcn_forward.7} parent=1 // pred_check_branch
      %11 = sbr.rel (0) target = $region5
    $region4: #{fcn_forward.7} parent=1 // pred_region
      _
    $region5: #{fcn_forward.7} parent=1 // pred_fallthru
      _
    // Predicated region
    $region6: #{fcn_forward.7} parent=1 // pred_check
      _
    $region7: #{fcn_forward.7} parent=1 // pred_check_branch
      %13 = sbr.rel (0) target = $region9
    $region8: #{fcn_forward.7} parent=1 // pred_region
      %s15 = ssub.s32 32, 32
      %16 = vsyncadd [#allocation3], %s15
      %s18 = sshll.u32 [#allocation2], 4
      %s19 = int_to_ptr.vmem [resolvable:$true] %s18
      %21 = dma.hbm_to_vmem [thread:$0]  %s1, 32, %s19, [#allocation3]
    $region9: #{fcn_forward.7} parent=1 // pred_fallthru
      _
    // Predicated region
    $region10: #{fcn_forward.7} parent=1 // pred_check
      _
    $region11: #{fcn_forward.7} parent=1 // pred_check_branch
      %23 = sbr.rel (0) target = $region13
    $region12: #{fcn_forward.7} parent=1 // pred_region
      %s25 = ssub.s32 128, 128
      %26 = vsyncadd [#allocation5], %s25
      %s27 = sshll.u32 [#allocation4], 4
      %s28 = int_to_ptr.vmem [resolvable:$true] %s27
      %33 = dma.hbm_to_vmem [thread:$0]  %s2, 128, %s28, [#allocation5], 64, 64, 4
    $region13: #{fcn_forward.7} parent=1 // pred_fallthru
      _
    // Predicated region
    $region14: #{fcn_forward.7} parent=1 // pred_check
      _
    $region15: #{fcn_forward.7} parent=1 // pred_check_branch
      %35 = sbr.rel (0) target = $region17
    $region16: #{fcn_forward.7} parent=1 // pred_region
      %36 = dma.done [#allocation3], 32
    $region17: #{fcn_forward.7} parent=1 // pred_fallthru
      _
    // Predicated region
    $region18: #{fcn_forward.7} parent=1 // pred_check
      _
    $region19: #{fcn_forward.7} parent=1 // pred_check_branch
      %38 = sbr.rel (0) target = $region21
    $region20: #{fcn_forward.7} parent=1 // pred_region
      %39 = dma.done [#allocation5], 128
    $region21: #{fcn_forward.7} parent=1 // pred_fallthru
      _
    %v41 = vld [vmem:[%s0] sm:$0xf]
    %v42 = vld [vmem:[%s0 + $0x4] sm:$0xf]
    %v43 = vld [vmem:[%s0 + $0x8] sm:$0xf]
    %v44 = vld [vmem:[%s0 + $0xc] sm:$0xf]
    %v45 = vunpack.c.l.bf16 %v41
    %v46 = vunpack.c.l.bf16 %v42
    %v47 = vunpack.c.l.bf16 %v43
    %v48 = vunpack.c.l.bf16 %v44
    %v49 = vld [vmem:[#allocation2] sm:$0x1]
    %v50 = vlaneseq
    %v51 = vshrl.u32 %v50, 7
    %v52 = vsub.s32 0, %v51
    %v53 = vrot.slane %v49, %v52
    %v54 = vmul.f32 %v45, %v53
    %v55 = vmul.f32 %v46, %v53
    %v56 = vmul.f32 %v47, %v53
    %v57 = vmul.f32 %v48, %v53
    %v58 = vld [vmem:[#allocation2 + $0x1] sm:$0x1]
    %v59 = vlaneseq
    %v60 = vshrl.u32 %v59, 7
    %v61 = vsub.s32 0, %v60
    %v62 = vrot.slane %v58, %v61
    %v63 = vadd.f32 %v54, %v62
    %v64 = vadd.f32 %v55, %v62
    %v65 = vadd.f32 %v56, %v62
    %v66 = vadd.f32 %v57, %v62
    %v67 = vmax.f32 %v63, 0.0
    %v68 = vmax.f32 %v64, 0.0
    %v69 = vmax.f32 %v65, 0.0
    %v70 = vmax.f32 %v66, 0.0
    %v71 = vpack.c.bf16 %v68, %v67
    %v72 = vpack.c.bf16 %v70, %v69
    %v73 = vld [vmem:[#allocation4] sm:$0xf]
    %v74 = vld [vmem:[#allocation4 + $0x4] sm:$0x1]
    %v77 = vunpack.c.l.b16 %v73
    %v78 = vunpack.c.l.b16 %v74
    %v79 = vpack.c.b16 %v78, %v77
    %vm80 = vcmask 80896
    %v82 = vsel %vm80, %v71, 0
    %v85 = vsel %vm80, %v72, 0
    %vm87 = vcmask 1044480
    %v89 = vsel %vm87, %v79, 0
    %91 = vmatprep.subr.bf16.mxu0 0
    %92 = vmatpush1.bf16.msra.mxu0 %v89
    %93 = vmatprep.subr.bf16.mxu0 0
    %94 = vmatpush1.bf16.msra.mxu0 0
    %95 = vmatprep.subr.bf16.mxu0 0
    %96 = vmatpush1.bf16.msra.mxu0 0
    %97 = vmatprep.subr.bf16.mxu0 0
    %98 = vmatpush1.bf16.msra.mxu0 0
    %99 = vmatprep.subr.bf16.mxu0 0
    %100 = vmatpush1.bf16.msra.mxu0 0
    %101 = vmatprep.subr.bf16.mxu0 0
    %102 = vmatpush1.bf16.msra.mxu0 0
    %103 = vmatprep.subr.bf16.mxu0 0
    %104 = vmatpush1.bf16.msra.mxu0 0
    %105 = vmatprep.subr.bf16.mxu0 0
    %106 = vmatpush1.bf16.msra.mxu0 0
    %107 = vmatprep.subr.bf16.mxu0 0
    %108 = vmatpush1.bf16.msra.mxu0 0
    %109 = vmatprep.subr.bf16.mxu0 0
    %110 = vmatpush1.bf16.msra.mxu0 0
    %111 = vmatprep.subr.bf16.mxu0 0
    %112 = vmatpush1.bf16.msra.mxu0 0
    %113 = vmatprep.subr.bf16.mxu0 0
    %114 = vmatpush1.bf16.msra.mxu0 0
    %115 = vmatprep.subr.bf16.mxu0 0
    %116 = vmatpush1.bf16.msra.mxu0 0
    %117 = vmatprep.subr.bf16.mxu0 0
    %118 = vmatpush1.bf16.msra.mxu0 0
    %119 = vmatprep.subr.bf16.mxu0 0
    %120 = vmatpush1.bf16.msra.mxu0 0
    %121 = vmatprep.subr.bf16.mxu0 0
    %122 = vmatpush1.bf16.msra.mxu0 0
    %123 = vmatprep.mubr.bf16.mxu0 0
    %124 = vmatmul.mubr.bf16.gmra.mrb[0].mxu0 %v82
    %v125 = vpop.f32.mrb[0].mxu0
    %v126 = vadd.f32 0.0, %v125
    %v127 = vpop.f32.mrb[0].mxu0
    %v128 = vpop.f32.mrb[0].mxu0
    %v129 = vadd.f32 0.0, %v128
    %v130 = vpop.f32.mrb[0].mxu0
    %131 = vmatprep.mubr.bf16.mxu0 0
    %132 = vmatmul.mubr.bf16.gmra.mrb[0].mxu0 %v85
    %v133 = vpop.f32.mrb[0].mxu0
    %v134 = vadd.f32 0.0, %v133
    %v135 = vpop.f32.mrb[0].mxu0
    %v136 = vpop.f32.mrb[0].mxu0
    %v137 = vadd.f32 0.0, %v136
    %v138 = vpop.f32.mrb[0].mxu0
    %139 = vdwg.mxu0
    %v140 = vpack.c.bf16 %v129, %v126
    %v141 = vpack.c.bf16 %v137, %v134
    %v144 = vunpack.c.l.b16 %v140
    %v145 = vunpack.c.h.b16 %v140
    %v146 = vunpack.c.l.b16 %v141
    %v147 = vunpack.c.h.b16 %v141
    %v148 = vpack.c.b16 %v144, %v144
    %v149 = vpack.c.b16 %v145, %v145
    %v150 = vpack.c.b16 %v146, %v146
    %v151 = vpack.c.b16 %v147, %v147
    %vm156 = vcmask 134144
    %157 = vst.msk [vmem:[%s3] sm:$0xf] %vm156, %v148
    %158 = vst.msk [vmem:[%s3 + $0x4] sm:$0xf] %vm156, %v149
    %159 = vst.msk [vmem:[%s3 + $0x8] sm:$0xf] %vm156, %v150
    %160 = vst.msk [vmem:[%s3 + $0xc] sm:$0xf] %vm156, %v151
    // Predicated region
    $region22: #{fcn_forward.7} parent=1 // pred_check
      _
    $region23: #{fcn_forward.7} parent=1 // pred_check_branch
      %162 = sbr.rel (0) target = $region25
    $region24: #{fcn_forward.7} parent=1 // pred_region
      _
    $region25: #{fcn_forward.7} parent=1 // pred_fallthru
      _
    // Predicated region
    $region26: #{fcn_forward.7} parent=1 // pred_check
      _
    $region27: #{fcn_forward.7} parent=1 // pred_check_branch
      %164 = sbr.rel (0) target = $region29
    $region28: #{fcn_forward.7} parent=1 // pred_region
      _
    $region29: #{fcn_forward.7} parent=1 // pred_fallthru
      _
    %165 = vsyncpa [#allocation3], 1
    %166 = vsyncpa [#allocation5], 1

// kernel: fcn_forward.9
$region0: #{fcn_forward.9}
  #allocation0 [shape = 'u32[]', space=smem, size = 0x4, offset = 0x4, fixed_abs, tag = 'smem constant byte address 0x4 - core index']
  #allocation1 [shape = 'u32[144,128]{1,0:T(1,128)}', space=vmem, size = 0x12000, scoped, tag = 'internal scratch']
  %s0 = inlined_call_operand.vmem [shape: bf16[8,32], index: 0, kind: input, shape index: {}]
  %s1 = inlined_call_operand.hbm [shape: bf16[32,64], index: 1, kind: input, shape index: {}]
  %s2 = inlined_call_operand.hbm [shape: f32[2,64], index: 2, kind: input, shape index: {}]
  %s3 = inlined_call_operand.hbm [shape: f32[2,32], index: 3, kind: input, shape index: {}]
  %s4 = inlined_call_operand.hbm [shape: bf16[64,384], index: 4, kind: input, shape index: {}]
  %s5 = inlined_call_operand.hbm [shape: bf16[32,384], index: 5, kind: input, shape index: {}]
  %s6 = inlined_call_operand.vmem [shape: bf16[8,384], index: 6, kind: output, shape index: {}]
  %s7 = sld [smem:[#allocation0]]
  $region54: #{fcn_forward.9} parent=0
    _
  %s9 = ssub.s32 1, %s7
  %s10 = scalar_select 0, %s9, %s7
  $region1: #{fcn_forward.9} parent=0
    #allocation2 [shape = 'u8[8192]{0}', space=vmem, size = 0x2000, scoped, tag = 'input window, operand 1, single buffered']
    #allocation3 [shape = 's32[1]{0}', space=sflag, size = 0x4, scoped, tag = 'scoped memory for fcn_forward.9']
    #allocation4 [shape = 'u8[1024]{0}', space=vmem, size = 0x400, scoped, tag = 'input window, operand 2, single buffered']
    #allocation5 [shape = 's32[1]{0}', space=sflag, size = 0x4, scoped, tag = 'scoped memory for fcn_forward.9']
    #allocation6 [shape = 'u8[1024]{0}', space=vmem, size = 0x400, scoped, tag = 'input window, operand 3, single buffered']
    #allocation7 [shape = 'u8[49152]{0}', space=vmem, size = 0xc000, scoped, tag = 'input window, operand 4, single buffered']
    #allocation8 [shape = 's32[1]{0}', space=sflag, size = 0x4, scoped, tag = 'scoped memory for fcn_forward.9']
    #allocation9 [shape = 'u8[24576]{0}', space=vmem, size = 0x6000, scoped, tag = 'input window, operand 5, single buffered']
    %11 = vsyncpa [#allocation3], 0
    %12 = vsyncpa [#allocation5], 0
    %13 = vsyncpa [#allocation8], 0
    // Predicated region
    $region2: #{fcn_forward.9} parent=1 // pred_check
      _
    $region3: #{fcn_forward.9} parent=1 // pred_check_branch
      %15 = sbr.rel (0) target = $region5
    $region4: #{fcn_forward.9} parent=1 // pred_region
      _
    $region5: #{fcn_forward.9} parent=1 // pred_fallthru
      _
    // Predicated region
    $region6: #{fcn_forward.9} parent=1 // pred_check
      _
    $region7: #{fcn_forward.9} parent=1 // pred_check_branch
      %17 = sbr.rel (0) target = $region9
    $region8: #{fcn_forward.9} parent=1 // pred_region
      %s19 = ssub.s32 256, 256
      %20 = vsyncadd [#allocation3], %s19
      %s21 = sshll.u32 [#allocation2], 4
      %s22 = int_to_ptr.vmem [resolvable:$true] %s21
      %27 = dma.hbm_to_vmem [thread:$0]  %s1, 256, %s22, [#allocation3], 64, 64, 4
    $region9: #{fcn_forward.9} parent=1 // pred_fallthru
      _
    // Predicated region
    $region10: #{fcn_forward.9} parent=1 // pred_check
      _
    $region11: #{fcn_forward.9} parent=1 // pred_check_branch
      %29 = sbr.rel (0) target = $region13
    $region12: #{fcn_forward.9} parent=1 // pred_region
      %s31 = ssub.s32 32, 32
      %32 = vsyncadd [#allocation5], %s31
      %s34 = sshll.u32 [#allocation4], 4
      %s35 = int_to_ptr.vmem [resolvable:$true] %s34
      %37 = dma.hbm_to_vmem [thread:$0]  %s2, 32, %s35, [#allocation5]
    $region13: #{fcn_forward.9} parent=1 // pred_fallthru
      _
    // Predicated region
    $region14: #{fcn_forward.9} parent=1 // pred_check
      _
    $region15: #{fcn_forward.9} parent=1 // pred_check_branch
      %39 = sbr.rel (0) target = $region17
    $region16: #{fcn_forward.9} parent=1 // pred_region
      %s41 = ssub.s32 32, 32
      %42 = vsyncadd [#allocation5], %s41
      %s44 = sshll.u32 [#allocation6], 4
      %s45 = int_to_ptr.vmem [resolvable:$true] %s44
      %47 = dma.hbm_to_vmem [thread:$0]  %s3, 32, %s45, [#allocation5]
    $region17: #{fcn_forward.9} parent=1 // pred_fallthru
      _
    // Predicated region
    $region18: #{fcn_forward.9} parent=1 // pred_check
      _
    $region19: #{fcn_forward.9} parent=1 // pred_check_branch
      %49 = sbr.rel (0) target = $region21
    $region20: #{fcn_forward.9} parent=1 // pred_region
      %s51 = ssub.s32 1536, 1536
      %52 = vsyncadd [#allocation8], %s51
      %s53 = sshll.u32 [#allocation7], 4
      %s54 = int_to_ptr.vmem [resolvable:$true] %s53
      %59 = dma.hbm_to_vmem [thread:$0]  %s4, 1536, %s54, [#allocation8], 192, 192, 12
    $region21: #{fcn_forward.9} parent=1 // pred_fallthru
      _
    // Predicated region
    $region22: #{fcn_forward.9} parent=1 // pred_check
      _
    $region23: #{fcn_forward.9} parent=1 // pred_check_branch
      %61 = sbr.rel (0) target = $region25
    $region24: #{fcn_forward.9} parent=1 // pred_region
      %s63 = ssub.s32 768, 768
      %64 = vsyncadd [#allocation8], %s63
      %s65 = sshll.u32 [#allocation9], 4
      %s66 = int_to_ptr.vmem [resolvable:$true] %s65
      %71 = dma.hbm_to_vmem [thread:$0]  %s5, 768, %s66, [#allocation8], 192, 192, 12
    $region25: #{fcn_forward.9} parent=1 // pred_fallthru
      _
    // Predicated region
    $region26: #{fcn_forward.9} parent=1 // pred_check
      _
    $region27: #{fcn_forward.9} parent=1 // pred_check_branch
      %73 = sbr.rel (0) target = $region29
    $region28: #{fcn_forward.9} parent=1 // pred_region
      %74 = dma.done [#allocation3], 256
    $region29: #{fcn_forward.9} parent=1 // pred_fallthru
      _
    // Predicated region
    $region30: #{fcn_forward.9} parent=1 // pred_check
      _
    $region31: #{fcn_forward.9} parent=1 // pred_check_branch
      %76 = sbr.rel (0) target = $region33
    $region32: #{fcn_forward.9} parent=1 // pred_region
      %77 = dma.done [#allocation5], 32
    $region33: #{fcn_forward.9} parent=1 // pred_fallthru
      _
    // Predicated region
    $region34: #{fcn_forward.9} parent=1 // pred_check
      _
    $region35: #{fcn_forward.9} parent=1 // pred_check_branch
      %79 = sbr.rel (0) target = $region37
    $region36: #{fcn_forward.9} parent=1 // pred_region
      %80 = dma.done [#allocation5], 32
    $region37: #{fcn_forward.9} parent=1 // pred_fallthru
      _
    // Predicated region
    $region38: #{fcn_forward.9} parent=1 // pred_check
      _
    $region39: #{fcn_forward.9} parent=1 // pred_check_branch
      %82 = sbr.rel (0) target = $region41
    $region40: #{fcn_forward.9} parent=1 // pred_region
      %83 = dma.done [#allocation8], 1536
    $region41: #{fcn_forward.9} parent=1 // pred_fallthru
      _
    // Predicated region
    $region42: #{fcn_forward.9} parent=1 // pred_check
      _
    $region43: #{fcn_forward.9} parent=1 // pred_check_branch
      %85 = sbr.rel (0) target = $region45
    $region44: #{fcn_forward.9} parent=1 // pred_region
      %86 = dma.done [#allocation8], 768
    $region45: #{fcn_forward.9} parent=1 // pred_fallthru
      _
    %v88 = vld [vmem:[%s0] sm:$0xf]
    %v89 = vunpack.c.l.bf16 %v88
    %v90 = vmax.f32 %v89, 0.0
    %v91 = vpack.c.bf16 %v90, %v90
    %v92 = vld [vmem:[#allocation2] sm:$0xf]
    %v93 = vld [vmem:[#allocation2 + $0x4] sm:$0xf]
    %v94 = vld [vmem:[#allocation2 + $0x8] sm:$0xf]
    %v95 = vld [vmem:[#allocation2 + $0xc] sm:$0xf]
    %v100 = vunpack.c.l.b16 %v92
    %v101 = vunpack.c.l.b16 %v93
    %v102 = vunpack.c.l.b16 %v94
    %v103 = vunpack.c.l.b16 %v95
    %v104 = vpack.c.b16 %v101, %v100
    %v105 = vpack.c.b16 %v103, %v102
    %vm108 = vcmask 261120
    %v110 = vsel %vm108, %v91, 0
    %112 = vmatprep.subr.bf16.mxu0 0
    %113 = vmatpush1.bf16.msra.mxu0 %v104
    %114 = vmatprep.subr.bf16.mxu0 0
    %115 = vmatpush1.bf16.msra.mxu0 %v105
    %116 = vmatprep.subr.bf16.mxu0 0
    %117 = vmatpush1.bf16.msra.mxu0 0
    %118 = vmatprep.subr.bf16.mxu0 0
    %119 = vmatpush1.bf16.msra.mxu0 0
    %120 = vmatprep.subr.bf16.mxu0 0
    %121 = vmatpush1.bf16.msra.mxu0 0
    %122 = vmatprep.subr.bf16.mxu0 0
    %123 = vmatpush1.bf16.msra.mxu0 0
    %124 = vmatprep.subr.bf16.mxu0 0
    %125 = vmatpush1.bf16.msra.mxu0 0
    %126 = vmatprep.subr.bf16.mxu0 0
    %127 = vmatpush1.bf16.msra.mxu0 0
    %128 = vmatprep.subr.bf16.mxu0 0
    %129 = vmatpush1.bf16.msra.mxu0 0
    %130 = vmatprep.subr.bf16.mxu0 0
    %131 = vmatpush1.bf16.msra.mxu0 0
    %132 = vmatprep.subr.bf16.mxu0 0
    %133 = vmatpush1.bf16.msra.mxu0 0
    %134 = vmatprep.subr.bf16.mxu0 0
    %135 = vmatpush1.bf16.msra.mxu0 0
    %136 = vmatprep.subr.bf16.mxu0 0
    %137 = vmatpush1.bf16.msra.mxu0 0
    %138 = vmatprep.subr.bf16.mxu0 0
    %139 = vmatpush1.bf16.msra.mxu0 0
    %140 = vmatprep.subr.bf16.mxu0 0
    %141 = vmatpush1.bf16.msra.mxu0 0
    %142 = vmatprep.subr.bf16.mxu0 0
    %143 = vmatpush1.bf16.msra.mxu0 0
    %144 = vmatprep.mubr.bf16.mxu0 0
    %145 = vmatmul.mubr.bf16.gmra.mrb[0].mxu0 %v110
    %v146 = vpop.f32.mrb[0].mxu0
    %v147 = vadd.f32 0.0, %v146
    %v148 = vpop.f32.mrb[0].mxu0
    %v149 = vpop.f32.mrb[0].mxu0
    %v150 = vpop.f32.mrb[0].mxu0
    %151 = vdwg.mxu0
    %v152 = vld [vmem:[#allocation4] sm:$0x1]
    %v153 = vlaneseq
    %v154 = vshrl.u32 %v153, 7
    %v155 = vsub.s32 0, %v154
    %v156 = vrot.slane %v152, %v155
    %v157 = vmul.f32 %v147, %v156
    %v158 = vld [vmem:[#allocation4 + $0x1] sm:$0x1]
    %v159 = vlaneseq
    %v160 = vshrl.u32 %v159, 7
    %v161 = vsub.s32 0, %v160
    %v162 = vrot.slane %v158, %v161
    %v163 = vadd.f32 %v157, %v162
    %v164 = vmax.f32 %v163, 0.0
    %v165 = vld [vmem:[#allocation6] sm:$0x1]
    %v166 = vlaneseq
    %v167 = vshrl.u32 %v166, 7
    %v168 = vsub.s32 0, %v167
    %v169 = vrot.slane %v165, %v168
    %v170 = vmul.f32 %v89, %v169
    %v171 = vld [vmem:[#allocation6 + $0x1] sm:$0x1]
    %v172 = vlaneseq
    %v173 = vshrl.u32 %v172, 7
    %v174 = vsub.s32 0, %v173
    %v175 = vrot.slane %v171, %v174
    %v176 = vadd.f32 %v170, %v175
    %v177 = vmax.f32 %v176, 0.0
    %v178 = vpack.c.bf16 %v164, %v164
    %v179 = vld [vmem:[#allocation7] sm:$0xff]
    %v180 = vld [vmem:[#allocation7 + $0x8] sm:$0xf]
    %v181 = vld [vmem:[#allocation7 + $0xc] sm:$0xff]
    %v182 = vld [vmem:[#allocation7 + $0x14] sm:$0xf]
    %v183 = vld [vmem:[#allocation7 + $0x18] sm:$0xff]
    %v184 = vld [vmem:[#allocation7 + $0x20] sm:$0xf]
    %v185 = vld [vmem:[#allocation7 + $0x24] sm:$0xff]
    %v186 = vld [vmem:[#allocation7 + $0x2c] sm:$0xf]
    %v187 = vld [vmem:[#allocation7 + $0x30] sm:$0xff]
    %v188 = vld [vmem:[#allocation7 + $0x38] sm:$0xf]
    %v189 = vld [vmem:[#allocation7 + $0x3c] sm:$0xff]
    %v190 = vld [vmem:[#allocation7 + $0x44] sm:$0xf]
    %v191 = vld [vmem:[#allocation7 + $0x48] sm:$0xff]
    %v192 = vld [vmem:[#allocation7 + $0x50] sm:$0xf]
    %v193 = vld [vmem:[#allocation7 + $0x54] sm:$0xff]
    %v194 = vld [vmem:[#allocation7 + $0x5c] sm:$0xf]
    %v195 = vpack.c.bf16 %v177, %v177
    %v196 = vld [vmem:[#allocation9] sm:$0xff]
    %v197 = vld [vmem:[#allocation9 + $0x8] sm:$0xf]
    %v198 = vld [vmem:[#allocation9 + $0xc] sm:$0xff]
    %v199 = vld [vmem:[#allocation9 + $0x14] sm:$0xf]
    %v200 = vld [vmem:[#allocation9 + $0x18] sm:$0xff]
    %v201 = vld [vmem:[#allocation9 + $0x20] sm:$0xf]
    %v202 = vld [vmem:[#allocation9 + $0x24] sm:$0xff]
    %v203 = vld [vmem:[#allocation9 + $0x2c] sm:$0xf]
    %v212 = vunpack.c.l.b16 %v196
    %v213 = vunpack.c.h.b16 %v196
    %v214 = vunpack.c.l.b16 %v197
    %v215 = vunpack.c.l.b16 %v198
    %v216 = vunpack.c.h.b16 %v198
    %v217 = vunpack.c.l.b16 %v199
    %v218 = vunpack.c.l.b16 %v200
    %v219 = vunpack.c.h.b16 %v200
    %v220 = vunpack.c.l.b16 %v201
    %v221 = vunpack.c.l.b16 %v202
    %v222 = vunpack.c.h.b16 %v202
    %v223 = vunpack.c.l.b16 %v203
    %v224 = vpack.c.b16 %v215, %v212
    %v225 = vpack.c.b16 %v216, %v213
    %v226 = vpack.c.b16 %v217, %v214
    %v227 = vpack.c.b16 %v221, %v218
    %v228 = vpack.c.b16 %v222, %v219
    %v229 = vpack.c.b16 %v223, %v220
    %v237 = vsel %vm108, %v195, 0
    %239 = vmatprep.subr.bf16.mxu0 %v225
    %240 = vmatpush1.bf16.msra.mxu0 %v224
    %241 = vmatprep.subr.bf16.mxu0 %v228
    %242 = vmatpush1.bf16.msra.mxu0 %v227
    %243 = vmatprep.subr.bf16.mxu0 0
    %244 = vmatpush1.bf16.msra.mxu0 0
    %245 = vmatprep.subr.bf16.mxu0 0
    %246 = vmatpush1.bf16.msra.mxu0 0
    %247 = vmatprep.subr.bf16.mxu0 0
    %248 = vmatpush1.bf16.msra.mxu0 0
    %249 = vmatprep.subr.bf16.mxu0 0
    %250 = vmatpush1.bf16.msra.mxu0 0
    %251 = vmatprep.subr.bf16.mxu0 0
    %252 = vmatpush1.bf16.msra.mxu0 0
    %253 = vmatprep.subr.bf16.mxu0 0
    %254 = vmatpush1.bf16.msra.mxu0 0
    %255 = vmatprep.subr.bf16.mxu0 0
    %256 = vmatpush1.bf16.msra.mxu0 0
    %257 = vmatprep.subr.bf16.mxu0 0
    %258 = vmatpush1.bf16.msra.mxu0 0
    %259 = vmatprep.subr.bf16.mxu0 0
    %260 = vmatpush1.bf16.msra.mxu0 0
    %261 = vmatprep.subr.bf16.mxu0 0
    %262 = vmatpush1.bf16.msra.mxu0 0
    %263 = vmatprep.subr.bf16.mxu0 0
    %264 = vmatpush1.bf16.msra.mxu0 0
    %265 = vmatprep.subr.bf16.mxu0 0
    %266 = vmatpush1.bf16.msra.mxu0 0
    %267 = vmatprep.subr.bf16.mxu0 0
    %268 = vmatpush1.bf16.msra.mxu0 0
    %269 = vmatprep.subr.bf16.mxu0 0
    %270 = vmatpush1.bf16.msra.mxu0 0
    %271 = vmatprep.mubr.bf16.mxu0 0
    %272 = vmatmul.mubr.bf16.gmra.mrb[0].mxu0 %v237
    %v273 = vpop.f32.mrb[0].mxu0
    %v274 = vadd.f32 0.0, %v273
    %v275 = vpop.f32.mrb[0].mxu0
    %v276 = vadd.f32 0.0, %v275
    %v277 = vpop.f32.mrb[0].mxu0
    %v278 = vpop.f32.mrb[0].mxu0
    %279 = vdwg.mxu0
    %280 = vmatprep.subr.bf16.mxu0 0
    %281 = vmatpush1.bf16.msra.mxu0 %v226
    %282 = vmatprep.subr.bf16.mxu0 0
    %283 = vmatpush1.bf16.msra.mxu0 %v229
    %284 = vmatprep.subr.bf16.mxu0 0
    %285 = vmatpush1.bf16.msra.mxu0 0
    %286 = vmatprep.subr.bf16.mxu0 0
    %287 = vmatpush1.bf16.msra.mxu0 0
    %288 = vmatprep.subr.bf16.mxu0 0
    %289 = vmatpush1.bf16.msra.mxu0 0
    %290 = vmatprep.subr.bf16.mxu0 0
    %291 = vmatpush1.bf16.msra.mxu0 0
    %292 = vmatprep.subr.bf16.mxu0 0
    %293 = vmatpush1.bf16.msra.mxu0 0
    %294 = vmatprep.subr.bf16.mxu0 0
    %295 = vmatpush1.bf16.msra.mxu0 0
    %296 = vmatprep.subr.bf16.mxu0 0
    %297 = vmatpush1.bf16.msra.mxu0 0
    %298 = vmatprep.subr.bf16.mxu0 0
    %299 = vmatpush1.bf16.msra.mxu0 0
    %300 = vmatprep.subr.bf16.mxu0 0
    %301 = vmatpush1.bf16.msra.mxu0 0
    %302 = vmatprep.subr.bf16.mxu0 0
    %303 = vmatpush1.bf16.msra.mxu0 0
    %304 = vmatprep.subr.bf16.mxu0 0
    %305 = vmatpush1.bf16.msra.mxu0 0
    %306 = vmatprep.subr.bf16.mxu0 0
    %307 = vmatpush1.bf16.msra.mxu0 0
    %308 = vmatprep.subr.bf16.mxu0 0
    %309 = vmatpush1.bf16.msra.mxu0 0
    %310 = vmatprep.subr.bf16.mxu0 0
    %311 = vmatpush1.bf16.msra.mxu0 0
    %312 = vmatprep.mubr.bf16.mxu0 0
    %313 = vmatmul.mubr.bf16.gmra.mrb[0].mxu0 %v237
    %v314 = vpop.f32.mrb[0].mxu0
    %v315 = vadd.f32 0.0, %v314
    %v316 = vpop.f32.mrb[0].mxu0
    %v317 = vpop.f32.mrb[0].mxu0
    %v318 = vpop.f32.mrb[0].mxu0
    %319 = vdwg.mxu0
    %v336 = vunpack.c.l.b16 %v179
    %v337 = vunpack.c.h.b16 %v179
    %v338 = vunpack.c.l.b16 %v180
    %v339 = vunpack.c.l.b16 %v181
    %v340 = vunpack.c.h.b16 %v181
    %v341 = vunpack.c.l.b16 %v182
    %v342 = vunpack.c.l.b16 %v183
    %v343 = vunpack.c.h.b16 %v183
    %v344 = vunpack.c.l.b16 %v184
    %v345 = vunpack.c.l.b16 %v185
    %v346 = vunpack.c.h.b16 %v185
    %v347 = vunpack.c.l.b16 %v186
    %v348 = vunpack.c.l.b16 %v187
    %v349 = vunpack.c.h.b16 %v187
    %v350 = vunpack.c.l.b16 %v188
    %v351 = vunpack.c.l.b16 %v189
    %v352 = vunpack.c.h.b16 %v189
    %v353 = vunpack.c.l.b16 %v190
    %v354 = vunpack.c.l.b16 %v191
    %v355 = vunpack.c.h.b16 %v191
    %v356 = vunpack.c.l.b16 %v192
    %v357 = vunpack.c.l.b16 %v193
    %v358 = vunpack.c.h.b16 %v193
    %v359 = vunpack.c.l.b16 %v194
    %v360 = vpack.c.b16 %v339, %v336
    %v361 = vpack.c.b16 %v340, %v337
    %v362 = vpack.c.b16 %v341, %v338
    %v363 = vpack.c.b16 %v345, %v342
    %v364 = vpack.c.b16 %v346, %v343
    %v365 = vpack.c.b16 %v347, %v344
    %v366 = vpack.c.b16 %v351, %v348
    %v367 = vpack.c.b16 %v352, %v349
    %v368 = vpack.c.b16 %v353, %v350
    %v369 = vpack.c.b16 %v357, %v354
    %v370 = vpack.c.b16 %v358, %v355
    %v371 = vpack.c.b16 %v359, %v356
    %vm384 = vcmask 523264
    %v386 = vsel %vm384, %v178, 0
    %388 = vmatprep.subr.bf16.mxu0 %v361
    %389 = vmatpush1.bf16.msra.mxu0 %v360
    %390 = vmatprep.subr.bf16.mxu0 %v364
    %391 = vmatpush1.bf16.msra.mxu0 %v363
    %392 = vmatprep.subr.bf16.mxu0 %v367
    %393 = vmatpush1.bf16.msra.mxu0 %v366
    %394 = vmatprep.subr.bf16.mxu0 %v370
    %395 = vmatpush1.bf16.msra.mxu0 %v369
    %396 = vmatprep.subr.bf16.mxu0 0
    %397 = vmatpush1.bf16.msra.mxu0 0
    %398 = vmatprep.subr.bf16.mxu0 0
    %399 = vmatpush1.bf16.msra.mxu0 0
    %400 = vmatprep.subr.bf16.mxu0 0
    %401 = vmatpush1.bf16.msra.mxu0 0
    %402 = vmatprep.subr.bf16.mxu0 0
    %403 = vmatpush1.bf16.msra.mxu0 0
    %404 = vmatprep.subr.bf16.mxu0 0
    %405 = vmatpush1.bf16.msra.mxu0 0
    %406 = vmatprep.subr.bf16.mxu0 0
    %407 = vmatpush1.bf16.msra.mxu0 0
    %408 = vmatprep.subr.bf16.mxu0 0
    %409 = vmatpush1.bf16.msra.mxu0 0
    %410 = vmatprep.subr.bf16.mxu0 0
    %411 = vmatpush1.bf16.msra.mxu0 0
    %412 = vmatprep.subr.bf16.mxu0 0
    %413 = vmatpush1.bf16.msra.mxu0 0
    %414 = vmatprep.subr.bf16.mxu0 0
    %415 = vmatpush1.bf16.msra.mxu0 0
    %416 = vmatprep.subr.bf16.mxu0 0
    %417 = vmatpush1.bf16.msra.mxu0 0
    %418 = vmatprep.subr.bf16.mxu0 0
    %419 = vmatpush1.bf16.msra.mxu0 0
    %420 = vmatprep.mubr.bf16.mxu0 0
    %421 = vmatmul.mubr.bf16.gmra.mrb[0].mxu0 %v386
    %v422 = vpop.f32.mrb[0].mxu0
    %v423 = vadd.f32 %v274, %v422
    %v424 = vpop.f32.mrb[0].mxu0
    %v425 = vadd.f32 %v276, %v424
    %v426 = vpop.f32.mrb[0].mxu0
    %v427 = vpop.f32.mrb[0].mxu0
    %428 = vdwg.mxu0
    %429 = vmatprep.subr.bf16.mxu0 0
    %430 = vmatpush1.bf16.msra.mxu0 %v362
    %431 = vmatprep.subr.bf16.mxu0 0
    %432 = vmatpush1.bf16.msra.mxu0 %v365
    %433 = vmatprep.subr.bf16.mxu0 0
    %434 = vmatpush1.bf16.msra.mxu0 %v368
    %435 = vmatprep.subr.bf16.mxu0 0
    %436 = vmatpush1.bf16.msra.mxu0 %v371
    %437 = vmatprep.subr.bf16.mxu0 0
    %438 = vmatpush1.bf16.msra.mxu0 0
    %439 = vmatprep.subr.bf16.mxu0 0
    %440 = vmatpush1.bf16.msra.mxu0 0
    %441 = vmatprep.subr.bf16.mxu0 0
    %442 = vmatpush1.bf16.msra.mxu0 0
    %443 = vmatprep.subr.bf16.mxu0 0
    %444 = vmatpush1.bf16.msra.mxu0 0
    %445 = vmatprep.subr.bf16.mxu0 0
    %446 = vmatpush1.bf16.msra.mxu0 0
    %447 = vmatprep.subr.bf16.mxu0 0
    %448 = vmatpush1.bf16.msra.mxu0 0
    %449 = vmatprep.subr.bf16.mxu0 0
    %450 = vmatpush1.bf16.msra.mxu0 0
    %451 = vmatprep.subr.bf16.mxu0 0
    %452 = vmatpush1.bf16.msra.mxu0 0
    %453 = vmatprep.subr.bf16.mxu0 0
    %454 = vmatpush1.bf16.msra.mxu0 0
    %455 = vmatprep.subr.bf16.mxu0 0
    %456 = vmatpush1.bf16.msra.mxu0 0
    %457 = vmatprep.subr.bf16.mxu0 0
    %458 = vmatpush1.bf16.msra.mxu0 0
    %459 = vmatprep.subr.bf16.mxu0 0
    %460 = vmatpush1.bf16.msra.mxu0 0
    %461 = vmatprep.mubr.bf16.mxu0 0
    %462 = vmatmul.mubr.bf16.gmra.mrb[0].mxu0 %v386
    %v463 = vpop.f32.mrb[0].mxu0
    %v464 = vadd.f32 %v315, %v463
    %v465 = vpop.f32.mrb[0].mxu0
    %v466 = vpop.f32.mrb[0].mxu0
    %v467 = vpop.f32.mrb[0].mxu0
    %468 = vdwg.mxu0
    %v469 = vpack.c.bf16 %v423, %v423
    %v470 = vpack.c.bf16 %v425, %v425
    %v471 = vpack.c.bf16 %v464, %v464
    %v475 = vunpack.c.l.b16 %v469
    %v476 = vunpack.c.l.b16 %v470
    %v477 = vunpack.c.l.b16 %v471
    %v478 = vpack.c.b16 %v476, %v475
    %v479 = vpack.c.b16 %v477, %v477
    %482 = vst [vmem:[%s6] sm:$0xff] %v478
    %483 = vst [vmem:[%s6 + $0x8] sm:$0xf] %v479
    // Predicated region
    $region46: #{fcn_forward.9} parent=1 // pred_check
      _
    $region47: #{fcn_forward.9} parent=1 // pred_check_branch
      %485 = sbr.rel (0) target = $region49
    $region48: #{fcn_forward.9} parent=1 // pred_region
      _
    $region49: #{fcn_forward.9} parent=1 // pred_fallthru
      _
    // Predicated region
    $region50: #{fcn_forward.9} parent=1 // pred_check
      _
    $region51: #{fcn_forward.9} parent=1 // pred_check_branch
      %487 = sbr.rel (0) target = $region53
    $region52: #{fcn_forward.9} parent=1 // pred_region
      _
    $region53: #{fcn_forward.9} parent=1 // pred_fallthru
      _
    %488 = vsyncpa [#allocation3], 1
    %489 = vsyncpa [#allocation5], 1
    %490 = vsyncpa [#allocation8], 1

// kernel: fcn_forward.10
$region0: #{fcn_forward.10}
  #allocation0 [shape = 'u32[]', space=smem, size = 0x4, offset = 0x4, fixed_abs, tag = 'smem constant byte address 0x4 - core index']
  #allocation1 [shape = 'u32[144,128]{1,0:T(1,128)}', space=vmem, size = 0x12000, scoped, tag = 'internal scratch']
  %s0 = inlined_call_operand.vmem [shape: bf16[32,96], index: 0, kind: input, shape index: {}]
  %s1 = inlined_call_operand.vmem [shape: bf16[32,17], index: 1, kind: input, shape index: {}]
  %s2 = inlined_call_operand.vmem [shape: f32[2,96], index: 2, kind: input, shape index: {}]
  %s3 = inlined_call_operand.vmem [shape: f32[2,17], index: 3, kind: input, shape index: {}]
  %s4 = inlined_call_operand.vmem [shape: bf16[96,452], index: 4, kind: input, shape index: {}]
  %s5 = inlined_call_operand.vmem [shape: bf16[17,452], index: 5, kind: input, shape index: {}]
  %s6 = inlined_call_operand.vmem [shape: bf16[32,452], index: 6, kind: output, shape index: {}]
  %s7 = sld [smem:[#allocation0]]
  $region34: #{fcn_forward.10} parent=0
    _
  %s9 = ssub.s32 1, %s7
  %s10 = scalar_select 0, %s9, %s7
  // Predicated region
  $region2: #{fcn_forward.10} parent=0 // pred_check
    _
  $region3: #{fcn_forward.10} parent=0 // pred_check_branch
    %12 = sbr.rel (0) target = $region5
  $region4: #{fcn_forward.10} parent=0 // pred_region
    _
  $region5: #{fcn_forward.10} parent=0 // pred_fallthru
    _
  // Predicated region
  $region6: #{fcn_forward.10} parent=0 // pred_check
    _
  $region7: #{fcn_forward.10} parent=0 // pred_check_branch
    %14 = sbr.rel (0) target = $region9
  $region8: #{fcn_forward.10} parent=0 // pred_region
    _
  $region9: #{fcn_forward.10} parent=0 // pred_fallthru
    _
  // Predicated region
  $region10: #{fcn_forward.10} parent=0 // pred_check
    _
  $region11: #{fcn_forward.10} parent=0 // pred_check_branch
    %16 = sbr.rel (0) target = $region13
  $region12: #{fcn_forward.10} parent=0 // pred_region
    _
  $region13: #{fcn_forward.10} parent=0 // pred_fallthru
    _
  // Predicated region
  $region14: #{fcn_forward.10} parent=0 // pred_check
    _
  $region15: #{fcn_forward.10} parent=0 // pred_check_branch
    %18 = sbr.rel (0) target = $region17
  $region16: #{fcn_forward.10} parent=0 // pred_region
    _
  $region17: #{fcn_forward.10} parent=0 // pred_fallthru
    _
  // Predicated region
  $region18: #{fcn_forward.10} parent=0 // pred_check
    _
  $region19: #{fcn_forward.10} parent=0 // pred_check_branch
    %20 = sbr.rel (0) target = $region21
  $region20: #{fcn_forward.10} parent=0 // pred_region
    _
  $region21: #{fcn_forward.10} parent=0 // pred_fallthru
    _
  // Predicated region
  $region22: #{fcn_forward.10} parent=0 // pred_check
    _
  $region23: #{fcn_forward.10} parent=0 // pred_check_branch
    %22 = sbr.rel (0) target = $region25
  $region24: #{fcn_forward.10} parent=0 // pred_region
    _
  $region25: #{fcn_forward.10} parent=0 // pred_fallthru
    _
  %v24 = vld [vmem:[%s0] sm:$0xf]
  %v25 = vld [vmem:[%s0 + $0x4] sm:$0xf]
  %v26 = vld [vmem:[%s0 + $0x8] sm:$0xf]
  %v27 = vld [vmem:[%s0 + $0xc] sm:$0xf]
  %v28 = vunpack.c.l.bf16 %v24
  %v29 = vunpack.c.l.bf16 %v25
  %v30 = vunpack.c.l.bf16 %v26
  %v31 = vunpack.c.l.bf16 %v27
  %v32 = vld [vmem:[%s1] sm:$0xf]
  %v33 = vld [vmem:[%s1 + $0x4] sm:$0xf]
  %v34 = vld [vmem:[%s1 + $0x8] sm:$0xf]
  %v35 = vld [vmem:[%s1 + $0xc] sm:$0xf]
  %v36 = vunpack.c.l.bf16 %v32
  %v37 = vunpack.c.l.bf16 %v33
  %v38 = vunpack.c.l.bf16 %v34
  %v39 = vunpack.c.l.bf16 %v35
  %v40 = vld [vmem:[%s2] sm:$0x1]
  %v41 = vlaneseq
  %v42 = vshrl.u32 %v41, 7
  %v43 = vsub.s32 0, %v42
  %v44 = vrot.slane %v40, %v43
  %v45 = vmul.f32 %v28, %v44
  %v46 = vmul.f32 %v29, %v44
  %v47 = vmul.f32 %v30, %v44
  %v48 = vmul.f32 %v31, %v44
  %v49 = vld [vmem:[%s2 + $0x1] sm:$0x1]
  %v50 = vlaneseq
  %v51 = vshrl.u32 %v50, 7
  %v52 = vsub.s32 0, %v51
  %v53 = vrot.slane %v49, %v52
  %v54 = vadd.f32 %v45, %v53
  %v55 = vadd.f32 %v46, %v53
  %v56 = vadd.f32 %v47, %v53
  %v57 = vadd.f32 %v48, %v53
  %v58 = vmax.f32 %v54, 0.0
  %v59 = vmax.f32 %v55, 0.0
  %v60 = vmax.f32 %v56, 0.0
  %v61 = vmax.f32 %v57, 0.0
  %v62 = vld [vmem:[%s3] sm:$0x1]
  %v63 = vlaneseq
  %v64 = vshrl.u32 %v63, 7
  %v65 = vsub.s32 0, %v64
  %v66 = vrot.slane %v62, %v65
  %v67 = vmul.f32 %v36, %v66
  %v68 = vmul.f32 %v37, %v66
  %v69 = vmul.f32 %v38, %v66
  %v70 = vmul.f32 %v39, %v66
  %v71 = vld [vmem:[%s3 + $0x1] sm:$0x1]
  %v72 = vlaneseq
  %v73 = vshrl.u32 %v72, 7
  %v74 = vsub.s32 0, %v73
  %v75 = vrot.slane %v71, %v74
  %v76 = vadd.f32 %v67, %v75
  %v77 = vadd.f32 %v68, %v75
  %v78 = vadd.f32 %v69, %v75
  %v79 = vadd.f32 %v70, %v75
  %v80 = vmax.f32 %v76, 0.0
  %v81 = vmax.f32 %v77, 0.0
  %v82 = vmax.f32 %v78, 0.0
  %v83 = vmax.f32 %v79, 0.0
  %v84 = vpack.c.bf16 %v59, %v58
  %v85 = vpack.c.bf16 %v61, %v60
  %v86 = vld [vmem:[%s4] sm:$0xff]
  %v87 = vld [vmem:[%s4 + $0x8] sm:$0xff]
  %v88 = vld [vmem:[%s4 + $0x10] sm:$0xff]
  %v89 = vld [vmem:[%s4 + $0x18] sm:$0xff]
  %v90 = vld [vmem:[%s4 + $0x20] sm:$0xff]
  %v91 = vld [vmem:[%s4 + $0x28] sm:$0xff]
  %v92 = vld [vmem:[%s4 + $0x30] sm:$0xff]
  %v93 = vld [vmem:[%s4 + $0x38] sm:$0xff]
  %v94 = vld [vmem:[%s4 + $0x40] sm:$0xff]
  %v95 = vld [vmem:[%s4 + $0x48] sm:$0xff]
  %v96 = vld [vmem:[%s4 + $0x50] sm:$0xff]
  %v97 = vld [vmem:[%s4 + $0x58] sm:$0xff]
  %v98 = vld [vmem:[%s4 + $0x60] sm:$0xff]
  %v99 = vld [vmem:[%s4 + $0x68] sm:$0xff]
  %v100 = vld [vmem:[%s4 + $0x70] sm:$0xff]
  %v101 = vld [vmem:[%s4 + $0x78] sm:$0xff]
  %v102 = vld [vmem:[%s4 + $0x80] sm:$0xff]
  %v103 = vld [vmem:[%s4 + $0x88] sm:$0xff]
  %v104 = vld [vmem:[%s4 + $0x90] sm:$0xff]
  %v105 = vld [vmem:[%s4 + $0x98] sm:$0xff]
  %v106 = vld [vmem:[%s4 + $0xa0] sm:$0xff]
  %v107 = vld [vmem:[%s4 + $0xa8] sm:$0xff]
  %v108 = vld [vmem:[%s4 + $0xb0] sm:$0xff]
  %v109 = vld [vmem:[%s4 + $0xb8] sm:$0xff]
  %v110 = vpack.c.bf16 %v81, %v80
  %v111 = vpack.c.bf16 %v83, %v82
  %v112 = vld [vmem:[%s5] sm:$0xff]
  %v113 = vld [vmem:[%s5 + $0x8] sm:$0xff]
  %v114 = vld [vmem:[%s5 + $0x10] sm:$0xff]
  %v115 = vld [vmem:[%s5 + $0x18] sm:$0xff]
  %v116 = vld [vmem:[%s5 + $0x20] sm:$0x11]
  %v117 = vld [vmem:[%s5 + $0x28] sm:$0x11]
  %v124 = vunpack.c.l.b16 %v112
  %v125 = vunpack.c.h.b16 %v112
  %v126 = vunpack.c.l.b16 %v113
  %v127 = vunpack.c.h.b16 %v113
  %v128 = vunpack.c.l.b16 %v114
  %v129 = vunpack.c.h.b16 %v114
  %v130 = vunpack.c.l.b16 %v115
  %v131 = vunpack.c.h.b16 %v115
  %v132 = vunpack.c.l.b16 %v116
  %v133 = vunpack.c.h.b16 %v116
  %v134 = vunpack.c.l.b16 %v117
  %v135 = vunpack.c.h.b16 %v117
  %v136 = vpack.c.b16 %v128, %v124
  %v137 = vpack.c.b16 %v129, %v125
  %v138 = vpack.c.b16 %v130, %v126
  %v139 = vpack.c.b16 %v131, %v127
  %v140 = vpack.c.b16 %v132, %v132
  %v141 = vpack.c.b16 %v133, %v133
  %v142 = vpack.c.b16 %v134, %v134
  %v143 = vpack.c.b16 %v135, %v135
  %vm148 = vcmask 138240
  %v150 = vsel %vm148, %v110, 0
  %v153 = vsel %vm148, %v111, 0
  %vm155 = vcmask 1040384
  %v156 = vsel 0, 4294967295, 65535
  %v157 = vsel %vm155, %v156, 0
  %v159 = vand.u32 %v140, %v157
  %v162 = vand.u32 %v141, %v157
  %v165 = vand.u32 %v142, %v157
  %v168 = vand.u32 %v143, %v157
  %170 = vmatprep.subr.bf16.mxu0 %v137
  %171 = vmatpush1.bf16.msra.mxu0 %v136
  %172 = vmatprep.subr.bf16.mxu0 %v162
  %173 = vmatpush1.bf16.msra.mxu0 %v159
  %174 = vmatprep.subr.bf16.mxu0 0
  %175 = vmatpush1.bf16.msra.mxu0 0
  %176 = vmatprep.subr.bf16.mxu0 0
  %177 = vmatpush1.bf16.msra.mxu0 0
  %178 = vmatprep.subr.bf16.mxu0 0
  %179 = vmatpush1.bf16.msra.mxu0 0
  %180 = vmatprep.subr.bf16.mxu0 0
  %181 = vmatpush1.bf16.msra.mxu0 0
  %182 = vmatprep.subr.bf16.mxu0 0
  %183 = vmatpush1.bf16.msra.mxu0 0
  %184 = vmatprep.subr.bf16.mxu0 0
  %185 = vmatpush1.bf16.msra.mxu0 0
  %186 = vmatprep.subr.bf16.mxu0 0
  %187 = vmatpush1.bf16.msra.mxu0 0
  %188 = vmatprep.subr.bf16.mxu0 0
  %189 = vmatpush1.bf16.msra.mxu0 0
  %190 = vmatprep.subr.bf16.mxu0 0
  %191 = vmatpush1.bf16.msra.mxu0 0
  %192 = vmatprep.subr.bf16.mxu0 0
  %193 = vmatpush1.bf16.msra.mxu0 0
  %194 = vmatprep.subr.bf16.mxu0 0
  %195 = vmatpush1.bf16.msra.mxu0 0
  %196 = vmatprep.subr.bf16.mxu0 0
  %197 = vmatpush1.bf16.msra.mxu0 0
  %198 = vmatprep.subr.bf16.mxu0 0
  %199 = vmatpush1.bf16.msra.mxu0 0
  %200 = vmatprep.subr.bf16.mxu0 0
  %201 = vmatpush1.bf16.msra.mxu0 0
  %202 = vmatprep.mubr.bf16.mxu0 0
  %203 = vmatmul.mubr.bf16.gmra.mrb[0].mxu0 %v150
  %v204 = vpop.f32.mrb[0].mxu0
  %v205 = vadd.f32 0.0, %v204
  %v206 = vpop.f32.mrb[0].mxu0
  %v207 = vadd.f32 0.0, %v206
  %v208 = vpop.f32.mrb[0].mxu0
  %v209 = vadd.f32 0.0, %v208
  %v210 = vpop.f32.mrb[0].mxu0
  %v211 = vadd.f32 0.0, %v210
  %212 = vmatprep.mubr.bf16.mxu0 0
  %213 = vmatmul.mubr.bf16.gmra.mrb[0].mxu0 %v153
  %v214 = vpop.f32.mrb[0].mxu0
  %v215 = vadd.f32 0.0, %v214
  %v216 = vpop.f32.mrb[0].mxu0
  %v217 = vadd.f32 0.0, %v216
  %v218 = vpop.f32.mrb[0].mxu0
  %v219 = vadd.f32 0.0, %v218
  %v220 = vpop.f32.mrb[0].mxu0
  %v221 = vadd.f32 0.0, %v220
  %222 = vdwg.mxu0
  %223 = vmatprep.subr.bf16.mxu0 %v139
  %224 = vmatpush1.bf16.msra.mxu0 %v138
  %225 = vmatprep.subr.bf16.mxu0 %v168
  %226 = vmatpush1.bf16.msra.mxu0 %v165
  %227 = vmatprep.subr.bf16.mxu0 0
  %228 = vmatpush1.bf16.msra.mxu0 0
  %229 = vmatprep.subr.bf16.mxu0 0
  %230 = vmatpush1.bf16.msra.mxu0 0
  %231 = vmatprep.subr.bf16.mxu0 0
  %232 = vmatpush1.bf16.msra.mxu0 0
  %233 = vmatprep.subr.bf16.mxu0 0
  %234 = vmatpush1.bf16.msra.mxu0 0
  %235 = vmatprep.subr.bf16.mxu0 0
  %236 = vmatpush1.bf16.msra.mxu0 0
  %237 = vmatprep.subr.bf16.mxu0 0
  %238 = vmatpush1.bf16.msra.mxu0 0
  %239 = vmatprep.subr.bf16.mxu0 0
  %240 = vmatpush1.bf16.msra.mxu0 0
  %241 = vmatprep.subr.bf16.mxu0 0
  %242 = vmatpush1.bf16.msra.mxu0 0
  %243 = vmatprep.subr.bf16.mxu0 0
  %244 = vmatpush1.bf16.msra.mxu0 0
  %245 = vmatprep.subr.bf16.mxu0 0
  %246 = vmatpush1.bf16.msra.mxu0 0
  %247 = vmatprep.subr.bf16.mxu0 0
  %248 = vmatpush1.bf16.msra.mxu0 0
  %249 = vmatprep.subr.bf16.mxu0 0
  %250 = vmatpush1.bf16.msra.mxu0 0
  %251 = vmatprep.subr.bf16.mxu0 0
  %252 = vmatpush1.bf16.msra.mxu0 0
  %253 = vmatprep.subr.bf16.mxu0 0
  %254 = vmatpush1.bf16.msra.mxu0 0
  %255 = vmatprep.mubr.bf16.mxu0 0
  %256 = vmatmul.mubr.bf16.gmra.mrb[0].mxu0 %v150
  %v257 = vpop.f32.mrb[0].mxu0
  %v258 = vadd.f32 0.0, %v257
  %v259 = vpop.f32.mrb[0].mxu0
  %v260 = vadd.f32 0.0, %v259
  %v261 = vpop.f32.mrb[0].mxu0
  %v262 = vadd.f32 0.0, %v261
  %v263 = vpop.f32.mrb[0].mxu0
  %v264 = vadd.f32 0.0, %v263
  %265 = vmatprep.mubr.bf16.mxu0 0
  %266 = vmatmul.mubr.bf16.gmra.mrb[0].mxu0 %v153
  %v267 = vpop.f32.mrb[0].mxu0
  %v268 = vadd.f32 0.0, %v267
  %v269 = vpop.f32.mrb[0].mxu0
  %v270 = vadd.f32 0.0, %v269
  %v271 = vpop.f32.mrb[0].mxu0
  %v272 = vadd.f32 0.0, %v271
  %v273 = vpop.f32.mrb[0].mxu0
  %v274 = vadd.f32 0.0, %v273
  %275 = vdwg.mxu0
  %v300 = vunpack.c.l.b16 %v86
  %v301 = vunpack.c.h.b16 %v86
  %v302 = vunpack.c.l.b16 %v87
  %v303 = vunpack.c.h.b16 %v87
  %v304 = vunpack.c.l.b16 %v88
  %v305 = vunpack.c.h.b16 %v88
  %v306 = vunpack.c.l.b16 %v89
  %v307 = vunpack.c.h.b16 %v89
  %v308 = vunpack.c.l.b16 %v90
  %v309 = vunpack.c.h.b16 %v90
  %v310 = vunpack.c.l.b16 %v91
  %v311 = vunpack.c.h.b16 %v91
  %v312 = vunpack.c.l.b16 %v92
  %v313 = vunpack.c.h.b16 %v92
  %v314 = vunpack.c.l.b16 %v93
  %v315 = vunpack.c.h.b16 %v93
  %v316 = vunpack.c.l.b16 %v94
  %v317 = vunpack.c.h.b16 %v94
  %v318 = vunpack.c.l.b16 %v95
  %v319 = vunpack.c.h.b16 %v95
  %v320 = vunpack.c.l.b16 %v96
  %v321 = vunpack.c.h.b16 %v96
  %v322 = vunpack.c.l.b16 %v97
  %v323 = vunpack.c.h.b16 %v97
  %v324 = vunpack.c.l.b16 %v98
  %v325 = vunpack.c.h.b16 %v98
  %v326 = vunpack.c.l.b16 %v99
  %v327 = vunpack.c.h.b16 %v99
  %v328 = vunpack.c.l.b16 %v100
  %v329 = vunpack.c.h.b16 %v100
  %v330 = vunpack.c.l.b16 %v101
  %v331 = vunpack.c.h.b16 %v101
  %v332 = vunpack.c.l.b16 %v102
  %v333 = vunpack.c.h.b16 %v102
  %v334 = vunpack.c.l.b16 %v103
  %v335 = vunpack.c.h.b16 %v103
  %v336 = vunpack.c.l.b16 %v104
  %v337 = vunpack.c.h.b16 %v104
  %v338 = vunpack.c.l.b16 %v105
  %v339 = vunpack.c.h.b16 %v105
  %v340 = vunpack.c.l.b16 %v106
  %v341 = vunpack.c.h.b16 %v106
  %v342 = vunpack.c.l.b16 %v107
  %v343 = vunpack.c.h.b16 %v107
  %v344 = vunpack.c.l.b16 %v108
  %v345 = vunpack.c.h.b16 %v108
  %v346 = vunpack.c.l.b16 %v109
  %v347 = vunpack.c.h.b16 %v109
  %v348 = vpack.c.b16 %v304, %v300
  %v349 = vpack.c.b16 %v305, %v301
  %v350 = vpack.c.b16 %v306, %v302
  %v351 = vpack.c.b16 %v307, %v303
  %v352 = vpack.c.b16 %v312, %v308
  %v353 = vpack.c.b16 %v313, %v309
  %v354 = vpack.c.b16 %v314, %v310
  %v355 = vpack.c.b16 %v315, %v311
  %v356 = vpack.c.b16 %v320, %v316
  %v357 = vpack.c.b16 %v321, %v317
  %v358 = vpack.c.b16 %v322, %v318
  %v359 = vpack.c.b16 %v323, %v319
  %v360 = vpack.c.b16 %v328, %v324
  %v361 = vpack.c.b16 %v329, %v325
  %v362 = vpack.c.b16 %v330, %v326
  %v363 = vpack.c.b16 %v331, %v327
  %v364 = vpack.c.b16 %v336, %v332
  %v365 = vpack.c.b16 %v337, %v333
  %v366 = vpack.c.b16 %v338, %v334
  %v367 = vpack.c.b16 %v339, %v335
  %v368 = vpack.c.b16 %v344, %v340
  %v369 = vpack.c.b16 %v345, %v341
  %v370 = vpack.c.b16 %v346, %v342
  %v371 = vpack.c.b16 %v347, %v343
  %vm396 = vcmask 785408
  %v398 = vsel %vm396, %v84, 0
  %v401 = vsel %vm396, %v85, 0
  %403 = vmatprep.subr.bf16.mxu0 %v349
  %404 = vmatpush1.bf16.msra.mxu0 %v348
  %405 = vmatprep.subr.bf16.mxu0 %v353
  %406 = vmatpush1.bf16.msra.mxu0 %v352
  %407 = vmatprep.subr.bf16.mxu0 %v357
  %408 = vmatpush1.bf16.msra.mxu0 %v356
  %409 = vmatprep.subr.bf16.mxu0 %v361
  %410 = vmatpush1.bf16.msra.mxu0 %v360
  %411 = vmatprep.subr.bf16.mxu0 %v365
  %412 = vmatpush1.bf16.msra.mxu0 %v364
  %413 = vmatprep.subr.bf16.mxu0 %v369
  %414 = vmatpush1.bf16.msra.mxu0 %v368
  %415 = vmatprep.subr.bf16.mxu0 0
  %416 = vmatpush1.bf16.msra.mxu0 0
  %417 = vmatprep.subr.bf16.mxu0 0
  %418 = vmatpush1.bf16.msra.mxu0 0
  %419 = vmatprep.subr.bf16.mxu0 0
  %420 = vmatpush1.bf16.msra.mxu0 0
  %421 = vmatprep.subr.bf16.mxu0 0
  %422 = vmatpush1.bf16.msra.mxu0 0
  %423 = vmatprep.subr.bf16.mxu0 0
  %424 = vmatpush1.bf16.msra.mxu0 0
  %425 = vmatprep.subr.bf16.mxu0 0
  %426 = vmatpush1.bf16.msra.mxu0 0
  %427 = vmatprep.subr.bf16.mxu0 0
  %428 = vmatpush1.bf16.msra.mxu0 0
  %429 = vmatprep.subr.bf16.mxu0 0
  %430 = vmatpush1.bf16.msra.mxu0 0
  %431 = vmatprep.subr.bf16.mxu0 0
  %432 = vmatpush1.bf16.msra.mxu0 0
  %433 = vmatprep.subr.bf16.mxu0 0
  %434 = vmatpush1.bf16.msra.mxu0 0
  %435 = vmatprep.mubr.bf16.mxu0 0
  %436 = vmatmul.mubr.bf16.gmra.mrb[0].mxu0 %v398
  %v437 = vpop.f32.mrb[0].mxu0
  %v438 = vadd.f32 %v205, %v437
  %v439 = vpop.f32.mrb[0].mxu0
  %v440 = vadd.f32 %v207, %v439
  %v441 = vpop.f32.mrb[0].mxu0
  %v442 = vadd.f32 %v209, %v441
  %v443 = vpop.f32.mrb[0].mxu0
  %v444 = vadd.f32 %v211, %v443
  %445 = vmatprep.mubr.bf16.mxu0 0
  %446 = vmatmul.mubr.bf16.gmra.mrb[0].mxu0 %v401
  %v447 = vpop.f32.mrb[0].mxu0
  %v448 = vadd.f32 %v215, %v447
  %v449 = vpop.f32.mrb[0].mxu0
  %v450 = vadd.f32 %v217, %v449
  %v451 = vpop.f32.mrb[0].mxu0
  %v452 = vadd.f32 %v219, %v451
  %v453 = vpop.f32.mrb[0].mxu0
  %v454 = vadd.f32 %v221, %v453
  %455 = vdwg.mxu0
  %456 = vmatprep.subr.bf16.mxu0 %v351
  %457 = vmatpush1.bf16.msra.mxu0 %v350
  %458 = vmatprep.subr.bf16.mxu0 %v355
  %459 = vmatpush1.bf16.msra.mxu0 %v354
  %460 = vmatprep.subr.bf16.mxu0 %v359
  %461 = vmatpush1.bf16.msra.mxu0 %v358
  %462 = vmatprep.subr.bf16.mxu0 %v363
  %463 = vmatpush1.bf16.msra.mxu0 %v362
  %464 = vmatprep.subr.bf16.mxu0 %v367
  %465 = vmatpush1.bf16.msra.mxu0 %v366
  %466 = vmatprep.subr.bf16.mxu0 %v371
  %467 = vmatpush1.bf16.msra.mxu0 %v370
  %468 = vmatprep.subr.bf16.mxu0 0
  %469 = vmatpush1.bf16.msra.mxu0 0
  %470 = vmatprep.subr.bf16.mxu0 0
  %471 = vmatpush1.bf16.msra.mxu0 0
  %472 = vmatprep.subr.bf16.mxu0 0
  %473 = vmatpush1.bf16.msra.mxu0 0
  %474 = vmatprep.subr.bf16.mxu0 0
  %475 = vmatpush1.bf16.msra.mxu0 0
  %476 = vmatprep.subr.bf16.mxu0 0
  %477 = vmatpush1.bf16.msra.mxu0 0
  %478 = vmatprep.subr.bf16.mxu0 0
  %479 = vmatpush1.bf16.msra.mxu0 0
  %480 = vmatprep.subr.bf16.mxu0 0
  %481 = vmatpush1.bf16.msra.mxu0 0
  %482 = vmatprep.subr.bf16.mxu0 0
  %483 = vmatpush1.bf16.msra.mxu0 0
  %484 = vmatprep.subr.bf16.mxu0 0
  %485 = vmatpush1.bf16.msra.mxu0 0
  %486 = vmatprep.subr.bf16.mxu0 0
  %487 = vmatpush1.bf16.msra.mxu0 0
  %488 = vmatprep.mubr.bf16.mxu0 0
  %489 = vmatmul.mubr.bf16.gmra.mrb[0].mxu0 %v398
  %v490 = vpop.f32.mrb[0].mxu0
  %v491 = vadd.f32 %v258, %v490
  %v492 = vpop.f32.mrb[0].mxu0
  %v493 = vadd.f32 %v260, %v492
  %v494 = vpop.f32.mrb[0].mxu0
  %v495 = vadd.f32 %v262, %v494
  %v496 = vpop.f32.mrb[0].mxu0
  %v497 = vadd.f32 %v264, %v496
  %498 = vmatprep.mubr.bf16.mxu0 0
  %499 = vmatmul.mubr.bf16.gmra.mrb[0].mxu0 %v401
  %v500 = vpop.f32.mrb[0].mxu0
  %v501 = vadd.f32 %v268, %v500
  %v502 = vpop.f32.mrb[0].mxu0
  %v503 = vadd.f32 %v270, %v502
  %v504 = vpop.f32.mrb[0].mxu0
  %v505 = vadd.f32 %v272, %v504
  %v506 = vpop.f32.mrb[0].mxu0
  %v507 = vadd.f32 %v274, %v506
  %508 = vdwg.mxu0
  %v509 = vpack.c.bf16 %v442, %v438
  %v510 = vpack.c.bf16 %v444, %v440
  %v511 = vpack.c.bf16 %v495, %v491
  %v512 = vpack.c.bf16 %v497, %v493
  %v513 = vpack.c.bf16 %v452, %v448
  %v514 = vpack.c.bf16 %v454, %v450
  %v515 = vpack.c.bf16 %v505, %v501
  %v516 = vpack.c.bf16 %v507, %v503
  %v525 = vunpack.c.l.b16 %v509
  %v526 = vunpack.c.l.b16 %v510
  %v527 = vunpack.c.l.b16 %v511
  %v528 = vunpack.c.l.b16 %v512
  %v529 = vunpack.c.h.b16 %v509
  %v530 = vunpack.c.h.b16 %v510
  %v531 = vunpack.c.h.b16 %v511
  %v532 = vunpack.c.h.b16 %v512
  %v533 = vunpack.c.l.b16 %v513
  %v534 = vunpack.c.l.b16 %v514
  %v535 = vunpack.c.l.b16 %v515
  %v536 = vunpack.c.l.b16 %v516
  %v537 = vunpack.c.h.b16 %v513
  %v538 = vunpack.c.h.b16 %v514
  %v539 = vunpack.c.h.b16 %v515
  %v540 = vunpack.c.h.b16 %v516
  %v541 = vpack.c.b16 %v526, %v525
  %v542 = vpack.c.b16 %v528, %v527
  %v543 = vpack.c.b16 %v530, %v529
  %v544 = vpack.c.b16 %v532, %v531
  %v545 = vpack.c.b16 %v534, %v533
  %v546 = vpack.c.b16 %v536, %v535
  %v547 = vpack.c.b16 %v538, %v537
  %v548 = vpack.c.b16 %v540, %v539
  %557 = vst [vmem:[%s6] sm:$0xff] %v541
  %vm558 = vcmask 1043456
  %vm559 = vcmask 556036
  %vm560 = vmor %vm559, %vm558
  %561 = vst.msk [vmem:[%s6 + $0x8] sm:$0xff] %vm560, %v542
  %562 = vst [vmem:[%s6 + $0x10] sm:$0xff] %v543
  %563 = vst.msk [vmem:[%s6 + $0x18] sm:$0xff] %vm560, %v544
  %564 = vst [vmem:[%s6 + $0x20] sm:$0xff] %v545
  %565 = vst.msk [vmem:[%s6 + $0x28] sm:$0xff] %vm560, %v546
  %566 = vst [vmem:[%s6 + $0x30] sm:$0xff] %v547
  %567 = vst.msk [vmem:[%s6 + $0x38] sm:$0xff] %vm560, %v548
  // Predicated region
  $region26: #{fcn_forward.10} parent=0 // pred_check
    _
  $region27: #{fcn_forward.10} parent=0 // pred_check_branch
    %569 = sbr.rel (0) target = $region29
  $region28: #{fcn_forward.10} parent=0 // pred_region
    _
  $region29: #{fcn_forward.10} parent=0 // pred_fallthru
    _
  // Predicated region
  $region30: #{fcn_forward.10} parent=0 // pred_check
    _
  $region31: #{fcn_forward.10} parent=0 // pred_check_branch
    %571 = sbr.rel (0) target = $region33
  $region32: #{fcn_forward.10} parent=0 // pred_region
    _
  $region33: #{fcn_forward.10} parent=0 // pred_fallthru
    _

// kernel: fcn_forward.11
$region0: #{fcn_forward.11}
  #allocation0 [shape = 'u32[]', space=smem, size = 0x4, offset = 0x4, fixed_abs, tag = 'smem constant byte address 0x4 - core index']
  #allocation1 [shape = 'u32[144,128]{1,0:T(1,128)}', space=vmem, size = 0x12000, scoped, tag = 'internal scratch']
  %s0 = inlined_call_operand.vmem [shape: bf16[128,113], index: 0, kind: input, shape index: {}]
  %s1 = inlined_call_operand.vmem [shape: bf16[128,10], index: 1, kind: input, shape index: {}]
  %s2 = inlined_call_operand.vmem [shape: f32[2,113], index: 2, kind: input, shape index: {}]
  %s3 = inlined_call_operand.vmem [shape: f32[2,10], index: 3, kind: input, shape index: {}]
  %s4 = inlined_call_operand.vmem [shape: bf16[113,8], index: 4, kind: input, shape index: {}]
  %s5 = inlined_call_operand.vmem [shape: bf16[10,8], index: 5, kind: input, shape index: {}]
  %s6 = inlined_call_operand.vmem [shape: f32[2,8], index: 6, kind: input, shape index: {}]
  %s7 = inlined_call_operand.vmem [shape: bf16[8,512], index: 7, kind: input, shape index: {}]
  %s8 = inlined_call_operand.vmem [shape: f32[128,512], index: 8, kind: output, shape index: {}]
  %s9 = sld [smem:[#allocation0]]
  $region42: #{fcn_forward.11} parent=0
    _
  %s11 = ssub.s32 1, %s9
  %s12 = scalar_select 0, %s11, %s9
  // Predicated region
  $region2: #{fcn_forward.11} parent=0 // pred_check
    _
  $region3: #{fcn_forward.11} parent=0 // pred_check_branch
    %14 = sbr.rel (0) target = $region5
  $region4: #{fcn_forward.11} parent=0 // pred_region
    _
  $region5: #{fcn_forward.11} parent=0 // pred_fallthru
    _
  // Predicated region
  $region6: #{fcn_forward.11} parent=0 // pred_check
    _
  $region7: #{fcn_forward.11} parent=0 // pred_check_branch
    %16 = sbr.rel (0) target = $region9
  $region8: #{fcn_forward.11} parent=0 // pred_region
    _
  $region9: #{fcn_forward.11} parent=0 // pred_fallthru
    _
  // Predicated region
  $region10: #{fcn_forward.11} parent=0 // pred_check
    _
  $region11: #{fcn_forward.11} parent=0 // pred_check_branch
    %18 = sbr.rel (0) target = $region13
  $region12: #{fcn_forward.11} parent=0 // pred_region
    _
  $region13: #{fcn_forward.11} parent=0 // pred_fallthru
    _
  // Predicated region
  $region14: #{fcn_forward.11} parent=0 // pred_check
    _
  $region15: #{fcn_forward.11} parent=0 // pred_check_branch
    %20 = sbr.rel (0) target = $region17
  $region16: #{fcn_forward.11} parent=0 // pred_region
    _
  $region17: #{fcn_forward.11} parent=0 // pred_fallthru
    _
  // Predicated region
  $region18: #{fcn_forward.11} parent=0 // pred_check
    _
  $region19: #{fcn_forward.11} parent=0 // pred_check_branch
    %22 = sbr.rel (0) target = $region21
  $region20: #{fcn_forward.11} parent=0 // pred_region
    _
  $region21: #{fcn_forward.11} parent=0 // pred_fallthru
    _
  // Predicated region
  $region22: #{fcn_forward.11} parent=0 // pred_check
    _
  $region23: #{fcn_forward.11} parent=0 // pred_check_branch
    %24 = sbr.rel (0) target = $region25
  $region24: #{fcn_forward.11} parent=0 // pred_region
    _
  $region25: #{fcn_forward.11} parent=0 // pred_fallthru
    _
  // Predicated region
  $region26: #{fcn_forward.11} parent=0 // pred_check
    _
  $region27: #{fcn_forward.11} parent=0 // pred_check_branch
    %26 = sbr.rel (0) target = $region29
  $region28: #{fcn_forward.11} parent=0 // pred_region
    _
  $region29: #{fcn_forward.11} parent=0 // pred_fallthru
    _
  // Predicated region
  $region30: #{fcn_forward.11} parent=0 // pred_check
    _
  $region31: #{fcn_forward.11} parent=0 // pred_check_branch
    %28 = sbr.rel (0) target = $region33
  $region32: #{fcn_forward.11} parent=0 // pred_region
    _
  $region33: #{fcn_forward.11} parent=0 // pred_fallthru
    _
  %v30 = vld [vmem:[%s4] sm:$0xf]
  %v31 = vld [vmem:[%s4 + $0x4] sm:$0xf]
  %v32 = vld [vmem:[%s4 + $0x8] sm:$0xf]
  %v33 = vld [vmem:[%s4 + $0xc] sm:$0xf]
  %v34 = vld [vmem:[%s4 + $0x10] sm:$0xf]
  %v35 = vld [vmem:[%s4 + $0x14] sm:$0xf]
  %v36 = vld [vmem:[%s4 + $0x18] sm:$0xf]
  %v37 = vld [vmem:[%s4 + $0x1c] sm:$0xf]
  %v38 = vld [vmem:[%s4 + $0x20] sm:$0xf]
  %v39 = vld [vmem:[%s4 + $0x24] sm:$0xf]
  %v40 = vld [vmem:[%s4 + $0x28] sm:$0xf]
  %v41 = vld [vmem:[%s4 + $0x2c] sm:$0xf]
  %v42 = vld [vmem:[%s4 + $0x30] sm:$0xf]
  %v43 = vld [vmem:[%s4 + $0x34] sm:$0xf]
  %v44 = vld [vmem:[%s4 + $0x38] sm:$0x1]
  %v45 = vld [vmem:[%s5] sm:$0xf]
  %v46 = vld [vmem:[%s5 + $0x4] sm:$0x1]
  %v47 = vld [vmem:[%s7] sm:$0xff]
  %v48 = vld [vmem:[%s7 + $0x8] sm:$0xff]
  %v49 = vld [vmem:[%s2] sm:$0x1]
  %v50 = vld [vmem:[%s2 + $0x1] sm:$0x1]
  %v51 = vld [vmem:[%s3] sm:$0x1]
  %v52 = vld [vmem:[%s3 + $0x1] sm:$0x1]
  %v53 = vld [vmem:[%s6] sm:$0x1]
  %v54 = vld [vmem:[%s6 + $0x1] sm:$0x1]
  %v55 = vld [vmem:[%s0] sm:$0xf]
  %v56 = vld [vmem:[%s0 + $0x4] sm:$0xf]
  %v57 = vld [vmem:[%s0 + $0x8] sm:$0xf]
  %v58 = vld [vmem:[%s0 + $0xc] sm:$0xf]
  %v59 = vld [vmem:[%s0 + $0x10] sm:$0xf]
  %v60 = vld [vmem:[%s0 + $0x14] sm:$0xf]
  %v61 = vld [vmem:[%s0 + $0x18] sm:$0xf]
  %v62 = vld [vmem:[%s0 + $0x1c] sm:$0xf]
  %v63 = vld [vmem:[%s0 + $0x20] sm:$0xf]
  %v64 = vld [vmem:[%s0 + $0x24] sm:$0xf]
  %v65 = vld [vmem:[%s0 + $0x28] sm:$0xf]
  %v66 = vld [vmem:[%s0 + $0x2c] sm:$0xf]
  %v67 = vld [vmem:[%s0 + $0x30] sm:$0xf]
  %v68 = vld [vmem:[%s0 + $0x34] sm:$0xf]
  %v69 = vld [vmem:[%s0 + $0x38] sm:$0xf]
  %v70 = vld [vmem:[%s0 + $0x3c] sm:$0xf]
  %v71 = vunpack.c.l.bf16 %v55
  %v72 = vunpack.c.l.bf16 %v56
  %v73 = vunpack.c.l.bf16 %v57
  %v74 = vunpack.c.l.bf16 %v58
  %v75 = vunpack.c.l.bf16 %v59
  %v76 = vunpack.c.l.bf16 %v60
  %v77 = vunpack.c.l.bf16 %v61
  %v78 = vunpack.c.l.bf16 %v62
  %v79 = vunpack.c.l.bf16 %v63
  %v80 = vunpack.c.l.bf16 %v64
  %v81 = vunpack.c.l.bf16 %v65
  %v82 = vunpack.c.l.bf16 %v66
  %v83 = vunpack.c.l.bf16 %v67
  %v84 = vunpack.c.l.bf16 %v68
  %v85 = vunpack.c.l.bf16 %v69
  %v86 = vunpack.c.l.bf16 %v70
  %v87 = vld [vmem:[%s1] sm:$0xf]
  %v88 = vld [vmem:[%s1 + $0x4] sm:$0xf]
  %v89 = vld [vmem:[%s1 + $0x8] sm:$0xf]
  %v90 = vld [vmem:[%s1 + $0xc] sm:$0xf]
  %v91 = vld [vmem:[%s1 + $0x10] sm:$0xf]
  %v92 = vld [vmem:[%s1 + $0x14] sm:$0xf]
  %v93 = vld [vmem:[%s1 + $0x18] sm:$0xf]
  %v94 = vld [vmem:[%s1 + $0x1c] sm:$0xf]
  %v95 = vld [vmem:[%s1 + $0x20] sm:$0xf]
  %v96 = vld [vmem:[%s1 + $0x24] sm:$0xf]
  %v97 = vld [vmem:[%s1 + $0x28] sm:$0xf]
  %v98 = vld [vmem:[%s1 + $0x2c] sm:$0xf]
  %v99 = vld [vmem:[%s1 + $0x30] sm:$0xf]
  %v100 = vld [vmem:[%s1 + $0x34] sm:$0xf]
  %v101 = vld [vmem:[%s1 + $0x38] sm:$0xf]
  %v102 = vld [vmem:[%s1 + $0x3c] sm:$0xf]
  %v103 = vunpack.c.l.bf16 %v87
  %v104 = vunpack.c.l.bf16 %v88
  %v105 = vunpack.c.l.bf16 %v89
  %v106 = vunpack.c.l.bf16 %v90
  %v107 = vunpack.c.l.bf16 %v91
  %v108 = vunpack.c.l.bf16 %v92
  %v109 = vunpack.c.l.bf16 %v93
  %v110 = vunpack.c.l.bf16 %v94
  %v111 = vunpack.c.l.bf16 %v95
  %v112 = vunpack.c.l.bf16 %v96
  %v113 = vunpack.c.l.bf16 %v97
  %v114 = vunpack.c.l.bf16 %v98
  %v115 = vunpack.c.l.bf16 %v99
  %v116 = vunpack.c.l.bf16 %v100
  %v117 = vunpack.c.l.bf16 %v101
  %v118 = vunpack.c.l.bf16 %v102
  %v119 = vlaneseq
  %v120 = vshrl.u32 %v119, 7
  %v121 = vsub.s32 0, %v120
  %v122 = vrot.slane %v49, %v121
  %v123 = vmul.f32 %v71, %v122
  %v124 = vmul.f32 %v72, %v122
  %v125 = vmul.f32 %v73, %v122
  %v126 = vmul.f32 %v74, %v122
  %v127 = vmul.f32 %v75, %v122
  %v128 = vmul.f32 %v76, %v122
  %v129 = vmul.f32 %v77, %v122
  %v130 = vmul.f32 %v78, %v122
  %v131 = vmul.f32 %v79, %v122
  %v132 = vmul.f32 %v80, %v122
  %v133 = vmul.f32 %v81, %v122
  %v134 = vmul.f32 %v82, %v122
  %v135 = vmul.f32 %v83, %v122
  %v136 = vmul.f32 %v84, %v122
  %v137 = vmul.f32 %v85, %v122
  %v138 = vmul.f32 %v86, %v122
  %v139 = vlaneseq
  %v140 = vshrl.u32 %v139, 7
  %v141 = vsub.s32 0, %v140
  %v142 = vrot.slane %v50, %v141
  %v143 = vadd.f32 %v123, %v142
  %v144 = vadd.f32 %v124, %v142
  %v145 = vadd.f32 %v125, %v142
  %v146 = vadd.f32 %v126, %v142
  %v147 = vadd.f32 %v127, %v142
  %v148 = vadd.f32 %v128, %v142
  %v149 = vadd.f32 %v129, %v142
  %v150 = vadd.f32 %v130, %v142
  %v151 = vadd.f32 %v131, %v142
  %v152 = vadd.f32 %v132, %v142
  %v153 = vadd.f32 %v133, %v142
  %v154 = vadd.f32 %v134, %v142
  %v155 = vadd.f32 %v135, %v142
  %v156 = vadd.f32 %v136, %v142
  %v157 = vadd.f32 %v137, %v142
  %v158 = vadd.f32 %v138, %v142
  %v159 = vmax.f32 %v143, 0.0
  %v160 = vmax.f32 %v144, 0.0
  %v161 = vmax.f32 %v145, 0.0
  %v162 = vmax.f32 %v146, 0.0
  %v163 = vmax.f32 %v147, 0.0
  %v164 = vmax.f32 %v148, 0.0
  %v165 = vmax.f32 %v149, 0.0
  %v166 = vmax.f32 %v150, 0.0
  %v167 = vmax.f32 %v151, 0.0
  %v168 = vmax.f32 %v152, 0.0
  %v169 = vmax.f32 %v153, 0.0
  %v170 = vmax.f32 %v154, 0.0
  %v171 = vmax.f32 %v155, 0.0
  %v172 = vmax.f32 %v156, 0.0
  %v173 = vmax.f32 %v157, 0.0
  %v174 = vmax.f32 %v158, 0.0
  %v175 = vlaneseq
  %v176 = vshrl.u32 %v175, 7
  %v177 = vsub.s32 0, %v176
  %v178 = vrot.slane %v51, %v177
  %v179 = vmul.f32 %v103, %v178
  %v180 = vmul.f32 %v104, %v178
  %v181 = vmul.f32 %v105, %v178
  %v182 = vmul.f32 %v106, %v178
  %v183 = vmul.f32 %v107, %v178
  %v184 = vmul.f32 %v108, %v178
  %v185 = vmul.f32 %v109, %v178
  %v186 = vmul.f32 %v110, %v178
  %v187 = vmul.f32 %v111, %v178
  %v188 = vmul.f32 %v112, %v178
  %v189 = vmul.f32 %v113, %v178
  %v190 = vmul.f32 %v114, %v178
  %v191 = vmul.f32 %v115, %v178
  %v192 = vmul.f32 %v116, %v178
  %v193 = vmul.f32 %v117, %v178
  %v194 = vmul.f32 %v118, %v178
  %v195 = vlaneseq
  %v196 = vshrl.u32 %v195, 7
  %v197 = vsub.s32 0, %v196
  %v198 = vrot.slane %v52, %v197
  %v199 = vadd.f32 %v179, %v198
  %v200 = vadd.f32 %v180, %v198
  %v201 = vadd.f32 %v181, %v198
  %v202 = vadd.f32 %v182, %v198
  %v203 = vadd.f32 %v183, %v198
  %v204 = vadd.f32 %v184, %v198
  %v205 = vadd.f32 %v185, %v198
  %v206 = vadd.f32 %v186, %v198
  %v207 = vadd.f32 %v187, %v198
  %v208 = vadd.f32 %v188, %v198
  %v209 = vadd.f32 %v189, %v198
  %v210 = vadd.f32 %v190, %v198
  %v211 = vadd.f32 %v191, %v198
  %v212 = vadd.f32 %v192, %v198
  %v213 = vadd.f32 %v193, %v198
  %v214 = vadd.f32 %v194, %v198
  %v215 = vmax.f32 %v199, 0.0
  %v216 = vmax.f32 %v200, 0.0
  %v217 = vmax.f32 %v201, 0.0
  %v218 = vmax.f32 %v202, 0.0
  %v219 = vmax.f32 %v203, 0.0
  %v220 = vmax.f32 %v204, 0.0
  %v221 = vmax.f32 %v205, 0.0
  %v222 = vmax.f32 %v206, 0.0
  %v223 = vmax.f32 %v207, 0.0
  %v224 = vmax.f32 %v208, 0.0
  %v225 = vmax.f32 %v209, 0.0
  %v226 = vmax.f32 %v210, 0.0
  %v227 = vmax.f32 %v211, 0.0
  %v228 = vmax.f32 %v212, 0.0
  %v229 = vmax.f32 %v213, 0.0
  %v230 = vmax.f32 %v214, 0.0
  %v231 = vpack.c.bf16 %v160, %v159
  %v232 = vpack.c.bf16 %v162, %v161
  %v233 = vpack.c.bf16 %v164, %v163
  %v234 = vpack.c.bf16 %v166, %v165
  %v235 = vpack.c.bf16 %v168, %v167
  %v236 = vpack.c.bf16 %v170, %v169
  %v237 = vpack.c.bf16 %v172, %v171
  %v238 = vpack.c.bf16 %v174, %v173
  %v239 = vpack.c.bf16 %v216, %v215
  %v240 = vpack.c.bf16 %v218, %v217
  %v241 = vpack.c.bf16 %v220, %v219
  %v242 = vpack.c.bf16 %v222, %v221
  %v243 = vpack.c.bf16 %v224, %v223
  %v244 = vpack.c.bf16 %v226, %v225
  %v245 = vpack.c.bf16 %v228, %v227
  %v246 = vpack.c.bf16 %v230, %v229
  %v249 = vunpack.c.l.b16 %v45
  %v250 = vunpack.c.l.b16 %v46
  %v251 = vpack.c.b16 %v250, %v249
  %vm252 = vcmask 80896
  %v254 = vsel %vm252, %v239, 0
  %v257 = vsel %vm252, %v240, 0
  %v260 = vsel %vm252, %v241, 0
  %v263 = vsel %vm252, %v242, 0
  %v266 = vsel %vm252, %v243, 0
  %v269 = vsel %vm252, %v244, 0
  %v272 = vsel %vm252, %v245, 0
  %v275 = vsel %vm252, %v246, 0
  %vm277 = vcmask 1044480
  %v279 = vsel %vm277, %v251, 0
  %281 = vmatprep.subr.bf16.mxu0 0
  %282 = vmatpush1.bf16.msra.mxu0 %v279
  %283 = vmatprep.subr.bf16.mxu0 0
  %284 = vmatpush1.bf16.msra.mxu0 0
  %285 = vmatprep.subr.bf16.mxu0 0
  %286 = vmatpush1.bf16.msra.mxu0 0
  %287 = vmatprep.subr.bf16.mxu0 0
  %288 = vmatpush1.bf16.msra.mxu0 0
  %289 = vmatprep.subr.bf16.mxu0 0
  %290 = vmatpush1.bf16.msra.mxu0 0
  %291 = vmatprep.subr.bf16.mxu0 0
  %292 = vmatpush1.bf16.msra.mxu0 0
  %293 = vmatprep.subr.bf16.mxu0 0
  %294 = vmatpush1.bf16.msra.mxu0 0
  %295 = vmatprep.subr.bf16.mxu0 0
  %296 = vmatpush1.bf16.msra.mxu0 0
  %297 = vmatprep.subr.bf16.mxu0 0
  %298 = vmatpush1.bf16.msra.mxu0 0
  %299 = vmatprep.subr.bf16.mxu0 0
  %300 = vmatpush1.bf16.msra.mxu0 0
  %301 = vmatprep.subr.bf16.mxu0 0
  %302 = vmatpush1.bf16.msra.mxu0 0
  %303 = vmatprep.subr.bf16.mxu0 0
  %304 = vmatpush1.bf16.msra.mxu0 0
  %305 = vmatprep.subr.bf16.mxu0 0
  %306 = vmatpush1.bf16.msra.mxu0 0
  %307 = vmatprep.subr.bf16.mxu0 0
  %308 = vmatpush1.bf16.msra.mxu0 0
  %309 = vmatprep.subr.bf16.mxu0 0
  %310 = vmatpush1.bf16.msra.mxu0 0
  %311 = vmatprep.subr.bf16.mxu0 0
  %312 = vmatpush1.bf16.msra.mxu0 0
  %313 = vmatprep.mubr.bf16.mxu0 0
  %314 = vmatmul.mubr.bf16.gmra.mrb[0].mxu0 %v254
  %v315 = vpop.f32.mrb[0].mxu0
  %v316 = vadd.f32 0.0, %v315
  %v317 = vpop.f32.mrb[0].mxu0
  %v318 = vpop.f32.mrb[0].mxu0
  %v319 = vadd.f32 0.0, %v318
  %v320 = vpop.f32.mrb[0].mxu0
  %321 = vmatprep.mubr.bf16.mxu0 0
  %322 = vmatmul.mubr.bf16.gmra.mrb[0].mxu0 %v257
  %v323 = vpop.f32.mrb[0].mxu0
  %v324 = vadd.f32 0.0, %v323
  %v325 = vpop.f32.mrb[0].mxu0
  %v326 = vpop.f32.mrb[0].mxu0
  %v327 = vadd.f32 0.0, %v326
  %v328 = vpop.f32.mrb[0].mxu0
  %329 = vmatprep.mubr.bf16.mxu0 0
  %330 = vmatmul.mubr.bf16.gmra.mrb[0].mxu0 %v260
  %v331 = vpop.f32.mrb[0].mxu0
  %v332 = vadd.f32 0.0, %v331
  %v333 = vpop.f32.mrb[0].mxu0
  %v334 = vpop.f32.mrb[0].mxu0
  %v335 = vadd.f32 0.0, %v334
  %v336 = vpop.f32.mrb[0].mxu0
  %337 = vmatprep.mubr.bf16.mxu0 0
  %338 = vmatmul.mubr.bf16.gmra.mrb[0].mxu0 %v263
  %v339 = vpop.f32.mrb[0].mxu0
  %v340 = vadd.f32 0.0, %v339
  %v341 = vpop.f32.mrb[0].mxu0
  %v342 = vpop.f32.mrb[0].mxu0
  %v343 = vadd.f32 0.0, %v342
  %v344 = vpop.f32.mrb[0].mxu0
  %345 = vmatprep.mubr.bf16.mxu0 0
  %346 = vmatmul.mubr.bf16.gmra.mrb[0].mxu0 %v266
  %v347 = vpop.f32.mrb[0].mxu0
  %v348 = vadd.f32 0.0, %v347
  %v349 = vpop.f32.mrb[0].mxu0
  %v350 = vpop.f32.mrb[0].mxu0
  %v351 = vadd.f32 0.0, %v350
  %v352 = vpop.f32.mrb[0].mxu0
  %353 = vmatprep.mubr.bf16.mxu0 0
  %354 = vmatmul.mubr.bf16.gmra.mrb[0].mxu0 %v269
  %v355 = vpop.f32.mrb[0].mxu0
  %v356 = vadd.f32 0.0, %v355
  %v357 = vpop.f32.mrb[0].mxu0
  %v358 = vpop.f32.mrb[0].mxu0
  %v359 = vadd.f32 0.0, %v358
  %v360 = vpop.f32.mrb[0].mxu0
  %361 = vmatprep.mubr.bf16.mxu0 0
  %362 = vmatmul.mubr.bf16.gmra.mrb[0].mxu0 %v272
  %v363 = vpop.f32.mrb[0].mxu0
  %v364 = vadd.f32 0.0, %v363
  %v365 = vpop.f32.mrb[0].mxu0
  %v366 = vpop.f32.mrb[0].mxu0
  %v367 = vadd.f32 0.0, %v366
  %v368 = vpop.f32.mrb[0].mxu0
  %369 = vmatprep.mubr.bf16.mxu0 0
  %370 = vmatmul.mubr.bf16.gmra.mrb[0].mxu0 %v275
  %v371 = vpop.f32.mrb[0].mxu0
  %v372 = vadd.f32 0.0, %v371
  %v373 = vpop.f32.mrb[0].mxu0
  %v374 = vpop.f32.mrb[0].mxu0
  %v375 = vadd.f32 0.0, %v374
  %v376 = vpop.f32.mrb[0].mxu0
  %377 = vdwg.mxu0
  %v393 = vunpack.c.l.b16 %v30
  %v394 = vunpack.c.l.b16 %v31
  %v395 = vunpack.c.l.b16 %v32
  %v396 = vunpack.c.l.b16 %v33
  %v397 = vunpack.c.l.b16 %v34
  %v398 = vunpack.c.l.b16 %v35
  %v399 = vunpack.c.l.b16 %v36
  %v400 = vunpack.c.l.b16 %v37
  %v401 = vunpack.c.l.b16 %v38
  %v402 = vunpack.c.l.b16 %v39
  %v403 = vunpack.c.l.b16 %v40
  %v404 = vunpack.c.l.b16 %v41
  %v405 = vunpack.c.l.b16 %v42
  %v406 = vunpack.c.l.b16 %v43
  %v407 = vunpack.c.l.b16 %v44
  %v408 = vpack.c.b16 %v394, %v393
  %v409 = vpack.c.b16 %v396, %v395
  %v410 = vpack.c.b16 %v398, %v397
  %v411 = vpack.c.b16 %v400, %v399
  %v412 = vpack.c.b16 %v402, %v401
  %v413 = vpack.c.b16 %v404, %v403
  %v414 = vpack.c.b16 %v406, %v405
  %v415 = vpack.c.b16 %v407, %v407
  %vm423 = vcmask 924672
  %v425 = vsel %vm423, %v231, 0
  %v428 = vsel %vm423, %v232, 0
  %v431 = vsel %vm423, %v233, 0
  %v434 = vsel %vm423, %v234, 0
  %v437 = vsel %vm423, %v235, 0
  %v440 = vsel %vm423, %v236, 0
  %v443 = vsel %vm423, %v237, 0
  %v446 = vsel %vm423, %v238, 0
  %vm448 = vcmask 1040384
  %v449 = vsel 0, 4294967295, 65535
  %v450 = vsel %vm448, %v449, 0
  %v452 = vand.u32 %v415, %v450
  %454 = vmatprep.subr.bf16.mxu0 0
  %455 = vmatpush1.bf16.msra.mxu0 %v408
  %456 = vmatprep.subr.bf16.mxu0 0
  %457 = vmatpush1.bf16.msra.mxu0 %v409
  %458 = vmatprep.subr.bf16.mxu0 0
  %459 = vmatpush1.bf16.msra.mxu0 %v410
  %460 = vmatprep.subr.bf16.mxu0 0
  %461 = vmatpush1.bf16.msra.mxu0 %v411
  %462 = vmatprep.subr.bf16.mxu0 0
  %463 = vmatpush1.bf16.msra.mxu0 %v412
  %464 = vmatprep.subr.bf16.mxu0 0
  %465 = vmatpush1.bf16.msra.mxu0 %v413
  %466 = vmatprep.subr.bf16.mxu0 0
  %467 = vmatpush1.bf16.msra.mxu0 %v414
  %468 = vmatprep.subr.bf16.mxu0 0
  %469 = vmatpush1.bf16.msra.mxu0 %v452
  %470 = vmatprep.subr.bf16.mxu0 0
  %471 = vmatpush1.bf16.msra.mxu0 0
  %472 = vmatprep.subr.bf16.mxu0 0
  %473 = vmatpush1.bf16.msra.mxu0 0
  %474 = vmatprep.subr.bf16.mxu0 0
  %475 = vmatpush1.bf16.msra.mxu0 0
  %476 = vmatprep.subr.bf16.mxu0 0
  %477 = vmatpush1.bf16.msra.mxu0 0
  %478 = vmatprep.subr.bf16.mxu0 0
  %479 = vmatpush1.bf16.msra.mxu0 0
  %480 = vmatprep.subr.bf16.mxu0 0
  %481 = vmatpush1.bf16.msra.mxu0 0
  %482 = vmatprep.subr.bf16.mxu0 0
  %483 = vmatpush1.bf16.msra.mxu0 0
  %484 = vmatprep.subr.bf16.mxu0 0
  %485 = vmatpush1.bf16.msra.mxu0 0
  %486 = vmatprep.mubr.bf16.mxu0 0
  %487 = vmatmul.mubr.bf16.gmra.mrb[0].mxu0 %v425
  %v488 = vpop.f32.mrb[0].mxu0
  %v489 = vadd.f32 %v316, %v488
  %v490 = vpop.f32.mrb[0].mxu0
  %v491 = vpop.f32.mrb[0].mxu0
  %v492 = vadd.f32 %v319, %v491
  %v493 = vpop.f32.mrb[0].mxu0
  %494 = vmatprep.mubr.bf16.mxu0 0
  %495 = vmatmul.mubr.bf16.gmra.mrb[0].mxu0 %v428
  %v496 = vpop.f32.mrb[0].mxu0
  %v497 = vadd.f32 %v324, %v496
  %v498 = vpop.f32.mrb[0].mxu0
  %v499 = vpop.f32.mrb[0].mxu0
  %v500 = vadd.f32 %v327, %v499
  %v501 = vpop.f32.mrb[0].mxu0
  %502 = vmatprep.mubr.bf16.mxu0 0
  %503 = vmatmul.mubr.bf16.gmra.mrb[0].mxu0 %v431
  %v504 = vpop.f32.mrb[0].mxu0
  %v505 = vadd.f32 %v332, %v504
  %v506 = vpop.f32.mrb[0].mxu0
  %v507 = vpop.f32.mrb[0].mxu0
  %v508 = vadd.f32 %v335, %v507
  %v509 = vpop.f32.mrb[0].mxu0
  %510 = vmatprep.mubr.bf16.mxu0 0
  %511 = vmatmul.mubr.bf16.gmra.mrb[0].mxu0 %v434
  %v512 = vpop.f32.mrb[0].mxu0
  %v513 = vadd.f32 %v340, %v512
  %v514 = vpop.f32.mrb[0].mxu0
  %v515 = vpop.f32.mrb[0].mxu0
  %v516 = vadd.f32 %v343, %v515
  %v517 = vpop.f32.mrb[0].mxu0
  %518 = vmatprep.mubr.bf16.mxu0 0
  %519 = vmatmul.mubr.bf16.gmra.mrb[0].mxu0 %v437
  %v520 = vpop.f32.mrb[0].mxu0
  %v521 = vadd.f32 %v348, %v520
  %v522 = vpop.f32.mrb[0].mxu0
  %v523 = vpop.f32.mrb[0].mxu0
  %v524 = vadd.f32 %v351, %v523
  %v525 = vpop.f32.mrb[0].mxu0
  %526 = vmatprep.mubr.bf16.mxu0 0
  %527 = vmatmul.mubr.bf16.gmra.mrb[0].mxu0 %v440
  %v528 = vpop.f32.mrb[0].mxu0
  %v529 = vadd.f32 %v356, %v528
  %v530 = vpop.f32.mrb[0].mxu0
  %v531 = vpop.f32.mrb[0].mxu0
  %v532 = vadd.f32 %v359, %v531
  %v533 = vpop.f32.mrb[0].mxu0
  %534 = vmatprep.mubr.bf16.mxu0 0
  %535 = vmatmul.mubr.bf16.gmra.mrb[0].mxu0 %v443
  %v536 = vpop.f32.mrb[0].mxu0
  %v537 = vadd.f32 %v364, %v536
  %v538 = vpop.f32.mrb[0].mxu0
  %v539 = vpop.f32.mrb[0].mxu0
  %v540 = vadd.f32 %v367, %v539
  %v541 = vpop.f32.mrb[0].mxu0
  %542 = vmatprep.mubr.bf16.mxu0 0
  %543 = vmatmul.mubr.bf16.gmra.mrb[0].mxu0 %v446
  %v544 = vpop.f32.mrb[0].mxu0
  %v545 = vadd.f32 %v372, %v544
  %v546 = vpop.f32.mrb[0].mxu0
  %v547 = vpop.f32.mrb[0].mxu0
  %v548 = vadd.f32 %v375, %v547
  %v549 = vpop.f32.mrb[0].mxu0
  %550 = vdwg.mxu0
  %v551 = vlaneseq
  %v552 = vshrl.u32 %v551, 7
  %v553 = vsub.s32 0, %v552
  %v554 = vrot.slane %v53, %v553
  %v555 = vmul.f32 %v489, %v554
  %v556 = vmul.f32 %v492, %v554
  %v557 = vmul.f32 %v497, %v554
  %v558 = vmul.f32 %v500, %v554
  %v559 = vmul.f32 %v505, %v554
  %v560 = vmul.f32 %v508, %v554
  %v561 = vmul.f32 %v513, %v554
  %v562 = vmul.f32 %v516, %v554
  %v563 = vmul.f32 %v521, %v554
  %v564 = vmul.f32 %v524, %v554
  %v565 = vmul.f32 %v529, %v554
  %v566 = vmul.f32 %v532, %v554
  %v567 = vmul.f32 %v537, %v554
  %v568 = vmul.f32 %v540, %v554
  %v569 = vmul.f32 %v545, %v554
  %v570 = vmul.f32 %v548, %v554
  %v571 = vlaneseq
  %v572 = vshrl.u32 %v571, 7
  %v573 = vsub.s32 0, %v572
  %v574 = vrot.slane %v54, %v573
  %v575 = vadd.f32 %v555, %v574
  %v576 = vadd.f32 %v556, %v574
  %v577 = vadd.f32 %v557, %v574
  %v578 = vadd.f32 %v558, %v574
  %v579 = vadd.f32 %v559, %v574
  %v580 = vadd.f32 %v560, %v574
  %v581 = vadd.f32 %v561, %v574
  %v582 = vadd.f32 %v562, %v574
  %v583 = vadd.f32 %v563, %v574
  %v584 = vadd.f32 %v564, %v574
  %v585 = vadd.f32 %v565, %v574
  %v586 = vadd.f32 %v566, %v574
  %v587 = vadd.f32 %v567, %v574
  %v588 = vadd.f32 %v568, %v574
  %v589 = vadd.f32 %v569, %v574
  %v590 = vadd.f32 %v570, %v574
  %v591 = vmax.f32 %v575, 0.0
  %v592 = vmax.f32 %v576, 0.0
  %v593 = vmax.f32 %v577, 0.0
  %v594 = vmax.f32 %v578, 0.0
  %v595 = vmax.f32 %v579, 0.0
  %v596 = vmax.f32 %v580, 0.0
  %v597 = vmax.f32 %v581, 0.0
  %v598 = vmax.f32 %v582, 0.0
  %v599 = vmax.f32 %v583, 0.0
  %v600 = vmax.f32 %v584, 0.0
  %v601 = vmax.f32 %v585, 0.0
  %v602 = vmax.f32 %v586, 0.0
  %v603 = vmax.f32 %v587, 0.0
  %v604 = vmax.f32 %v588, 0.0
  %v605 = vmax.f32 %v589, 0.0
  %v606 = vmax.f32 %v590, 0.0
  %v607 = vpack.c.bf16 %v592, %v591
  %v608 = vpack.c.bf16 %v594, %v593
  %v609 = vpack.c.bf16 %v596, %v595
  %v610 = vpack.c.bf16 %v598, %v597
  %v611 = vpack.c.bf16 %v600, %v599
  %v612 = vpack.c.bf16 %v602, %v601
  %v613 = vpack.c.bf16 %v604, %v603
  %v614 = vpack.c.bf16 %v606, %v605
  %v617 = vunpack.c.l.b16 %v47
  %v618 = vunpack.c.h.b16 %v47
  %v619 = vunpack.c.l.b16 %v48
  %v620 = vunpack.c.h.b16 %v48
  %v621 = vpack.c.b16 %v617, %v617
  %v622 = vpack.c.b16 %v618, %v618
  %v623 = vpack.c.b16 %v619, %v619
  %v624 = vpack.c.b16 %v620, %v620
  %vm625 = vcmask 64512
  %v627 = vsel %vm625, %v607, 0
  %v630 = vsel %vm625, %v608, 0
  %v633 = vsel %vm625, %v609, 0
  %v636 = vsel %vm625, %v610, 0
  %v639 = vsel %vm625, %v611, 0
  %v642 = vsel %vm625, %v612, 0
  %v645 = vsel %vm625, %v613, 0
  %v648 = vsel %vm625, %v614, 0
  %vm650 = vcmask 1043456
  %v652 = vsel %vm650, %v621, 0
  %v655 = vsel %vm650, %v622, 0
  %v658 = vsel %vm650, %v623, 0
  %v661 = vsel %vm650, %v624, 0
  %663 = vmatprep.subr.bf16.mxu0 %v655
  %664 = vmatpush1.bf16.msra.mxu0 %v652
  %665 = vmatprep.subr.bf16.mxu0 0
  %666 = vmatpush1.bf16.msra.mxu0 0
  %667 = vmatprep.subr.bf16.mxu0 0
  %668 = vmatpush1.bf16.msra.mxu0 0
  %669 = vmatprep.subr.bf16.mxu0 0
  %670 = vmatpush1.bf16.msra.mxu0 0
  %671 = vmatprep.subr.bf16.mxu0 0
  %672 = vmatpush1.bf16.msra.mxu0 0
  %673 = vmatprep.subr.bf16.mxu0 0
  %674 = vmatpush1.bf16.msra.mxu0 0
  %675 = vmatprep.subr.bf16.mxu0 0
  %676 = vmatpush1.bf16.msra.mxu0 0
  %677 = vmatprep.subr.bf16.mxu0 0
  %678 = vmatpush1.bf16.msra.mxu0 0
  %679 = vmatprep.subr.bf16.mxu0 0
  %680 = vmatpush1.bf16.msra.mxu0 0
  %681 = vmatprep.subr.bf16.mxu0 0
  %682 = vmatpush1.bf16.msra.mxu0 0
  %683 = vmatprep.subr.bf16.mxu0 0
  %684 = vmatpush1.bf16.msra.mxu0 0
  %685 = vmatprep.subr.bf16.mxu0 0
  %686 = vmatpush1.bf16.msra.mxu0 0
  %687 = vmatprep.subr.bf16.mxu0 0
  %688 = vmatpush1.bf16.msra.mxu0 0
  %689 = vmatprep.subr.bf16.mxu0 0
  %690 = vmatpush1.bf16.msra.mxu0 0
  %691 = vmatprep.subr.bf16.mxu0 0
  %692 = vmatpush1.bf16.msra.mxu0 0
  %693 = vmatprep.subr.bf16.mxu0 0
  %694 = vmatpush1.bf16.msra.mxu0 0
  %695 = vmatprep.mubr.bf16.mxu0 0
  %696 = vmatmul.mubr.bf16.gmra.mrb[0].mxu0 %v627
  %v697 = vpop.f32.mrb[0].mxu0
  %v698 = vadd.f32 0.0, %v697
  %v699 = vpop.f32.mrb[0].mxu0
  %v700 = vadd.f32 0.0, %v699
  %v701 = vpop.f32.mrb[0].mxu0
  %v702 = vadd.f32 0.0, %v701
  %v703 = vpop.f32.mrb[0].mxu0
  %v704 = vadd.f32 0.0, %v703
  %705 = vmatprep.mubr.bf16.mxu0 0
  %706 = vmatmul.mubr.bf16.gmra.mrb[0].mxu0 %v630
  %v707 = vpop.f32.mrb[0].mxu0
  %v708 = vadd.f32 0.0, %v707
  %v709 = vpop.f32.mrb[0].mxu0
  %v710 = vadd.f32 0.0, %v709
  %v711 = vpop.f32.mrb[0].mxu0
  %v712 = vadd.f32 0.0, %v711
  %v713 = vpop.f32.mrb[0].mxu0
  %v714 = vadd.f32 0.0, %v713
  %715 = vmatprep.mubr.bf16.mxu0 0
  %716 = vmatmul.mubr.bf16.gmra.mrb[0].mxu0 %v633
  %v717 = vpop.f32.mrb[0].mxu0
  %v718 = vadd.f32 0.0, %v717
  %v719 = vpop.f32.mrb[0].mxu0
  %v720 = vadd.f32 0.0, %v719
  %v721 = vpop.f32.mrb[0].mxu0
  %v722 = vadd.f32 0.0, %v721
  %v723 = vpop.f32.mrb[0].mxu0
  %v724 = vadd.f32 0.0, %v723
  %725 = vmatprep.mubr.bf16.mxu0 0
  %726 = vmatmul.mubr.bf16.gmra.mrb[0].mxu0 %v636
  %v727 = vpop.f32.mrb[0].mxu0
  %v728 = vadd.f32 0.0, %v727
  %v729 = vpop.f32.mrb[0].mxu0
  %v730 = vadd.f32 0.0, %v729
  %v731 = vpop.f32.mrb[0].mxu0
  %v732 = vadd.f32 0.0, %v731
  %v733 = vpop.f32.mrb[0].mxu0
  %v734 = vadd.f32 0.0, %v733
  %735 = vmatprep.mubr.bf16.mxu0 0
  %736 = vmatmul.mubr.bf16.gmra.mrb[0].mxu0 %v639
  %v737 = vpop.f32.mrb[0].mxu0
  %v738 = vadd.f32 0.0, %v737
  %v739 = vpop.f32.mrb[0].mxu0
  %v740 = vadd.f32 0.0, %v739
  %v741 = vpop.f32.mrb[0].mxu0
  %v742 = vadd.f32 0.0, %v741
  %v743 = vpop.f32.mrb[0].mxu0
  %v744 = vadd.f32 0.0, %v743
  %745 = vmatprep.mubr.bf16.mxu0 0
  %746 = vmatmul.mubr.bf16.gmra.mrb[0].mxu0 %v642
  %v747 = vpop.f32.mrb[0].mxu0
  %v748 = vadd.f32 0.0, %v747
  %v749 = vpop.f32.mrb[0].mxu0
  %v750 = vadd.f32 0.0, %v749
  %v751 = vpop.f32.mrb[0].mxu0
  %v752 = vadd.f32 0.0, %v751
  %v753 = vpop.f32.mrb[0].mxu0
  %v754 = vadd.f32 0.0, %v753
  %755 = vmatprep.mubr.bf16.mxu0 0
  %756 = vmatmul.mubr.bf16.gmra.mrb[0].mxu0 %v645
  %v757 = vpop.f32.mrb[0].mxu0
  %v758 = vadd.f32 0.0, %v757
  %v759 = vpop.f32.mrb[0].mxu0
  %v760 = vadd.f32 0.0, %v759
  %v761 = vpop.f32.mrb[0].mxu0
  %v762 = vadd.f32 0.0, %v761
  %v763 = vpop.f32.mrb[0].mxu0
  %v764 = vadd.f32 0.0, %v763
  %765 = vmatprep.mubr.bf16.mxu0 0
  %766 = vmatmul.mubr.bf16.gmra.mrb[0].mxu0 %v648
  %v767 = vpop.f32.mrb[0].mxu0
  %v768 = vadd.f32 0.0, %v767
  %v769 = vpop.f32.mrb[0].mxu0
  %v770 = vadd.f32 0.0, %v769
  %v771 = vpop.f32.mrb[0].mxu0
  %v772 = vadd.f32 0.0, %v771
  %v773 = vpop.f32.mrb[0].mxu0
  %v774 = vadd.f32 0.0, %v773
  %775 = vdwg.mxu0
  %776 = vmatprep.subr.bf16.mxu0 %v661
  %777 = vmatpush1.bf16.msra.mxu0 %v658
  %778 = vmatprep.subr.bf16.mxu0 0
  %779 = vmatpush1.bf16.msra.mxu0 0
  %780 = vmatprep.subr.bf16.mxu0 0
  %781 = vmatpush1.bf16.msra.mxu0 0
  %782 = vmatprep.subr.bf16.mxu0 0
  %783 = vmatpush1.bf16.msra.mxu0 0
  %784 = vmatprep.subr.bf16.mxu0 0
  %785 = vmatpush1.bf16.msra.mxu0 0
  %786 = vmatprep.subr.bf16.mxu0 0
  %787 = vmatpush1.bf16.msra.mxu0 0
  %788 = vmatprep.subr.bf16.mxu0 0
  %789 = vmatpush1.bf16.msra.mxu0 0
  %790 = vmatprep.subr.bf16.mxu0 0
  %791 = vmatpush1.bf16.msra.mxu0 0
  %792 = vmatprep.subr.bf16.mxu0 0
  %793 = vmatpush1.bf16.msra.mxu0 0
  %794 = vmatprep.subr.bf16.mxu0 0
  %795 = vmatpush1.bf16.msra.mxu0 0
  %796 = vmatprep.subr.bf16.mxu0 0
  %797 = vmatpush1.bf16.msra.mxu0 0
  %798 = vmatprep.subr.bf16.mxu0 0
  %799 = vmatpush1.bf16.msra.mxu0 0
  %800 = vmatprep.subr.bf16.mxu0 0
  %801 = vmatpush1.bf16.msra.mxu0 0
  %802 = vmatprep.subr.bf16.mxu0 0
  %803 = vmatpush1.bf16.msra.mxu0 0
  %804 = vmatprep.subr.bf16.mxu0 0
  %805 = vmatpush1.bf16.msra.mxu0 0
  %806 = vmatprep.subr.bf16.mxu0 0
  %807 = vmatpush1.bf16.msra.mxu0 0
  %808 = vmatprep.mubr.bf16.mxu0 0
  %809 = vmatmul.mubr.bf16.gmra.mrb[0].mxu0 %v627
  %v810 = vpop.f32.mrb[0].mxu0
  %v811 = vadd.f32 0.0, %v810
  %v812 = vpop.f32.mrb[0].mxu0
  %v813 = vadd.f32 0.0, %v812
  %v814 = vpop.f32.mrb[0].mxu0
  %v815 = vadd.f32 0.0, %v814
  %v816 = vpop.f32.mrb[0].mxu0
  %v817 = vadd.f32 0.0, %v816
  %818 = vmatprep.mubr.bf16.mxu0 0
  %819 = vmatmul.mubr.bf16.gmra.mrb[0].mxu0 %v630
  %v820 = vpop.f32.mrb[0].mxu0
  %v821 = vadd.f32 0.0, %v820
  %v822 = vpop.f32.mrb[0].mxu0
  %v823 = vadd.f32 0.0, %v822
  %v824 = vpop.f32.mrb[0].mxu0
  %v825 = vadd.f32 0.0, %v824
  %v826 = vpop.f32.mrb[0].mxu0
  %v827 = vadd.f32 0.0, %v826
  %828 = vmatprep.mubr.bf16.mxu0 0
  %829 = vmatmul.mubr.bf16.gmra.mrb[0].mxu0 %v633
  %v830 = vpop.f32.mrb[0].mxu0
  %v831 = vadd.f32 0.0, %v830
  %v832 = vpop.f32.mrb[0].mxu0
  %v833 = vadd.f32 0.0, %v832
  %v834 = vpop.f32.mrb[0].mxu0
  %v835 = vadd.f32 0.0, %v834
  %v836 = vpop.f32.mrb[0].mxu0
  %v837 = vadd.f32 0.0, %v836
  %838 = vmatprep.mubr.bf16.mxu0 0
  %839 = vmatmul.mubr.bf16.gmra.mrb[0].mxu0 %v636
  %v840 = vpop.f32.mrb[0].mxu0
  %v841 = vadd.f32 0.0, %v840
  %v842 = vpop.f32.mrb[0].mxu0
  %v843 = vadd.f32 0.0, %v842
  %v844 = vpop.f32.mrb[0].mxu0
  %v845 = vadd.f32 0.0, %v844
  %v846 = vpop.f32.mrb[0].mxu0
  %v847 = vadd.f32 0.0, %v846
  %848 = vmatprep.mubr.bf16.mxu0 0
  %849 = vmatmul.mubr.bf16.gmra.mrb[0].mxu0 %v639
  %v850 = vpop.f32.mrb[0].mxu0
  %v851 = vadd.f32 0.0, %v850
  %v852 = vpop.f32.mrb[0].mxu0
  %v853 = vadd.f32 0.0, %v852
  %v854 = vpop.f32.mrb[0].mxu0
  %v855 = vadd.f32 0.0, %v854
  %v856 = vpop.f32.mrb[0].mxu0
  %v857 = vadd.f32 0.0, %v856
  %858 = vmatprep.mubr.bf16.mxu0 0
  %859 = vmatmul.mubr.bf16.gmra.mrb[0].mxu0 %v642
  %v860 = vpop.f32.mrb[0].mxu0
  %v861 = vadd.f32 0.0, %v860
  %v862 = vpop.f32.mrb[0].mxu0
  %v863 = vadd.f32 0.0, %v862
  %v864 = vpop.f32.mrb[0].mxu0
  %v865 = vadd.f32 0.0, %v864
  %v866 = vpop.f32.mrb[0].mxu0
  %v867 = vadd.f32 0.0, %v866
  %868 = vmatprep.mubr.bf16.mxu0 0
  %869 = vmatmul.mubr.bf16.gmra.mrb[0].mxu0 %v645
  %v870 = vpop.f32.mrb[0].mxu0
  %v871 = vadd.f32 0.0, %v870
  %v872 = vpop.f32.mrb[0].mxu0
  %v873 = vadd.f32 0.0, %v872
  %v874 = vpop.f32.mrb[0].mxu0
  %v875 = vadd.f32 0.0, %v874
  %v876 = vpop.f32.mrb[0].mxu0
  %v877 = vadd.f32 0.0, %v876
  %878 = vmatprep.mubr.bf16.mxu0 0
  %879 = vmatmul.mubr.bf16.gmra.mrb[0].mxu0 %v648
  %v880 = vpop.f32.mrb[0].mxu0
  %v881 = vadd.f32 0.0, %v880
  %v882 = vpop.f32.mrb[0].mxu0
  %v883 = vadd.f32 0.0, %v882
  %v884 = vpop.f32.mrb[0].mxu0
  %v885 = vadd.f32 0.0, %v884
  %v886 = vpop.f32.mrb[0].mxu0
  %v887 = vadd.f32 0.0, %v886
  %888 = vdwg.mxu0
  %s889 = smul.u32 0, 4
  %s890 = smul.addr %s889, 8
  %s891 = scalar_lea.vmem %s8, %s890
  %892 = vst [vmem:[%s891] sm:$0xff] %v698
  %893 = vst [vmem:[%s891 + $0x8] sm:$0xff] %v700
  %894 = vst [vmem:[%s891 + $0x10] sm:$0xff] %v811
  %895 = vst [vmem:[%s891 + $0x18] sm:$0xff] %v813
  %896 = vst [vmem:[%s891 + $0x20] sm:$0xff] %v702
  %897 = vst [vmem:[%s891 + $0x28] sm:$0xff] %v704
  %898 = vst [vmem:[%s891 + $0x30] sm:$0xff] %v815
  %899 = vst [vmem:[%s891 + $0x38] sm:$0xff] %v817
  %900 = vst [vmem:[%s891 + $0x40] sm:$0xff] %v708
  %901 = vst [vmem:[%s891 + $0x48] sm:$0xff] %v710
  %902 = vst [vmem:[%s891 + $0x50] sm:$0xff] %v821
  %903 = vst [vmem:[%s891 + $0x58] sm:$0xff] %v823
  %904 = vst [vmem:[%s891 + $0x60] sm:$0xff] %v712
  %905 = vst [vmem:[%s891 + $0x68] sm:$0xff] %v714
  %906 = vst [vmem:[%s891 + $0x70] sm:$0xff] %v825
  %907 = vst [vmem:[%s891 + $0x78] sm:$0xff] %v827
  %908 = vst [vmem:[%s891 + $0x80] sm:$0xff] %v718
  %909 = vst [vmem:[%s891 + $0x88] sm:$0xff] %v720
  %910 = vst [vmem:[%s891 + $0x90] sm:$0xff] %v831
  %911 = vst [vmem:[%s891 + $0x98] sm:$0xff] %v833
  %912 = vst [vmem:[%s891 + $0xa0] sm:$0xff] %v722
  %913 = vst [vmem:[%s891 + $0xa8] sm:$0xff] %v724
  %914 = vst [vmem:[%s891 + $0xb0] sm:$0xff] %v835
  %915 = vst [vmem:[%s891 + $0xb8] sm:$0xff] %v837
  %916 = vst [vmem:[%s891 + $0xc0] sm:$0xff] %v728
  %917 = vst [vmem:[%s891 + $0xc8] sm:$0xff] %v730
  %918 = vst [vmem:[%s891 + $0xd0] sm:$0xff] %v841
  %919 = vst [vmem:[%s891 + $0xd8] sm:$0xff] %v843
  %920 = vst [vmem:[%s891 + $0xe0] sm:$0xff] %v732
  %921 = vst [vmem:[%s891 + $0xe8] sm:$0xff] %v734
  %922 = vst [vmem:[%s891 + $0xf0] sm:$0xff] %v845
  %923 = vst [vmem:[%s891 + $0xf8] sm:$0xff] %v847
  %924 = vst [vmem:[%s891 + $0x100] sm:$0xff] %v738
  %925 = vst [vmem:[%s891 + $0x108] sm:$0xff] %v740
  %926 = vst [vmem:[%s891 + $0x110] sm:$0xff] %v851
  %927 = vst [vmem:[%s891 + $0x118] sm:$0xff] %v853
  %928 = vst [vmem:[%s891 + $0x120] sm:$0xff] %v742
  %929 = vst [vmem:[%s891 + $0x128] sm:$0xff] %v744
  %930 = vst [vmem:[%s891 + $0x130] sm:$0xff] %v855
  %931 = vst [vmem:[%s891 + $0x138] sm:$0xff] %v857
  %932 = vst [vmem:[%s891 + $0x140] sm:$0xff] %v748
  %933 = vst [vmem:[%s891 + $0x148] sm:$0xff] %v750
  %934 = vst [vmem:[%s891 + $0x150] sm:$0xff] %v861
  %935 = vst [vmem:[%s891 + $0x158] sm:$0xff] %v863
  %936 = vst [vmem:[%s891 + $0x160] sm:$0xff] %v752
  %937 = vst [vmem:[%s891 + $0x168] sm:$0xff] %v754
  %938 = vst [vmem:[%s891 + $0x170] sm:$0xff] %v865
  %939 = vst [vmem:[%s891 + $0x178] sm:$0xff] %v867
  %940 = vst [vmem:[%s891 + $0x180] sm:$0xff] %v758
  %941 = vst [vmem:[%s891 + $0x188] sm:$0xff] %v760
  %942 = vst [vmem:[%s891 + $0x190] sm:$0xff] %v871
  %943 = vst [vmem:[%s891 + $0x198] sm:$0xff] %v873
  %944 = vst [vmem:[%s891 + $0x1a0] sm:$0xff] %v762
  %945 = vst [vmem:[%s891 + $0x1a8] sm:$0xff] %v764
  %946 = vst [vmem:[%s891 + $0x1b0] sm:$0xff] %v875
  %947 = vst [vmem:[%s891 + $0x1b8] sm:$0xff] %v877
  %948 = vst [vmem:[%s891 + $0x1c0] sm:$0xff] %v768
  %949 = vst [vmem:[%s891 + $0x1c8] sm:$0xff] %v770
  %950 = vst [vmem:[%s891 + $0x1d0] sm:$0xff] %v881
  %951 = vst [vmem:[%s891 + $0x1d8] sm:$0xff] %v883
  %952 = vst [vmem:[%s891 + $0x1e0] sm:$0xff] %v772
  %953 = vst [vmem:[%s891 + $0x1e8] sm:$0xff] %v774
  %954 = vst [vmem:[%s891 + $0x1f0] sm:$0xff] %v885
  %955 = vst [vmem:[%s891 + $0x1f8] sm:$0xff] %v887
  // Predicated region
  $region34: #{fcn_forward.11} parent=0 // pred_check
    _
  $region35: #{fcn_forward.11} parent=0 // pred_check_branch
    %957 = sbr.rel (0) target = $region37
  $region36: #{fcn_forward.11} parent=0 // pred_region
    _
  $region37: #{fcn_forward.11} parent=0 // pred_fallthru
    _
  // Predicated region
  $region38: #{fcn_forward.11} parent=0 // pred_check
    _
  $region39: #{fcn_forward.11} parent=0 // pred_check_branch
    %959 = sbr.rel (0) target = $region41
  $region40: #{fcn_forward.11} parent=0 // pred_region
    _
  $region41: #{fcn_forward.11} parent=0 // pred_fallthru
    _

</llo_original>
